<compile_context>
chip_gen: v7x
topology: tpu7x:2x2x1
jax: 0.10.0
libtpu: 0.0.40
codegen_flags: <defaults>
</compile_context>

<pallas_src>
import functools

import numpy as np

import jax
import jax.numpy as jnp
from jax.experimental import pallas as pl
from jax.experimental.pallas import tpu as pltpu


# ----------------------------------------------------------------------------
# Kernel 1: fused Conv2d(3x3, pad=1) + bias + ReLU + MaxPool2d(2).
# ----------------------------------------------------------------------------
def _conv_relu_pool_kernel(x_ref, w_ref, b_ref, o_ref, acc_ref, *, THp, Wp, Cout):
    # x_ref: (1, 1, PRb_pad, 4*Cin)  flattened s2d band (row m = u*Wb + v), bf16
    #        row (u, v) holds the 2x2 padded-input pixel block at padded rows
    #        (2u, 2u+1) x cols (2v, 2v+1); lane = (2*s + r)*Cin + c.
    # w_ref: (4, 4*Cin, 4*Cout)  packed shift weights (shift idx = 2a + b), bf16
    # b_ref: (1, Cout)           bias, f32
    # o_ref: (1, 1, THp*Wp, Cout) pooled output rows of this band, bf16
    # acc_ref: (THp*Wb, 4*Cout)  f32 VMEM accumulator (quadrants in columns)
    Wb = Wp + 1
    M = THp * Wb

    # Four contiguous-shift dots: shift d = a*Wb + b for (a, b) in {0,1}^2.
    acc_ref[...] = jnp.dot(x_ref[0, 0, 0:M, :], w_ref[0],
                           preferred_element_type=jnp.float32)
    for idx, d in ((1, 1), (2, Wb), (3, Wb + 1)):
        acc_ref[...] += jnp.dot(x_ref[0, 0, d:d + M, :], w_ref[idx],
                                preferred_element_type=jnp.float32)

    acc = acc_ref[...]
    # MaxPool2d(2): max over the 4 quadrant column groups.
    q = jnp.maximum(jnp.maximum(acc[:, 0:Cout], acc[:, Cout:2 * Cout]),
                    jnp.maximum(acc[:, 2 * Cout:3 * Cout], acc[:, 3 * Cout:4 * Cout]))
    # bias is constant across the pool window and ReLU is monotone, so
    # relu(max_q(conv_q) + b) == maxpool(relu(conv + b)).
    z = jnp.maximum(q + b_ref[...], 0.0)
    # Drop the garbage halo column (v == Wp) and store.
    z = z.reshape(THp, Wb, Cout)[:, :Wp, :].reshape(THp * Wp, Cout)
    o_ref[0, 0] = z.astype(o_ref.dtype)


def _space_to_depth_bands(x_nhwc, THp):
    """Zero-pad by 1, pack 2x2 pixel blocks into lanes (width 4*Cin), cut row
    bands with a 1-block-row halo, flatten band rows and pad them so the four
    shifted slices (d in {0, 1, Wb, Wb+1}) stay in bounds."""
    N, H, W, C = x_nhwc.shape
    Hp, Wp = H // 2, W // 2
    Hb, Wb = Hp + 1, Wp + 1
    xp = jnp.pad(x_nhwc, ((0, 0), (1, 1), (1, 1), (0, 0)))
    s2d = xp.reshape(N, Hb, 2, Wb, 2, C).transpose(0, 1, 3, 2, 4, 5)
    s2d = s2d.reshape(N, Hb, Wb, 4 * C)
    NB = Hp // THp
    # TODO(synk): fetch the overlapping halo window straight from the packed
    # (N, Hb, Wb, 4C) tensor (memory_space=pl.ANY + manual copy) instead of
    # materializing halo-duplicated bands here.
    bands = jnp.stack([s2d[:, i * THp:i * THp + THp + 1] for i in range(NB)],
                      axis=1)                            # (N, NB, THp+1, Wb, 4C)
    PRb = (THp + 1) * Wb
    bands = bands.reshape(N, NB, PRb, 4 * C)
    PRb_pad = ((PRb + 1 + 7) // 8) * 8                   # >= PRb + 1
    bands = jnp.pad(bands, ((0, 0), (0, 0), (0, PRb_pad - PRb), (0, 0)))
    return bands, NB, PRb_pad


def conv_relu_pool(x_nhwc, w_packed, bias, *, max_band_rows=32):
    """Conv2d(3x3, pad=1) + ReLU + MaxPool2d(2) on an NHWC bf16 activation."""
    N, H, W, C = x_nhwc.shape
    Cout = w_packed.shape[-1] // 4
    Hp, Wp = H // 2, W // 2
    Wb = Wp + 1
    THp = min(max_band_rows, Hp)
    while Hp % THp:
        THp -= 1
    bands, NB, PRb_pad = _space_to_depth_bands(x_nhwc, THp)

    kernel = functools.partial(_conv_relu_pool_kernel, THp=THp, Wp=Wp, Cout=Cout)
    flops = 8 * N * NB * (THp * Wb) * (4 * C) * (4 * Cout)
    bytes_accessed = (bands.size + w_packed.size) * 2 + bias.size * 4 \
        + N * Hp * Wp * Cout * 2

    out = pl.pallas_call(
        kernel,
        out_shape=jax.ShapeDtypeStruct((N, NB, THp * Wp, Cout), x_nhwc.dtype),
        grid=(N, NB),
        in_specs=[
            pl.BlockSpec((1, 1, PRb_pad, 4 * C), lambda n, i: (n, i, 0, 0)),
            pl.BlockSpec((4, 4 * C, 4 * Cout), lambda n, i: (0, 0, 0)),
            pl.BlockSpec((1, Cout), lambda n, i: (0, 0)),
        ],
        out_specs=pl.BlockSpec((1, 1, THp * Wp, Cout), lambda n, i: (n, i, 0, 0)),
        scratch_shapes=[pltpu.VMEM((THp * Wb, 4 * Cout), jnp.float32)],
        compiler_params=pltpu.CompilerParams(
            dimension_semantics=("parallel", "parallel"),
            vmem_limit_bytes=32 * 1024 * 1024),
        cost_estimate=pl.CostEstimate(flops=int(flops), transcendentals=0,
                                      bytes_accessed=int(bytes_accessed)),
    )(bands, w_packed, bias)

    return out.reshape(N, NB * THp, Wp, Cout)            # pooled NHWC


# ----------------------------------------------------------------------------
# Kernel 2: fused FC head: Linear -> ReLU -> Linear -> Sigmoid,
# K-tiled over the reduction axis with an f32 VMEM accumulator.
# ----------------------------------------------------------------------------
def _fc_head_kernel(x_ref, w1_ref, b1_ref, w2_ref, b2_ref, o_ref, h_acc):
    k = pl.program_id(0)

    @pl.when(k == 0)
    def _init():
        h_acc[...] = jnp.zeros_like(h_acc)

    h_acc[...] += jnp.dot(x_ref[...], w1_ref[...],
                          preferred_element_type=jnp.float32)

    @pl.when(k == pl.num_programs(0) - 1)
    def _finalize():
        h = jnp.maximum(h_acc[...] + b1_ref[...], 0.0)
        logits = jnp.dot(h.astype(w2_ref.dtype), w2_ref[...],
                         preferred_element_type=jnp.float32) + b2_ref[...]
        o_ref[...] = jax.nn.sigmoid(logits).astype(o_ref.dtype)


def fc_head(x_flat, w1, b1, w2, b2, *, max_tile_k=32768):
    # TODO(synk): v7x dual-TensorCore split (parallel K halves + tiny combine)
    # and int8/fp8 fc1 quantization would further cut the w1 HBM stream.
    N, K = x_flat.shape
    H1 = w1.shape[1]                       # true hidden width (64, unpadded)
    tk = min(max_tile_k, K)
    while K % tk:
        tk //= 2
    assert tk >= 8, f"bad K tiling: K={K}, tk={tk}"
    KT = K // tk

    flops = 2 * N * K * H1 + 2 * N * H1
    bytes_accessed = (x_flat.size + w1.size + w2.size) * 2 \
        + (b1.size + b2.size + N) * 4

    return pl.pallas_call(
        _fc_head_kernel,
        out_shape=jax.ShapeDtypeStruct((N, 1), jnp.float32),
        grid=(KT,),
        in_specs=[
            pl.BlockSpec((N, tk), lambda k: (0, k)),
            pl.BlockSpec((tk, H1), lambda k: (k, 0)),
            pl.BlockSpec((1, H1), lambda k: (0, 0)),
            pl.BlockSpec((H1, 1), lambda k: (0, 0)),
            pl.BlockSpec((1, 1), lambda k: (0, 0)),
        ],
        out_specs=pl.BlockSpec((N, 1), lambda k: (0, 0)),
        scratch_shapes=[pltpu.VMEM((N, H1), jnp.float32)],
        compiler_params=pltpu.CompilerParams(
            dimension_semantics=("arbitrary",),
            vmem_limit_bytes=32 * 1024 * 1024),
        cost_estimate=pl.CostEstimate(flops=int(flops), transcendentals=int(N),
                                      bytes_accessed=int(bytes_accessed)),
    )(x_flat, w1, b1, w2, b2)


# ----------------------------------------------------------------------------
# Full forward pass (matches SimpleCNN.forward).
# ----------------------------------------------------------------------------
def simple_cnn_forward(x_nchw, kp):
    x = jnp.transpose(x_nchw, (0, 2, 3, 1)).astype(jnp.bfloat16)   # NCHW -> NHWC
    x = conv_relu_pool(x, kp["w_conv1"], kp["b_conv1"])
    x = conv_relu_pool(x, kp["w_conv2"], kp["b_conv2"])
    # Flatten in NHWC order; kp["w_fc1"] rows were pre-permuted (one time, in
    # prepare_params) to match torch.nn.Flatten's NCHW ordering.
    x = x.reshape(x.shape[0], -1)
    out = fc_head(x, kp["w_fc1"], kp["b_fc1"], kp["w_fc2"], kp["b_fc2"])
    return out[:, 0]                                               # .squeeze(1)


def init_params(key, H, W):
    """PyTorch-layout, PyTorch-style uniform(-1/sqrt(fan_in), +) init, f32."""
    Hp2, Wp2 = H // 4, W // 4
    fc_in = 32 * Hp2 * Wp2
    ks = jax.random.split(key, 8)

    def u(k, shape, fan_in):
        bound = 1.0 / float(fan_in) ** 0.5
        return jax.random.uniform(k, shape, jnp.float32, -bound, bound)

    return {
        "w_conv1": u(ks[0], (16, 3, 3, 3), 3 * 3 * 3),     # torch OIHW
        "b_conv1": u(ks[1], (16,), 3 * 3 * 3),
        "w_conv2": u(ks[2], (32, 16, 3, 3), 16 * 3 * 3),
        "b_conv2": u(ks[3], (32,), 16 * 3 * 3),
        "w_fc1":   u(ks[4], (64, fc_in), fc_in),           # torch (out, in)
        "b_fc1":   u(ks[5], (64,), fc_in),
        "w_fc2":   u(ks[6], (1, 64), 64),
        "b_fc2":   u(ks[7], (1,), 64),
    }


def _pack_conv_weight(w_oihw):
    """Pack a torch OIHW 3x3 conv weight into the 4 per-shift matrices
    W[2a+b][(2s+r)*Cin + c, (2qy+qx)*Cout + o] used by the fused
    conv+pool kernel (zero rows for taps that do not contribute)."""
    w = np.asarray(w_oihw, np.float32)
    Cout, Cin = w.shape[0], w.shape[1]
    packed = np.zeros((4, 4 * Cin, 4 * Cout), np.float32)
    for a in range(2):
        for b in range(2):
            for qy in range(2):
                for qx in range(2):
                    for s in range(2):
                        for r in range(2):
                            ky = 2 * a + s - qy
                            kx = 2 * b + r - qx
                            if 0 <= ky <= 2 and 0 <= kx <= 2:
                                packed[2 * a + b,
                                       (2 * s + r) * Cin:(2 * s + r + 1) * Cin,
                                       (2 * qy + qx) * Cout:(2 * qy + qx + 1) * Cout] \
                                    = w[:, :, ky, kx].T
    return jnp.asarray(packed, jnp.bfloat16)


def prepare_params(p, H, W):
    """One-time conversion of torch-layout f32 params into kernel layouts:
    conv taps as packed (4, 4*Cin, 4*Cout) shift matrices; fc1 rows permuted
    NCHW->NHWC flatten order; bf16 weights, f32 biases; NO hidden padding."""
    Hp2, Wp2, C2 = H // 4, W // 4, 32
    w1 = p["w_fc1"].reshape(64, C2, Hp2, Wp2).transpose(2, 3, 1, 0)
    w1 = w1.reshape(Hp2 * Wp2 * C2, 64)

    return {
        "w_conv1": _pack_conv_weight(p["w_conv1"]),
        "b_conv1": p["b_conv1"].reshape(1, -1).astype(jnp.float32),
        "w_conv2": _pack_conv_weight(p["w_conv2"]),
        "b_conv2": p["b_conv2"].reshape(1, -1).astype(jnp.float32),
        "w_fc1": w1.astype(jnp.bfloat16),                  # (fc_in, 64)
        "b_fc1": p["b_fc1"].reshape(1, 64).astype(jnp.float32),
        "w_fc2": p["w_fc2"].T.astype(jnp.bfloat16),        # (64, 1)
        "b_fc2": p["b_fc2"].reshape(1, 1).astype(jnp.float32),
    }


def torch_reference(x_nchw, p):
    """Pure-XLA f32 reference mirroring the PyTorch module exactly."""
    def block(x, w, b):
        y = jax.lax.conv_general_dilated(
            x, w, window_strides=(1, 1), padding=((1, 1), (1, 1)),
            dimension_numbers=("NCHW", "OIHW", "NCHW"))
        y = jax.nn.relu(y + b[None, :, None, None])
        return jax.lax.reduce_window(y, -jnp.inf, jax.lax.max,
                                     (1, 1, 2, 2), (1, 1, 2, 2), "VALID")

    x = block(x_nchw, p["w_conv1"], p["b_conv1"])
    x = block(x, p["w_conv2"], p["b_conv2"])
    x = x.reshape(x.shape[0], -1)
    h = jax.nn.relu(x @ p["w_fc1"].T + p["b_fc1"])
    logits = h @ p["w_fc2"].T + p["b_fc2"]
    return jax.nn.sigmoid(logits)[:, 0]


if __name__ == "__main__":
    key = jax.random.PRNGKey(0)
    k_x, k_p = jax.random.split(key)

    N, C, H, W = 2, 3, 16, 16                 # small config (orig module: 3x256x256)
    x = jax.random.normal(k_x, (N, C, H, W), jnp.float32)
    params = init_params(k_p, H, W)
    kparams = prepare_params(params, H, W)    # one-time, outside the hot path

    fwd = jax.jit(simple_cnn_forward)
    out = jax.block_until_ready(fwd(x, kparams))

    assert out.shape == (N,), out.shape
    assert out.dtype == jnp.float32
    assert bool(jnp.all((out >= 0.0) & (out <= 1.0)))   # sigmoid range

    ref = torch_reference(x, params)                    # f32 reference
    err = float(jnp.max(jnp.abs(out - ref)))
    assert err < 2e-2, f"mismatch vs f32 reference: {err}"

    print("KERNEL_OK")
</pallas_src>

<mosaic_0001>
module attributes {stable_mosaic.version = 11 : i64} {
  func.func @_conv_relu_pool_kernel(%arg0: i32, %arg1: i32, %arg2: memref<1x1x88x12xbf16, #tpu.memory_space<vmem>>, %arg3: memref<4x12x64xbf16, #tpu.memory_space<vmem>>, %arg4: memref<1x16xf32, #tpu.memory_space<vmem>>, %arg5: memref<1x1x64x16xbf16, #tpu.memory_space<vmem>>, %arg6: memref<72x64xf32, #tpu.memory_space<vmem>>) attributes {dimension_semantics = [#tpu.dimension_semantics<parallel>, #tpu.dimension_semantics<parallel>], iteration_bounds = array<i64: 2, 1>, scalar_prefetch = 0 : i64, scratch_operands = 1 : i64, tpu.core_type = #tpu.core_type<tc>, window_params = [{transform_indices = @transform_0, window_bounds = array<i64: 1, 1, 88, 12>}, {pipeline_mode = #tpu.pipeline_mode<synchronous>, transform_indices = @transform_1, window_bounds = array<i64: 4, 12, 64>}, {pipeline_mode = #tpu.pipeline_mode<synchronous>, transform_indices = @transform_2, window_bounds = array<i64: 1, 16>}, {transform_indices = @transform_3, window_bounds = array<i64: 1, 1, 64, 16>}]} {
    %c0 = arith.constant 0 : index
    %c0_0 = arith.constant 0 : index
    %c0_1 = arith.constant 0 : index
    %c0_2 = arith.constant 0 : index
    %0 = vector.load %arg2[%c0, %c0_0, %c0_1, %c0_2] : memref<1x1x88x12xbf16, #tpu.memory_space<vmem>>, vector<1x1x72x12xbf16>
    %1 = vector.shape_cast %0 : vector<1x1x72x12xbf16> to vector<72x12xbf16>
    %c0_3 = arith.constant 0 : index
    %c0_4 = arith.constant 0 : index
    %c0_5 = arith.constant 0 : index
    %2 = vector.load %arg3[%c0_3, %c0_4, %c0_5] : memref<4x12x64xbf16, #tpu.memory_space<vmem>>, vector<1x12x64xbf16>
    %3 = vector.shape_cast %2 : vector<1x12x64xbf16> to vector<12x64xbf16>
    %cst = arith.constant dense<0.000000e+00> : vector<72x64xf32>
    %4 = tpu.matmul %1, %3, %cst {dimension_numbers = #tpu.dot_dimension_numbers<[1], [0], [0], [1], [0, 0, 1, 1], [], []>} : vector<72x12xbf16>, vector<12x64xbf16>, vector<72x64xf32> -> vector<72x64xf32>
    %c0_6 = arith.constant 0 : index
    %c0_7 = arith.constant 0 : index
    %5 = vector.load %arg6[%c0_6, %c0_7] : memref<72x64xf32, #tpu.memory_space<vmem>>, vector<72x64xf32>
    tpu.vector_store %arg6[%c0_6, %c0_7], %4 {strides = array<i32>} : memref<72x64xf32, #tpu.memory_space<vmem>>, vector<72x64xf32>,
    %c0_8 = arith.constant 0 : index
    %c0_9 = arith.constant 0 : index
    %6 = vector.load %arg6[%c0_8, %c0_9] : memref<72x64xf32, #tpu.memory_space<vmem>>, vector<72x64xf32>
    %c0_10 = arith.constant 0 : index
    %c0_11 = arith.constant 0 : index
    %c1 = arith.constant 1 : index
    %c0_12 = arith.constant 0 : index
    %7 = vector.load %arg2[%c0_10, %c0_11, %c1, %c0_12] : memref<1x1x88x12xbf16, #tpu.memory_space<vmem>>, vector<1x1x72x12xbf16>
    %8 = vector.shape_cast %7 : vector<1x1x72x12xbf16> to vector<72x12xbf16>
    %c1_13 = arith.constant 1 : index
    %c0_14 = arith.constant 0 : index
    %c0_15 = arith.constant 0 : index
    %9 = vector.load %arg3[%c1_13, %c0_14, %c0_15] : memref<4x12x64xbf16, #tpu.memory_space<vmem>>, vector<1x12x64xbf16>
    %10 = vector.shape_cast %9 : vector<1x12x64xbf16> to vector<12x64xbf16>
    %cst_16 = arith.constant dense<0.000000e+00> : vector<72x64xf32>
    %11 = tpu.matmul %8, %10, %cst_16 {dimension_numbers = #tpu.dot_dimension_numbers<[1], [0], [0], [1], [0, 0, 1, 1], [], []>} : vector<72x12xbf16>, vector<12x64xbf16>, vector<72x64xf32> -> vector<72x64xf32>
    %12 = arith.addf %6, %11 : vector<72x64xf32>
    %c0_17 = arith.constant 0 : index
    %c0_18 = arith.constant 0 : index
    %13 = vector.load %arg6[%c0_17, %c0_18] : memref<72x64xf32, #tpu.memory_space<vmem>>, vector<72x64xf32>
    tpu.vector_store %arg6[%c0_17, %c0_18], %12 {strides = array<i32>} : memref<72x64xf32, #tpu.memory_space<vmem>>, vector<72x64xf32>,
    %c0_19 = arith.constant 0 : index
    %c0_20 = arith.constant 0 : index
    %14 = vector.load %arg6[%c0_19, %c0_20] : memref<72x64xf32, #tpu.memory_space<vmem>>, vector<72x64xf32>
    %c0_21 = arith.constant 0 : index
    %c0_22 = arith.constant 0 : index
    %c9 = arith.constant 9 : index
    %c0_23 = arith.constant 0 : index
    %15 = vector.load %arg2[%c0_21, %c0_22, %c9, %c0_23] : memref<1x1x88x12xbf16, #tpu.memory_space<vmem>>, vector<1x1x72x12xbf16>
    %16 = vector.shape_cast %15 : vector<1x1x72x12xbf16> to vector<72x12xbf16>
    %c2 = arith.constant 2 : index
    %c0_24 = arith.constant 0 : index
    %c0_25 = arith.constant 0 : index
    %17 = vector.load %arg3[%c2, %c0_24, %c0_25] : memref<4x12x64xbf16, #tpu.memory_space<vmem>>, vector<1x12x64xbf16>
    %18 = vector.shape_cast %17 : vector<1x12x64xbf16> to vector<12x64xbf16>
    %cst_26 = arith.constant dense<0.000000e+00> : vector<72x64xf32>
    %19 = tpu.matmul %16, %18, %cst_26 {dimension_numbers = #tpu.dot_dimension_numbers<[1], [0], [0], [1], [0, 0, 1, 1], [], []>} : vector<72x12xbf16>, vector<12x64xbf16>, vector<72x64xf32> -> vector<72x64xf32>
    %20 = arith.addf %14, %19 : vector<72x64xf32>
    %c0_27 = arith.constant 0 : index
    %c0_28 = arith.constant 0 : index
    %21 = vector.load %arg6[%c0_27, %c0_28] : memref<72x64xf32, #tpu.memory_space<vmem>>, vector<72x64xf32>
    tpu.vector_store %arg6[%c0_27, %c0_28], %20 {strides = array<i32>} : memref<72x64xf32, #tpu.memory_space<vmem>>, vector<72x64xf32>,
    %c0_29 = arith.constant 0 : index
    %c0_30 = arith.constant 0 : index
    %22 = vector.load %arg6[%c0_29, %c0_30] : memref<72x64xf32, #tpu.memory_space<vmem>>, vector<72x64xf32>
    %c0_31 = arith.constant 0 : index
    %c0_32 = arith.constant 0 : index
    %c10 = arith.constant 10 : index
    %c0_33 = arith.constant 0 : index
    %23 = vector.load %arg2[%c0_31, %c0_32, %c10, %c0_33] : memref<1x1x88x12xbf16, #tpu.memory_space<vmem>>, vector<1x1x72x12xbf16>
    %24 = vector.shape_cast %23 : vector<1x1x72x12xbf16> to vector<72x12xbf16>
    %c3 = arith.constant 3 : index
    %c0_34 = arith.constant 0 : index
    %c0_35 = arith.constant 0 : index
    %25 = vector.load %arg3[%c3, %c0_34, %c0_35] : memref<4x12x64xbf16, #tpu.memory_space<vmem>>, vector<1x12x64xbf16>
    %26 = vector.shape_cast %25 : vector<1x12x64xbf16> to vector<12x64xbf16>
    %cst_36 = arith.constant dense<0.000000e+00> : vector<72x64xf32>
    %27 = tpu.matmul %24, %26, %cst_36 {dimension_numbers = #tpu.dot_dimension_numbers<[1], [0], [0], [1], [0, 0, 1, 1], [], []>} : vector<72x12xbf16>, vector<12x64xbf16>, vector<72x64xf32> -> vector<72x64xf32>
    %28 = arith.addf %22, %27 : vector<72x64xf32>
    %c0_37 = arith.constant 0 : index
    %c0_38 = arith.constant 0 : index
    %29 = vector.load %arg6[%c0_37, %c0_38] : memref<72x64xf32, #tpu.memory_space<vmem>>, vector<72x64xf32>
    tpu.vector_store %arg6[%c0_37, %c0_38], %28 {strides = array<i32>} : memref<72x64xf32, #tpu.memory_space<vmem>>, vector<72x64xf32>,
    %c0_39 = arith.constant 0 : index
    %c0_40 = arith.constant 0 : index
    %30 = vector.load %arg6[%c0_39, %c0_40] : memref<72x64xf32, #tpu.memory_space<vmem>>, vector<72x64xf32>
    %31 = vector.extract_strided_slice %30 {offsets = [0, 0], sizes = [72, 16], strides = [1, 1]} : vector<72x64xf32> to vector<72x16xf32>
    %32 = vector.extract_strided_slice %30 {offsets = [0, 16], sizes = [72, 16], strides = [1, 1]} : vector<72x64xf32> to vector<72x16xf32>
    %33 = arith.maximumf %31, %32 : vector<72x16xf32>
    %34 = vector.extract_strided_slice %30 {offsets = [0, 32], sizes = [72, 16], strides = [1, 1]} : vector<72x64xf32> to vector<72x16xf32>
    %35 = vector.extract_strided_slice %30 {offsets = [0, 48], sizes = [72, 16], strides = [1, 1]} : vector<72x64xf32> to vector<72x16xf32>
    %36 = arith.maximumf %34, %35 : vector<72x16xf32>
    %37 = arith.maximumf %33, %36 : vector<72x16xf32>
    %c0_41 = arith.constant 0 : index
    %c0_42 = arith.constant 0 : index
    %38 = vector.load %arg4[%c0_41, %c0_42] : memref<1x16xf32, #tpu.memory_space<vmem>>, vector<1x16xf32>
    %39 = vector.broadcast %38 : vector<1x16xf32> to vector<72x16xf32>
    %40 = arith.addf %37, %39 : vector<72x16xf32>
    %cst_43 = arith.constant 0.000000e+00 : f32
    %41 = vector.broadcast %cst_43 : f32 to vector<72x16xf32>
    %42 = arith.maximumf %40, %41 : vector<72x16xf32>
    %43 = vector.shape_cast %42 : vector<72x16xf32> to vector<8x9x16xf32>
    %44 = vector.extract_strided_slice %43 {offsets = [0, 0, 0], sizes = [8, 8, 16], strides = [1, 1, 1]} : vector<8x9x16xf32> to vector<8x8x16xf32>
    %45 = vector.shape_cast %44 : vector<8x8x16xf32> to vector<64x16xf32>
    %46 = arith.truncf %45 : vector<64x16xf32> to vector<64x16xbf16>
    %c0_44 = arith.constant 0 : index
    %c0_45 = arith.constant 0 : index
    %c0_46 = arith.constant 0 : index
    %c0_47 = arith.constant 0 : index
    %47 = vector.load %arg5[%c0_44, %c0_45, %c0_46, %c0_47] : memref<1x1x64x16xbf16, #tpu.memory_space<vmem>>, vector<1x1x64x16xbf16>
    %48 = vector.shape_cast %47 : vector<1x1x64x16xbf16> to vector<64x16xbf16>
    %49 = vector.shape_cast %46 : vector<64x16xbf16> to vector<1x1x64x16xbf16>
    tpu.vector_store %arg5[%c0_44, %c0_45, %c0_46, %c0_47], %49 {strides = array<i32>} : memref<1x1x64x16xbf16, #tpu.memory_space<vmem>>, vector<1x1x64x16xbf16>,
    return
  }
  func.func @transform_0(%arg0: i32, %arg1: i32) -> (i32, i32, i32, i32) {
    %c0_i32 = arith.constant 0 : i32
    %c0_i32_0 = arith.constant 0 : i32
    %c0_i32_1 = arith.constant 0 : i32
    return %arg0, %arg1, %c0_i32, %c0_i32_0 : i32, i32, i32, i32
  }
  func.func @transform_1(%arg0: i32, %arg1: i32) -> (i32, i32, i32) {
    %c0_i32 = arith.constant 0 : i32
    %c0_i32_0 = arith.constant 0 : i32
    %c0_i32_1 = arith.constant 0 : i32
    %c0_i32_2 = arith.constant 0 : i32
    return %c0_i32, %c0_i32_0, %c0_i32_1 : i32, i32, i32
  }
  func.func @transform_2(%arg0: i32, %arg1: i32) -> (i32, i32) {
    %c0_i32 = arith.constant 0 : i32
    %c0_i32_0 = arith.constant 0 : i32
    %c0_i32_1 = arith.constant 0 : i32
    return %c0_i32, %c0_i32_0 : i32, i32
  }
  func.func @transform_3(%arg0: i32, %arg1: i32) -> (i32, i32, i32, i32) {
    %c0_i32 = arith.constant 0 : i32
    %c0_i32_0 = arith.constant 0 : i32
    %c0_i32_1 = arith.constant 0 : i32
    return %arg0, %arg1, %c0_i32, %c0_i32_0 : i32, i32, i32, i32
  }
}

module attributes {stable_mosaic.version = 11 : i64} {
  func.func @_conv_relu_pool_kernel(%arg0: i32, %arg1: i32, %arg2: memref<1x1x32x64xbf16, #tpu.memory_space<vmem>>, %arg3: memref<4x64x128xbf16, #tpu.memory_space<vmem>>, %arg4: memref<1x32xf32, #tpu.memory_space<vmem>>, %arg5: memref<1x1x16x32xbf16, #tpu.memory_space<vmem>>, %arg6: memref<20x128xf32, #tpu.memory_space<vmem>>) attributes {dimension_semantics = [#tpu.dimension_semantics<parallel>, #tpu.dimension_semantics<parallel>], iteration_bounds = array<i64: 2, 1>, scalar_prefetch = 0 : i64, scratch_operands = 1 : i64, tpu.core_type = #tpu.core_type<tc>, window_params = [{transform_indices = @transform_0, window_bounds = array<i64: 1, 1, 32, 64>}, {pipeline_mode = #tpu.pipeline_mode<synchronous>, transform_indices = @transform_1, window_bounds = array<i64: 4, 64, 128>}, {pipeline_mode = #tpu.pipeline_mode<synchronous>, transform_indices = @transform_2, window_bounds = array<i64: 1, 32>}, {transform_indices = @transform_3, window_bounds = array<i64: 1, 1, 16, 32>}]} {
    %c0 = arith.constant 0 : index
    %c0_0 = arith.constant 0 : index
    %c0_1 = arith.constant 0 : index
    %c0_2 = arith.constant 0 : index
    %0 = vector.load %arg2[%c0, %c0_0, %c0_1, %c0_2] : memref<1x1x32x64xbf16, #tpu.memory_space<vmem>>, vector<1x1x20x64xbf16>
    %1 = vector.shape_cast %0 : vector<1x1x20x64xbf16> to vector<20x64xbf16>
    %c0_3 = arith.constant 0 : index
    %c0_4 = arith.constant 0 : index
    %c0_5 = arith.constant 0 : index
    %2 = vector.load %arg3[%c0_3, %c0_4, %c0_5] : memref<4x64x128xbf16, #tpu.memory_space<vmem>>, vector<1x64x128xbf16>
    %3 = vector.shape_cast %2 : vector<1x64x128xbf16> to vector<64x128xbf16>
    %cst = arith.constant dense<0.000000e+00> : vector<20x128xf32>
    %4 = tpu.matmul %1, %3, %cst {dimension_numbers = #tpu.dot_dimension_numbers<[1], [0], [0], [1], [0, 0, 1, 1], [], []>} : vector<20x64xbf16>, vector<64x128xbf16>, vector<20x128xf32> -> vector<20x128xf32>
    %c0_6 = arith.constant 0 : index
    %c0_7 = arith.constant 0 : index
    %5 = vector.load %arg6[%c0_6, %c0_7] : memref<20x128xf32, #tpu.memory_space<vmem>>, vector<20x128xf32>
    tpu.vector_store %arg6[%c0_6, %c0_7], %4 {strides = array<i32>} : memref<20x128xf32, #tpu.memory_space<vmem>>, vector<20x128xf32>,
    %c0_8 = arith.constant 0 : index
    %c0_9 = arith.constant 0 : index
    %6 = vector.load %arg6[%c0_8, %c0_9] : memref<20x128xf32, #tpu.memory_space<vmem>>, vector<20x128xf32>
    %c0_10 = arith.constant 0 : index
    %c0_11 = arith.constant 0 : index
    %c1 = arith.constant 1 : index
    %c0_12 = arith.constant 0 : index
    %7 = vector.load %arg2[%c0_10, %c0_11, %c1, %c0_12] : memref<1x1x32x64xbf16, #tpu.memory_space<vmem>>, vector<1x1x20x64xbf16>
    %8 = vector.shape_cast %7 : vector<1x1x20x64xbf16> to vector<20x64xbf16>
    %c1_13 = arith.constant 1 : index
    %c0_14 = arith.constant 0 : index
    %c0_15 = arith.constant 0 : index
    %9 = vector.load %arg3[%c1_13, %c0_14, %c0_15] : memref<4x64x128xbf16, #tpu.memory_space<vmem>>, vector<1x64x128xbf16>
    %10 = vector.shape_cast %9 : vector<1x64x128xbf16> to vector<64x128xbf16>
    %cst_16 = arith.constant dense<0.000000e+00> : vector<20x128xf32>
    %11 = tpu.matmul %8, %10, %cst_16 {dimension_numbers = #tpu.dot_dimension_numbers<[1], [0], [0], [1], [0, 0, 1, 1], [], []>} : vector<20x64xbf16>, vector<64x128xbf16>, vector<20x128xf32> -> vector<20x128xf32>
    %12 = arith.addf %6, %11 : vector<20x128xf32>
    %c0_17 = arith.constant 0 : index
    %c0_18 = arith.constant 0 : index
    %13 = vector.load %arg6[%c0_17, %c0_18] : memref<20x128xf32, #tpu.memory_space<vmem>>, vector<20x128xf32>
    tpu.vector_store %arg6[%c0_17, %c0_18], %12 {strides = array<i32>} : memref<20x128xf32, #tpu.memory_space<vmem>>, vector<20x128xf32>,
    %c0_19 = arith.constant 0 : index
    %c0_20 = arith.constant 0 : index
    %14 = vector.load %arg6[%c0_19, %c0_20] : memref<20x128xf32, #tpu.memory_space<vmem>>, vector<20x128xf32>
    %c0_21 = arith.constant 0 : index
    %c0_22 = arith.constant 0 : index
    %c5 = arith.constant 5 : index
    %c0_23 = arith.constant 0 : index
    %15 = vector.load %arg2[%c0_21, %c0_22, %c5, %c0_23] : memref<1x1x32x64xbf16, #tpu.memory_space<vmem>>, vector<1x1x20x64xbf16>
    %16 = vector.shape_cast %15 : vector<1x1x20x64xbf16> to vector<20x64xbf16>
    %c2 = arith.constant 2 : index
    %c0_24 = arith.constant 0 : index
    %c0_25 = arith.constant 0 : index
    %17 = vector.load %arg3[%c2, %c0_24, %c0_25] : memref<4x64x128xbf16, #tpu.memory_space<vmem>>, vector<1x64x128xbf16>
    %18 = vector.shape_cast %17 : vector<1x64x128xbf16> to vector<64x128xbf16>
    %cst_26 = arith.constant dense<0.000000e+00> : vector<20x128xf32>
    %19 = tpu.matmul %16, %18, %cst_26 {dimension_numbers = #tpu.dot_dimension_numbers<[1], [0], [0], [1], [0, 0, 1, 1], [], []>} : vector<20x64xbf16>, vector<64x128xbf16>, vector<20x128xf32> -> vector<20x128xf32>
    %20 = arith.addf %14, %19 : vector<20x128xf32>
    %c0_27 = arith.constant 0 : index
    %c0_28 = arith.constant 0 : index
    %21 = vector.load %arg6[%c0_27, %c0_28] : memref<20x128xf32, #tpu.memory_space<vmem>>, vector<20x128xf32>
    tpu.vector_store %arg6[%c0_27, %c0_28], %20 {strides = array<i32>} : memref<20x128xf32, #tpu.memory_space<vmem>>, vector<20x128xf32>,
    %c0_29 = arith.constant 0 : index
    %c0_30 = arith.constant 0 : index
    %22 = vector.load %arg6[%c0_29, %c0_30] : memref<20x128xf32, #tpu.memory_space<vmem>>, vector<20x128xf32>
    %c0_31 = arith.constant 0 : index
    %c0_32 = arith.constant 0 : index
    %c6 = arith.constant 6 : index
    %c0_33 = arith.constant 0 : index
    %23 = vector.load %arg2[%c0_31, %c0_32, %c6, %c0_33] : memref<1x1x32x64xbf16, #tpu.memory_space<vmem>>, vector<1x1x20x64xbf16>
    %24 = vector.shape_cast %23 : vector<1x1x20x64xbf16> to vector<20x64xbf16>
    %c3 = arith.constant 3 : index
    %c0_34 = arith.constant 0 : index
    %c0_35 = arith.constant 0 : index
    %25 = vector.load %arg3[%c3, %c0_34, %c0_35] : memref<4x64x128xbf16, #tpu.memory_space<vmem>>, vector<1x64x128xbf16>
    %26 = vector.shape_cast %25 : vector<1x64x128xbf16> to vector<64x128xbf16>
    %cst_36 = arith.constant dense<0.000000e+00> : vector<20x128xf32>
    %27 = tpu.matmul %24, %26, %cst_36 {dimension_numbers = #tpu.dot_dimension_numbers<[1], [0], [0], [1], [0, 0, 1, 1], [], []>} : vector<20x64xbf16>, vector<64x128xbf16>, vector<20x128xf32> -> vector<20x128xf32>
    %28 = arith.addf %22, %27 : vector<20x128xf32>
    %c0_37 = arith.constant 0 : index
    %c0_38 = arith.constant 0 : index
    %29 = vector.load %arg6[%c0_37, %c0_38] : memref<20x128xf32, #tpu.memory_space<vmem>>, vector<20x128xf32>
    tpu.vector_store %arg6[%c0_37, %c0_38], %28 {strides = array<i32>} : memref<20x128xf32, #tpu.memory_space<vmem>>, vector<20x128xf32>,
    %c0_39 = arith.constant 0 : index
    %c0_40 = arith.constant 0 : index
    %30 = vector.load %arg6[%c0_39, %c0_40] : memref<20x128xf32, #tpu.memory_space<vmem>>, vector<20x128xf32>
    %31 = vector.extract_strided_slice %30 {offsets = [0, 0], sizes = [20, 32], strides = [1, 1]} : vector<20x128xf32> to vector<20x32xf32>
    %32 = vector.extract_strided_slice %30 {offsets = [0, 32], sizes = [20, 32], strides = [1, 1]} : vector<20x128xf32> to vector<20x32xf32>
    %33 = arith.maximumf %31, %32 : vector<20x32xf32>
    %34 = vector.extract_strided_slice %30 {offsets = [0, 64], sizes = [20, 32], strides = [1, 1]} : vector<20x128xf32> to vector<20x32xf32>
    %35 = vector.extract_strided_slice %30 {offsets = [0, 96], sizes = [20, 32], strides = [1, 1]} : vector<20x128xf32> to vector<20x32xf32>
    %36 = arith.maximumf %34, %35 : vector<20x32xf32>
    %37 = arith.maximumf %33, %36 : vector<20x32xf32>
    %c0_41 = arith.constant 0 : index
    %c0_42 = arith.constant 0 : index
    %38 = vector.load %arg4[%c0_41, %c0_42] : memref<1x32xf32, #tpu.memory_space<vmem>>, vector<1x32xf32>
    %39 = vector.broadcast %38 : vector<1x32xf32> to vector<20x32xf32>
    %40 = arith.addf %37, %39 : vector<20x32xf32>
    %cst_43 = arith.constant 0.000000e+00 : f32
    %41 = vector.broadcast %cst_43 : f32 to vector<20x32xf32>
    %42 = arith.maximumf %40, %41 : vector<20x32xf32>
    %43 = vector.shape_cast %42 : vector<20x32xf32> to vector<4x5x32xf32>
    %44 = vector.extract_strided_slice %43 {offsets = [0, 0, 0], sizes = [4, 4, 32], strides = [1, 1, 1]} : vector<4x5x32xf32> to vector<4x4x32xf32>
    %45 = vector.shape_cast %44 : vector<4x4x32xf32> to vector<16x32xf32>
    %46 = arith.truncf %45 : vector<16x32xf32> to vector<16x32xbf16>
    %c0_44 = arith.constant 0 : index
    %c0_45 = arith.constant 0 : index
    %c0_46 = arith.constant 0 : index
    %c0_47 = arith.constant 0 : index
    %47 = vector.load %arg5[%c0_44, %c0_45, %c0_46, %c0_47] : memref<1x1x16x32xbf16, #tpu.memory_space<vmem>>, vector<1x1x16x32xbf16>
    %48 = vector.shape_cast %47 : vector<1x1x16x32xbf16> to vector<16x32xbf16>
    %49 = vector.shape_cast %46 : vector<16x32xbf16> to vector<1x1x16x32xbf16>
    tpu.vector_store %arg5[%c0_44, %c0_45, %c0_46, %c0_47], %49 {strides = array<i32>} : memref<1x1x16x32xbf16, #tpu.memory_space<vmem>>, vector<1x1x16x32xbf16>,
    return
  }
  func.func @transform_0(%arg0: i32, %arg1: i32) -> (i32, i32, i32, i32) {
    %c0_i32 = arith.constant 0 : i32
    %c0_i32_0 = arith.constant 0 : i32
    %c0_i32_1 = arith.constant 0 : i32
    return %arg0, %arg1, %c0_i32, %c0_i32_0 : i32, i32, i32, i32
  }
  func.func @transform_1(%arg0: i32, %arg1: i32) -> (i32, i32, i32) {
    %c0_i32 = arith.constant 0 : i32
    %c0_i32_0 = arith.constant 0 : i32
    %c0_i32_1 = arith.constant 0 : i32
    %c0_i32_2 = arith.constant 0 : i32
    return %c0_i32, %c0_i32_0, %c0_i32_1 : i32, i32, i32
  }
  func.func @transform_2(%arg0: i32, %arg1: i32) -> (i32, i32) {
    %c0_i32 = arith.constant 0 : i32
    %c0_i32_0 = arith.constant 0 : i32
    %c0_i32_1 = arith.constant 0 : i32
    return %c0_i32, %c0_i32_0 : i32, i32
  }
  func.func @transform_3(%arg0: i32, %arg1: i32) -> (i32, i32, i32, i32) {
    %c0_i32 = arith.constant 0 : i32
    %c0_i32_0 = arith.constant 0 : i32
    %c0_i32_1 = arith.constant 0 : i32
    return %arg0, %arg1, %c0_i32, %c0_i32_0 : i32, i32, i32, i32
  }
}

module attributes {stable_mosaic.version = 11 : i64} {
  func.func @_fc_head_kernel(%arg0: i32, %arg1: memref<2x512xbf16, #tpu.memory_space<vmem>>, %arg2: memref<512x64xbf16, #tpu.memory_space<vmem>>, %arg3: memref<1x64xf32, #tpu.memory_space<vmem>>, %arg4: memref<64x1xbf16, #tpu.memory_space<vmem>>, %arg5: memref<1x1xf32, #tpu.memory_space<vmem>>, %arg6: memref<2x1xf32, #tpu.memory_space<vmem>>, %arg7: memref<2x64xf32, #tpu.memory_space<vmem>>) attributes {dimension_semantics = [#tpu.dimension_semantics<arbitrary>], iteration_bounds = array<i64: 1>, scalar_prefetch = 0 : i64, scratch_operands = 1 : i64, tpu.core_type = #tpu.core_type<tc>, window_params = [{transform_indices = @transform_0, window_bounds = array<i64: 2, 512>}, {transform_indices = @transform_1, window_bounds = array<i64: 512, 64>}, {pipeline_mode = #tpu.pipeline_mode<synchronous>, transform_indices = @transform_2, window_bounds = array<i64: 1, 64>}, {pipeline_mode = #tpu.pipeline_mode<synchronous>, transform_indices = @transform_3, window_bounds = array<i64: 64, 1>}, {pipeline_mode = #tpu.pipeline_mode<synchronous>, transform_indices = @transform_4, window_bounds = array<i64: 1, 1>}, {pipeline_mode = #tpu.pipeline_mode<synchronous>, transform_indices = @transform_5, window_bounds = array<i64: 2, 1>}]} {
    %c0_i32 = arith.constant 0 : i32
    %0 = arith.cmpi eq, %arg0, %c0_i32 : i32
    %1 = arith.extui %0 : i1 to i32
    %c0_i32_0 = arith.constant 0 : i32
    %2 = arith.cmpi ne, %1, %c0_i32_0 : i32
    scf.if %2 {
      %cst_10 = arith.constant 0.000000e+00 : f32
      %12 = vector.broadcast %cst_10 : f32 to vector<2x64xf32>
      %c0_11 = arith.constant 0 : index
      %c0_12 = arith.constant 0 : index
      %13 = vector.load %arg7[%c0_11, %c0_12] : memref<2x64xf32, #tpu.memory_space<vmem>>, vector<2x64xf32>
      tpu.vector_store %arg7[%c0_11, %c0_12], %12 {strides = array<i32>} : memref<2x64xf32, #tpu.memory_space<vmem>>, vector<2x64xf32>,
    } else {
    }
    %c0 = arith.constant 0 : index
    %c0_1 = arith.constant 0 : index
    %3 = vector.load %arg7[%c0, %c0_1] : memref<2x64xf32, #tpu.memory_space<vmem>>, vector<2x64xf32>
    %c0_2 = arith.constant 0 : index
    %c0_3 = arith.constant 0 : index
    %4 = vector.load %arg1[%c0_2, %c0_3] : memref<2x512xbf16, #tpu.memory_space<vmem>>, vector<2x512xbf16>
    %c0_4 = arith.constant 0 : index
    %c0_5 = arith.constant 0 : index
    %5 = vector.load %arg2[%c0_4, %c0_5] : memref<512x64xbf16, #tpu.memory_space<vmem>>, vector<512x64xbf16>
    %cst = arith.constant dense<0.000000e+00> : vector<2x64xf32>
    %6 = tpu.matmul %4, %5, %cst {dimension_numbers = #tpu.dot_dimension_numbers<[1], [0], [0], [1], [0, 0, 1, 1], [], []>} : vector<2x512xbf16>, vector<512x64xbf16>, vector<2x64xf32> -> vector<2x64xf32>
    %7 = arith.addf %3, %6 : vector<2x64xf32>
    %c0_6 = arith.constant 0 : index
    %c0_7 = arith.constant 0 : index
    %8 = vector.load %arg7[%c0_6, %c0_7] : memref<2x64xf32, #tpu.memory_space<vmem>>, vector<2x64xf32>
    tpu.vector_store %arg7[%c0_6, %c0_7], %7 {strides = array<i32>} : memref<2x64xf32, #tpu.memory_space<vmem>>, vector<2x64xf32>,
    %c0_i32_8 = arith.constant 0 : i32
    %9 = arith.cmpi eq, %arg0, %c0_i32_8 : i32
    %10 = arith.extui %9 : i1 to i32
    %c0_i32_9 = arith.constant 0 : i32
    %11 = arith.cmpi ne, %10, %c0_i32_9 : i32
    scf.if %11 {
      %c0_10 = arith.constant 0 : index
      %c0_11 = arith.constant 0 : index
      %12 = vector.load %arg7[%c0_10, %c0_11] : memref<2x64xf32, #tpu.memory_space<vmem>>, vector<2x64xf32>
      %c0_12 = arith.constant 0 : index
      %c0_13 = arith.constant 0 : index
      %13 = vector.load %arg3[%c0_12, %c0_13] : memref<1x64xf32, #tpu.memory_space<vmem>>, vector<1x64xf32>
      %14 = vector.broadcast %13 : vector<1x64xf32> to vector<2x64xf32>
      %15 = arith.addf %12, %14 : vector<2x64xf32>
      %cst_14 = arith.constant 0.000000e+00 : f32
      %16 = vector.broadcast %cst_14 : f32 to vector<2x64xf32>
      %17 = arith.maximumf %15, %16 : vector<2x64xf32>
      %18 = arith.truncf %17 : vector<2x64xf32> to vector<2x64xbf16>
      %c0_15 = arith.constant 0 : index
      %c0_16 = arith.constant 0 : index
      %19 = vector.load %arg4[%c0_15, %c0_16] : memref<64x1xbf16, #tpu.memory_space<vmem>>, vector<64x1xbf16>
      %cst_17 = arith.constant dense<0.000000e+00> : vector<2x1xf32>
      %20 = tpu.matmul %18, %19, %cst_17 {dimension_numbers = #tpu.dot_dimension_numbers<[1], [0], [0], [1], [0, 0, 1, 1], [], []>} : vector<2x64xbf16>, vector<64x1xbf16>, vector<2x1xf32> -> vector<2x1xf32>
      %c0_18 = arith.constant 0 : index
      %c0_19 = arith.constant 0 : index
      %21 = vector.load %arg5[%c0_18, %c0_19] : memref<1x1xf32, #tpu.memory_space<vmem>>, vector<1x1xf32>
      %22 = vector.broadcast %21 : vector<1x1xf32> to vector<2x1xf32>
      %23 = arith.addf %20, %22 : vector<2x1xf32>
      %24 = arith.negf %23 : vector<2x1xf32>
      %25 = math.exp %24 : vector<2x1xf32>
      %cst_20 = arith.constant 1.000000e+00 : f32
      %26 = vector.broadcast %cst_20 : f32 to vector<2x1xf32>
      %27 = arith.addf %26, %25 : vector<2x1xf32>
      %28 = arith.divf %26, %27 : vector<2x1xf32>
      %c0_21 = arith.constant 0 : index
      %c0_22 = arith.constant 0 : index
      %29 = vector.load %arg6[%c0_21, %c0_22] : memref<2x1xf32, #tpu.memory_space<vmem>>, vector<2x1xf32>
      tpu.vector_store %arg6[%c0_21, %c0_22], %28 {strides = array<i32>} : memref<2x1xf32, #tpu.memory_space<vmem>>, vector<2x1xf32>,
    } else {
    }
    return
  }
  func.func @transform_0(%arg0: i32) -> (i32, i32) {
    %c0_i32 = arith.constant 0 : i32
    %c0_i32_0 = arith.constant 0 : i32
    return %c0_i32, %arg0 : i32, i32
  }
  func.func @transform_1(%arg0: i32) -> (i32, i32) {
    %c0_i32 = arith.constant 0 : i32
    %c0_i32_0 = arith.constant 0 : i32
    return %arg0, %c0_i32 : i32, i32
  }
  func.func @transform_2(%arg0: i32) -> (i32, i32) {
    %c0_i32 = arith.constant 0 : i32
    %c0_i32_0 = arith.constant 0 : i32
    %c0_i32_1 = arith.constant 0 : i32
    return %c0_i32, %c0_i32_0 : i32, i32
  }
  func.func @transform_3(%arg0: i32) -> (i32, i32) {
    %c0_i32 = arith.constant 0 : i32
    %c0_i32_0 = arith.constant 0 : i32
    %c0_i32_1 = arith.constant 0 : i32
    return %c0_i32, %c0_i32_0 : i32, i32
  }
  func.func @transform_4(%arg0: i32) -> (i32, i32) {
    %c0_i32 = arith.constant 0 : i32
    %c0_i32_0 = arith.constant 0 : i32
    %c0_i32_1 = arith.constant 0 : i32
    return %c0_i32, %c0_i32_0 : i32, i32
  }
  func.func @transform_5(%arg0: i32) -> (i32, i32) {
    %c0_i32 = arith.constant 0 : i32
    %c0_i32_0 = arith.constant 0 : i32
    %c0_i32_1 = arith.constant 0 : i32
    return %c0_i32, %c0_i32_0 : i32, i32
  }
}

</mosaic_0001>

<llo_original>
// kernel: simple_cnn_forward.3
$region0: #{simple_cnn_forward.3}
  #allocation0 [shape = 'u32[]', space=smem, size = 0x4, offset = 0x4, fixed_abs, tag = 'smem constant byte address 0x4 - core index']
  #allocation1 [shape = 'u32[144,128]{1,0:T(1,128)}', space=vmem, size = 0x12000, scoped, tag = 'internal scratch']
  #allocation2 [shape = 'f32[72,64]{1,0:T(8,128)}', space=vmem, size = 0x9000, scoped, tag = 'scratch operand']
  %s0 = inlined_call_operand.vmem [shape: bf16[2,1,88,12], index: 0, kind: input, shape index: {}]
  %s1 = inlined_call_operand.vmem [shape: bf16[4,12,64], index: 1, kind: input, shape index: {}]
  %s2 = inlined_call_operand.vmem [shape: f32[1,16], index: 2, kind: input, shape index: {}]
  %s3 = inlined_call_operand.vmem [shape: bf16[2,1,64,16], index: 3, kind: output, shape index: {}]
  %s4 = sld [smem:[#allocation0]]
  $region45: #{simple_cnn_forward.3} parent=0
    _
  %s6 = ssub.s32 1, %s4
  %s7 = scalar_select 0, %s6, %s4
  loop: start=0, step=1, limit=4
  $region2: #{simple_cnn_forward.3} parent=0 // loop_pre_header
    _
  $region3: #{simple_cnn_forward.3} parent=0 // loop_header
    %s9 = sphi 0, %s13
    %p10 = scmp.ge.s32.totalorder %s9, 4
    %s16 = sphi 0, %s28
    %s17 = sphi 0, %s24
    %s18 = sphi 0, %s16
    %s19 = sphi 0, %s17
    %s20 = sphi 0, %s18
    %s21 = sphi 0, %s19
    %s33 = sphi 0, %s35
    %s36 = sphi 0, %s33
    %s37 = sphi 0, %s36
    %s53 = sphi 0, %s37
    %s57 = sphi 0, %s57
    %s59 = sphi 0, %s57
    %s60 = sphi 0, %s59
    %s74 = sphi 0, %s60
    %s78 = sphi 0, %s78
    %s80 = sphi 0, %s78
    %s81 = sphi 0, %s80
    %s95 = sphi 0, %s81
    %s103 = sphi 0, %s105
    %s106 = sphi 0, %s103
    %s107 = sphi 0, %s106
    %s123 = sphi 0, %s107
  $region4: #{simple_cnn_forward.3} parent=0 // loop_header_branch
    %12 = sbr.rel (%p10) target = $region8
  $region5: #{simple_cnn_forward.3} parent=0 // loop_body
    %s14 = ssub.s32 %s9, 1
    %s15 = ssub.s32 %s9, 2
    %s22 = sadd.s32 1, %s17
    %p23 = scmp.ge.s32.totalorder %s22, 1
    %s24 = scalar_select %p23, 0, %s22
    %s25 = sadd.s32 1, %s16
    %s26 = scalar_select %p23, %s25, %s16
    %p27 = scmp.ge.s32.totalorder %s26, 2
    %s28 = scalar_select %p27, 0, %s26
    %s29 = ssub.s32 %s16, %s28
    %s30 = ssub.s32 %s17, %s24
    %s31 = sor.u32 %s29, %s30
    %p32 = scmp.eq.s32.totalorder %s31, 0
    %s34 = sadd.s32 %s33, 1
    %s35 = scalar_select %p32, %s33, %s34
    %p38 = pneg %p32
    %p39 = scmp.eq.s32.totalorder %s9, 1
    %p40 = por %p38, %p39
    %p41 = scmp.ne.s32.totalorder %s33, %s36
    %p42 = scmp.eq.s32.totalorder %s9, 0
    %p43 = por %p41, %p42
    %p44 = scmp.ne.s32.totalorder %s33, %s36
    %p45 = scmp.eq.s32.totalorder %s14, 1
    %p46 = por %p44, %p45
    %p47 = scmp.ne.s32.totalorder %s36, %s37
    %p48 = scmp.eq.s32.totalorder %s14, 0
    %p49 = por %p47, %p48
    %p50 = scmp.ne.s32.totalorder %s36, %s37
    %p51 = scmp.eq.s32.totalorder %s15, 1
    %p52 = por %p50, %p51
    %p54 = scmp.ne.s32.totalorder %s37, %s53
    %p55 = scmp.eq.s32.totalorder %s15, 0
    %p56 = por %p54, %p55
    %s58 = sadd.s32 %s57, 1
    %p61 = scmp.eq.s32.totalorder %s9, 1
    %p62 = scmp.ne.s32.totalorder %s57, %s59
    %p63 = scmp.eq.s32.totalorder %s9, 0
    %p64 = por %p62, %p63
    %p65 = scmp.ne.s32.totalorder %s57, %s59
    %p66 = scmp.eq.s32.totalorder %s14, 1
    %p67 = por %p65, %p66
    %p68 = scmp.ne.s32.totalorder %s59, %s60
    %p69 = scmp.eq.s32.totalorder %s14, 0
    %p70 = por %p68, %p69
    %p71 = scmp.ne.s32.totalorder %s59, %s60
    %p72 = scmp.eq.s32.totalorder %s15, 1
    %p73 = por %p71, %p72
    %p75 = scmp.ne.s32.totalorder %s60, %s74
    %p76 = scmp.eq.s32.totalorder %s15, 0
    %p77 = por %p75, %p76
    %s79 = sadd.s32 %s78, 1
    %p82 = scmp.eq.s32.totalorder %s9, 1
    %p83 = scmp.ne.s32.totalorder %s78, %s80
    %p84 = scmp.eq.s32.totalorder %s9, 0
    %p85 = por %p83, %p84
    %p86 = scmp.ne.s32.totalorder %s78, %s80
    %p87 = scmp.eq.s32.totalorder %s14, 1
    %p88 = por %p86, %p87
    %p89 = scmp.ne.s32.totalorder %s80, %s81
    %p90 = scmp.eq.s32.totalorder %s14, 0
    %p91 = por %p89, %p90
    %p92 = scmp.ne.s32.totalorder %s80, %s81
    %p93 = scmp.eq.s32.totalorder %s15, 1
    %p94 = por %p92, %p93
    %p96 = scmp.ne.s32.totalorder %s81, %s95
    %p97 = scmp.eq.s32.totalorder %s15, 0
    %p98 = por %p96, %p97
    %s99 = ssub.s32 %s16, %s28
    %s100 = ssub.s32 %s17, %s24
    %s101 = sor.u32 %s99, %s100
    %p102 = scmp.eq.s32.totalorder %s101, 0
    %s104 = sadd.s32 %s103, 1
    %s105 = scalar_select %p102, %s103, %s104
    %p108 = pneg %p102
    %p109 = scmp.eq.s32.totalorder %s9, 1
    %p110 = por %p108, %p109
    %p111 = scmp.ne.s32.totalorder %s103, %s106
    %p112 = scmp.eq.s32.totalorder %s9, 0
    %p113 = por %p111, %p112
    %p114 = scmp.ne.s32.totalorder %s103, %s106
    %p115 = scmp.eq.s32.totalorder %s14, 1
    %p116 = por %p114, %p115
    %p117 = scmp.ne.s32.totalorder %s106, %s107
    %p118 = scmp.eq.s32.totalorder %s14, 0
    %p119 = por %p117, %p118
    %p120 = scmp.ne.s32.totalorder %s106, %s107
    %p121 = scmp.eq.s32.totalorder %s15, 1
    %p122 = por %p120, %p121
    %p124 = scmp.ne.s32.totalorder %s107, %s123
    %p125 = scmp.eq.s32.totalorder %s15, 0
    %p126 = por %p124, %p125
    %p127 = scmp.le.s32.totalorder 1, %s9
    %p128 = scmp.lt.s32.totalorder %s9, 3
    %p129 = pnand %p127, %p128
    %p130 = pneg %p129
    // Predicated region
    $region9: #{simple_cnn_forward.3} parent=5 // pred_check
      _
    $region10: #{simple_cnn_forward.3} parent=5 // pred_check_branch
      %132 = sbr.rel (%p129) target = $region12
    $region11: #{simple_cnn_forward.3} parent=5 // pred_region
      %s133 = ssub.s32 %s9, 1
      // Predicated region
      $region13: #{simple_cnn_forward.3} parent=11 // pred_check
        %p134 = pneg %p70
      $region14: #{simple_cnn_forward.3} parent=11 // pred_check_branch
        %136 = sbr.rel (%p134) target = $region16
      $region15: #{simple_cnn_forward.3} parent=11 // pred_region
        _
      $region16: #{simple_cnn_forward.3} parent=11 // pred_fallthru
        _
      // Predicated region
      $region17: #{simple_cnn_forward.3} parent=11 // pred_check
        %p137 = pneg %p91
      $region18: #{simple_cnn_forward.3} parent=11 // pred_check_branch
        %139 = sbr.rel (%p137) target = $region20
      $region19: #{simple_cnn_forward.3} parent=11 // pred_region
        _
      $region20: #{simple_cnn_forward.3} parent=11 // pred_fallthru
        _
    $region12: #{simple_cnn_forward.3} parent=5 // pred_fallthru
      _
    %p140 = scmp.lt.s32.totalorder %s9, 2
    // Predicated region
    $region21: #{simple_cnn_forward.3} parent=5 // pred_check
      %p141 = pneg %p140
    $region22: #{simple_cnn_forward.3} parent=5 // pred_check_branch
      %143 = sbr.rel (%p141) target = $region24
    $region23: #{simple_cnn_forward.3} parent=5 // pred_region
      // Predicated region
      $region25: #{simple_cnn_forward.3} parent=23 // pred_check
        %p144 = pneg %p43
      $region26: #{simple_cnn_forward.3} parent=23 // pred_check_branch
        %146 = sbr.rel (%p144) target = $region28
      $region27: #{simple_cnn_forward.3} parent=23 // pred_region
        %p147 = scmp.lt.s32.totalorder %s16, 1
        %s148 = scalar_select %p147, %s16, 1
        %p149 = scmp.lt.s32.totalorder %s17, 0
        %s150 = scalar_select %p149, %s17, 0
        %s151 = smul.addr %s150, 11
        %s152 = smul.addr %s148, 11
        %s153 = sadd.s32 %s151, %s152
        %s154 = smul.addr %s153, 4
        %s155 = scalar_lea.vmem %s0, %s154
      $region28: #{simple_cnn_forward.3} parent=23 // pred_fallthru
        _
    $region24: #{simple_cnn_forward.3} parent=5 // pred_fallthru
      _
    %p156 = scmp.le.s32.totalorder 1, %s9
    %p157 = scmp.lt.s32.totalorder %s9, 3
    %p158 = pnand %p156, %p157
    %p159 = pneg %p158
    // Predicated region
    $region29: #{simple_cnn_forward.3} parent=5 // pred_check
      _
    $region30: #{simple_cnn_forward.3} parent=5 // pred_check_branch
      %161 = sbr.rel (%p158) target = $region32
    $region31: #{simple_cnn_forward.3} parent=5 // pred_region
      %s162 = ssub.s32 %s9, 1
      %p163 = scmp.lt.s32.totalorder %s18, 1
      %s164 = scalar_select %p163, %s18, 1
      %p165 = scmp.lt.s32.totalorder %s19, 0
      %s166 = scalar_select %p165, %s19, 0
      %s167 = smul.addr %s166, 11
      %s168 = smul.addr %s164, 11
      %s169 = sadd.s32 %s167, %s168
      %s170 = smul.addr %s169, 4
      %s171 = scalar_lea.vmem %s0, %s170
      %p172 = pneg %p49
      %p173 = pneg %p46
      %p174 = pneg %p70
      %p175 = pneg %p67
      %p176 = pneg %p91
      %p177 = pneg %p88
      %p178 = pneg %p119
      %p179 = pneg %p116
      %p180 = scmp.lt.s32.totalorder %s18, 1
      %s181 = scalar_select %p180, %s18, 1
      %p182 = scmp.lt.s32.totalorder %s19, 0
      %s183 = scalar_select %p182, %s19, 0
      %s184 = smul.addr %s183, 8
      %s185 = smul.addr %s181, 8
      %s186 = sadd.s32 %s184, %s185
      %s187 = smul.addr %s186, 4
      %s188 = scalar_lea.vmem %s3, %s187
      %p189 = scmp.lt.s32.totalorder %s18, 1
      %s190 = scalar_select %p189, %s18, 1
      %p191 = scmp.lt.s32.totalorder %s19, 0
      %s192 = scalar_select %p191, %s19, 0
      %s193 = smul.addr %s192, 11
      %s194 = smul.addr %s190, 11
      %s195 = sadd.s32 %s193, %s194
      %s196 = smul.addr %s195, 4
      %s197 = scalar_lea.vmem %s0, %s196
      %p198 = scmp.lt.s32.totalorder %s18, 1
      %s199 = scalar_select %p198, %s18, 1
      %p200 = scmp.lt.s32.totalorder %s19, 0
      %s201 = scalar_select %p200, %s19, 0
      %s202 = smul.addr %s201, 8
      %s203 = smul.addr %s199, 8
      %s204 = sadd.s32 %s202, %s203
      %s205 = smul.addr %s204, 4
      %s206 = scalar_lea.vmem %s3, %s205
      %v208 = vld [vmem:[%s197] sm:$0xf]
      %v209 = vld [vmem:[%s197 + $0x4] sm:$0xf]
      %v210 = vld [vmem:[%s197 + $0x8] sm:$0xf]
      %v211 = vld [vmem:[%s197 + $0xc] sm:$0xf]
      %v212 = vld [vmem:[%s197 + $0x10] sm:$0xf]
      %v213 = vld [vmem:[%s197 + $0x14] sm:$0xf]
      %v214 = vld [vmem:[%s197 + $0x18] sm:$0xf]
      %v215 = vld [vmem:[%s197 + $0x1c] sm:$0xf]
      %v216 = vld [vmem:[%s197 + $0x20] sm:$0xf]
      %v217 = vld [vmem:[%s1] sm:$0xf]
      %v218 = vld [vmem:[%s1 + $0x4] sm:$0x3]
      %v228 = vunpack.c.l.b16 %v208
      %v229 = vunpack.c.l.b16 %v209
      %v230 = vunpack.c.l.b16 %v210
      %v231 = vunpack.c.l.b16 %v211
      %v232 = vunpack.c.l.b16 %v212
      %v233 = vunpack.c.l.b16 %v213
      %v234 = vunpack.c.l.b16 %v214
      %v235 = vunpack.c.l.b16 %v215
      %v236 = vunpack.c.l.b16 %v216
      %v237 = vpack.c.b16 %v229, %v228
      %v238 = vpack.c.b16 %v231, %v230
      %v239 = vpack.c.b16 %v233, %v232
      %v240 = vpack.c.b16 %v235, %v234
      %v241 = vpack.c.b16 %v236, %v236
      %v244 = vunpack.c.l.b16 %v217
      %v245 = vunpack.c.l.b16 %v218
      %v246 = vpack.c.b16 %v245, %v244
      %vm247 = vcmask 97280
      %v249 = vsel %vm247, %v237, 0
      %v252 = vsel %vm247, %v238, 0
      %v255 = vsel %vm247, %v239, 0
      %v258 = vsel %vm247, %v240, 0
      %v261 = vsel %vm247, %v241, 0
      %vm263 = vcmask 1045504
      %v265 = vsel %vm263, %v246, 0
      %267 = vmatprep.subr.bf16.mxu0 0
      %268 = vmatpush1.bf16.msra.mxu0 %v265
      %269 = vmatprep.subr.bf16.mxu0 0
      %270 = vmatpush1.bf16.msra.mxu0 0
      %271 = vmatprep.subr.bf16.mxu0 0
      %272 = vmatpush1.bf16.msra.mxu0 0
      %273 = vmatprep.subr.bf16.mxu0 0
      %274 = vmatpush1.bf16.msra.mxu0 0
      %275 = vmatprep.subr.bf16.mxu0 0
      %276 = vmatpush1.bf16.msra.mxu0 0
      %277 = vmatprep.subr.bf16.mxu0 0
      %278 = vmatpush1.bf16.msra.mxu0 0
      %279 = vmatprep.subr.bf16.mxu0 0
      %280 = vmatpush1.bf16.msra.mxu0 0
      %281 = vmatprep.subr.bf16.mxu0 0
      %282 = vmatpush1.bf16.msra.mxu0 0
      %283 = vmatprep.subr.bf16.mxu0 0
      %284 = vmatpush1.bf16.msra.mxu0 0
      %285 = vmatprep.subr.bf16.mxu0 0
      %286 = vmatpush1.bf16.msra.mxu0 0
      %287 = vmatprep.subr.bf16.mxu0 0
      %288 = vmatpush1.bf16.msra.mxu0 0
      %289 = vmatprep.subr.bf16.mxu0 0
      %290 = vmatpush1.bf16.msra.mxu0 0
      %291 = vmatprep.subr.bf16.mxu0 0
      %292 = vmatpush1.bf16.msra.mxu0 0
      %293 = vmatprep.subr.bf16.mxu0 0
      %294 = vmatpush1.bf16.msra.mxu0 0
      %295 = vmatprep.subr.bf16.mxu0 0
      %296 = vmatpush1.bf16.msra.mxu0 0
      %297 = vmatprep.subr.bf16.mxu0 0
      %298 = vmatpush1.bf16.msra.mxu0 0
      %299 = vmatprep.mubr.bf16.mxu0 0
      %300 = vmatmul.mubr.bf16.gmra.mrb[0].mxu0 %v249
      %v301 = vpop.f32.mrb[0].mxu0
      %v302 = vadd.f32 0.0, %v301
      %v303 = vpop.f32.mrb[0].mxu0
      %v304 = vpop.f32.mrb[0].mxu0
      %v305 = vadd.f32 0.0, %v304
      %v306 = vpop.f32.mrb[0].mxu0
      %307 = vmatprep.mubr.bf16.mxu0 0
      %308 = vmatmul.mubr.bf16.gmra.mrb[0].mxu0 %v252
      %v309 = vpop.f32.mrb[0].mxu0
      %v310 = vadd.f32 0.0, %v309
      %v311 = vpop.f32.mrb[0].mxu0
      %v312 = vpop.f32.mrb[0].mxu0
      %v313 = vadd.f32 0.0, %v312
      %v314 = vpop.f32.mrb[0].mxu0
      %315 = vmatprep.mubr.bf16.mxu0 0
      %316 = vmatmul.mubr.bf16.gmra.mrb[0].mxu0 %v255
      %v317 = vpop.f32.mrb[0].mxu0
      %v318 = vadd.f32 0.0, %v317
      %v319 = vpop.f32.mrb[0].mxu0
      %v320 = vpop.f32.mrb[0].mxu0
      %v321 = vadd.f32 0.0, %v320
      %v322 = vpop.f32.mrb[0].mxu0
      %323 = vmatprep.mubr.bf16.mxu0 0
      %324 = vmatmul.mubr.bf16.gmra.mrb[0].mxu0 %v258
      %v325 = vpop.f32.mrb[0].mxu0
      %v326 = vadd.f32 0.0, %v325
      %v327 = vpop.f32.mrb[0].mxu0
      %v328 = vpop.f32.mrb[0].mxu0
      %v329 = vadd.f32 0.0, %v328
      %v330 = vpop.f32.mrb[0].mxu0
      %331 = vmatprep.mubr.bf16.mxu0 0
      %332 = vmatmul.mubr.bf16.gmra.mrb[0].mxu0 %v261
      %v333 = vpop.f32.mrb[0].mxu0
      %v334 = vadd.f32 0.0, %v333
      %v335 = vpop.f32.mrb[0].mxu0
      %v336 = vpop.f32.mrb[0].mxu0
      %v337 = vpop.f32.mrb[0].mxu0
      %338 = vdwg.mxu0
      %vm339 = vcmask 523264
      %340 = vst.msk [vmem:[#allocation2] sm:$0xff] %vm339, %v302
      %341 = vst.msk [vmem:[#allocation2 + $0x8] sm:$0xff] %vm339, %v305
      %342 = vst.msk [vmem:[#allocation2 + $0x10] sm:$0xff] %vm339, %v310
      %343 = vst.msk [vmem:[#allocation2 + $0x18] sm:$0xff] %vm339, %v313
      %344 = vst.msk [vmem:[#allocation2 + $0x20] sm:$0xff] %vm339, %v318
      %345 = vst.msk [vmem:[#allocation2 + $0x28] sm:$0xff] %vm339, %v321
      %346 = vst.msk [vmem:[#allocation2 + $0x30] sm:$0xff] %vm339, %v326
      %347 = vst.msk [vmem:[#allocation2 + $0x38] sm:$0xff] %vm339, %v329
      %348 = vst.msk [vmem:[#allocation2 + $0x40] sm:$0xff] %vm339, %v334
      %v349 = vld [vmem:[#allocation2] sm:$0xff]
      %v350 = vld [vmem:[#allocation2 + $0x8] sm:$0xff]
      %v351 = vld [vmem:[#allocation2 + $0x10] sm:$0xff]
      %v352 = vld [vmem:[#allocation2 + $0x18] sm:$0xff]
      %v353 = vld [vmem:[#allocation2 + $0x20] sm:$0xff]
      %v354 = vld [vmem:[#allocation2 + $0x28] sm:$0xff]
      %v355 = vld [vmem:[#allocation2 + $0x30] sm:$0xff]
      %v356 = vld [vmem:[#allocation2 + $0x38] sm:$0xff]
      %v357 = vld [vmem:[#allocation2 + $0x40] sm:$0xff]
      %v358 = vld [vmem:[%s197] sm:$0xf]
      %v359 = vld [vmem:[%s197 + $0x4] sm:$0xf]
      %v360 = vld [vmem:[%s197 + $0x8] sm:$0xf]
      %v361 = vld [vmem:[%s197 + $0xc] sm:$0xf]
      %v362 = vld [vmem:[%s197 + $0x10] sm:$0xf]
      %v363 = vld [vmem:[%s197 + $0x14] sm:$0xf]
      %v364 = vld [vmem:[%s197 + $0x18] sm:$0xf]
      %v365 = vld [vmem:[%s197 + $0x1c] sm:$0xf]
      %v366 = vld [vmem:[%s197 + $0x20] sm:$0xf]
      %v367 = vld [vmem:[%s197 + $0x24] sm:$0x1]
      %s368 = scalar_lea.vmem %s1, 8
      %v369 = vld [vmem:[%s368] sm:$0xf]
      %v370 = vld [vmem:[%s368 + $0x4] sm:$0x3]
      %v381 = vunpack.c.l.b16 %v358
      %v382 = vunpack.c.l.b16 %v359
      %v383 = vunpack.c.l.b16 %v360
      %v384 = vunpack.c.l.b16 %v361
      %v385 = vunpack.c.l.b16 %v362
      %v386 = vunpack.c.l.b16 %v363
      %v387 = vunpack.c.l.b16 %v364
      %v388 = vunpack.c.l.b16 %v365
      %v389 = vunpack.c.l.b16 %v366
      %v390 = vunpack.c.l.b16 %v367
      %v391 = vpack.c.b16 %v382, %v381
      %v392 = vpack.c.b16 %v384, %v383
      %v393 = vpack.c.b16 %v386, %v385
      %v394 = vpack.c.b16 %v388, %v387
      %v395 = vpack.c.b16 %v390, %v389
      %vm396 = vsmask.f32 7424
      %v398 = vshrl.u32 %v391, 16
      %v400 = vshll.u32 %v391, 16
      %v402 = vrot.slane %v400, 1
      %v403 = vor.u32 %v398, %v402
      %v405 = vshll.u32 %v392, 16
      %v407 = vrot.slane %v405, 1
      %v408 = vsel %vm396, %v403, %v407
      %v409 = vshrl.u32 %v392, 16
      %v411 = vor.u32 %v409, %v407
      %v413 = vshll.u32 %v393, 16
      %v415 = vrot.slane %v413, 1
      %v416 = vsel %vm396, %v411, %v415
      %v417 = vshrl.u32 %v393, 16
      %v419 = vor.u32 %v417, %v415
      %v421 = vshll.u32 %v394, 16
      %v423 = vrot.slane %v421, 1
      %v424 = vsel %vm396, %v419, %v423
      %v425 = vshrl.u32 %v394, 16
      %v427 = vor.u32 %v425, %v423
      %v429 = vshll.u32 %v395, 16
      %v431 = vrot.slane %v429, 1
      %v432 = vsel %vm396, %v427, %v431
      %v433 = vshrl.u32 %v395, 16
      %v435 = vor.u32 %v433, %v431
      %v438 = vunpack.c.l.b16 %v369
      %v439 = vunpack.c.l.b16 %v370
      %v440 = vpack.c.b16 %v439, %v438
      %v442 = vsel %vm247, %v408, 0
      %v445 = vsel %vm247, %v416, 0
      %v448 = vsel %vm247, %v424, 0
      %v451 = vsel %vm247, %v432, 0
      %v454 = vsel %vm247, %v435, 0
      %v457 = vsel %vm263, %v440, 0
      %459 = vmatprep.subr.bf16.mxu0 0
      %460 = vmatpush1.bf16.msra.mxu0 %v457
      %461 = vmatprep.subr.bf16.mxu0 0
      %462 = vmatpush1.bf16.msra.mxu0 0
      %463 = vmatprep.subr.bf16.mxu0 0
      %464 = vmatpush1.bf16.msra.mxu0 0
      %465 = vmatprep.subr.bf16.mxu0 0
      %466 = vmatpush1.bf16.msra.mxu0 0
      %467 = vmatprep.subr.bf16.mxu0 0
      %468 = vmatpush1.bf16.msra.mxu0 0
      %469 = vmatprep.subr.bf16.mxu0 0
      %470 = vmatpush1.bf16.msra.mxu0 0
      %471 = vmatprep.subr.bf16.mxu0 0
      %472 = vmatpush1.bf16.msra.mxu0 0
      %473 = vmatprep.subr.bf16.mxu0 0
      %474 = vmatpush1.bf16.msra.mxu0 0
      %475 = vmatprep.subr.bf16.mxu0 0
      %476 = vmatpush1.bf16.msra.mxu0 0
      %477 = vmatprep.subr.bf16.mxu0 0
      %478 = vmatpush1.bf16.msra.mxu0 0
      %479 = vmatprep.subr.bf16.mxu0 0
      %480 = vmatpush1.bf16.msra.mxu0 0
      %481 = vmatprep.subr.bf16.mxu0 0
      %482 = vmatpush1.bf16.msra.mxu0 0
      %483 = vmatprep.subr.bf16.mxu0 0
      %484 = vmatpush1.bf16.msra.mxu0 0
      %485 = vmatprep.subr.bf16.mxu0 0
      %486 = vmatpush1.bf16.msra.mxu0 0
      %487 = vmatprep.subr.bf16.mxu0 0
      %488 = vmatpush1.bf16.msra.mxu0 0
      %489 = vmatprep.subr.bf16.mxu0 0
      %490 = vmatpush1.bf16.msra.mxu0 0
      %491 = vmatprep.mubr.bf16.mxu0 0
      %492 = vmatmul.mubr.bf16.gmra.mrb[0].mxu0 %v442
      %v493 = vpop.f32.mrb[0].mxu0
      %v494 = vadd.f32 0.0, %v493
      %v495 = vpop.f32.mrb[0].mxu0
      %v496 = vpop.f32.mrb[0].mxu0
      %v497 = vadd.f32 0.0, %v496
      %v498 = vpop.f32.mrb[0].mxu0
      %499 = vmatprep.mubr.bf16.mxu0 0
      %500 = vmatmul.mubr.bf16.gmra.mrb[0].mxu0 %v445
      %v501 = vpop.f32.mrb[0].mxu0
      %v502 = vadd.f32 0.0, %v501
      %v503 = vpop.f32.mrb[0].mxu0
      %v504 = vpop.f32.mrb[0].mxu0
      %v505 = vadd.f32 0.0, %v504
      %v506 = vpop.f32.mrb[0].mxu0
      %507 = vmatprep.mubr.bf16.mxu0 0
      %508 = vmatmul.mubr.bf16.gmra.mrb[0].mxu0 %v448
      %v509 = vpop.f32.mrb[0].mxu0
      %v510 = vadd.f32 0.0, %v509
      %v511 = vpop.f32.mrb[0].mxu0
      %v512 = vpop.f32.mrb[0].mxu0
      %v513 = vadd.f32 0.0, %v512
      %v514 = vpop.f32.mrb[0].mxu0
      %515 = vmatprep.mubr.bf16.mxu0 0
      %516 = vmatmul.mubr.bf16.gmra.mrb[0].mxu0 %v451
      %v517 = vpop.f32.mrb[0].mxu0
      %v518 = vadd.f32 0.0, %v517
      %v519 = vpop.f32.mrb[0].mxu0
      %v520 = vpop.f32.mrb[0].mxu0
      %v521 = vadd.f32 0.0, %v520
      %v522 = vpop.f32.mrb[0].mxu0
      %523 = vmatprep.mubr.bf16.mxu0 0
      %524 = vmatmul.mubr.bf16.gmra.mrb[0].mxu0 %v454
      %v525 = vpop.f32.mrb[0].mxu0
      %v526 = vadd.f32 0.0, %v525
      %v527 = vpop.f32.mrb[0].mxu0
      %v528 = vpop.f32.mrb[0].mxu0
      %v529 = vpop.f32.mrb[0].mxu0
      %530 = vdwg.mxu0
      %v531 = vadd.f32 %v349, %v494
      %v532 = vadd.f32 %v350, %v497
      %v533 = vadd.f32 %v351, %v502
      %v534 = vadd.f32 %v352, %v505
      %v535 = vadd.f32 %v353, %v510
      %v536 = vadd.f32 %v354, %v513
      %v537 = vadd.f32 %v355, %v518
      %v538 = vadd.f32 %v356, %v521
      %v539 = vadd.f32 %v357, %v526
      %540 = vst.msk [vmem:[#allocation2] sm:$0xff] %vm339, %v531
      %541 = vst.msk [vmem:[#allocation2 + $0x8] sm:$0xff] %vm339, %v532
      %542 = vst.msk [vmem:[#allocation2 + $0x10] sm:$0xff] %vm339, %v533
      %543 = vst.msk [vmem:[#allocation2 + $0x18] sm:$0xff] %vm339, %v534
      %544 = vst.msk [vmem:[#allocation2 + $0x20] sm:$0xff] %vm339, %v535
      %545 = vst.msk [vmem:[#allocation2 + $0x28] sm:$0xff] %vm339, %v536
      %546 = vst.msk [vmem:[#allocation2 + $0x30] sm:$0xff] %vm339, %v537
      %547 = vst.msk [vmem:[#allocation2 + $0x38] sm:$0xff] %vm339, %v538
      %548 = vst.msk [vmem:[#allocation2 + $0x40] sm:$0xff] %vm339, %v539
      %v549 = vld [vmem:[#allocation2] sm:$0xff]
      %v550 = vld [vmem:[#allocation2 + $0x8] sm:$0xff]
      %v551 = vld [vmem:[#allocation2 + $0x10] sm:$0xff]
      %v552 = vld [vmem:[#allocation2 + $0x18] sm:$0xff]
      %v553 = vld [vmem:[#allocation2 + $0x20] sm:$0xff]
      %v554 = vld [vmem:[#allocation2 + $0x28] sm:$0xff]
      %v555 = vld [vmem:[#allocation2 + $0x30] sm:$0xff]
      %v556 = vld [vmem:[#allocation2 + $0x38] sm:$0xff]
      %v557 = vld [vmem:[#allocation2 + $0x40] sm:$0xff]
      %v558 = vld [vmem:[%s197 + $0x4] sm:$0xf]
      %v559 = vld [vmem:[%s197 + $0x8] sm:$0xf]
      %v560 = vld [vmem:[%s197 + $0xc] sm:$0xf]
      %v561 = vld [vmem:[%s197 + $0x10] sm:$0xf]
      %v562 = vld [vmem:[%s197 + $0x14] sm:$0xf]
      %v563 = vld [vmem:[%s197 + $0x18] sm:$0xf]
      %v564 = vld [vmem:[%s197 + $0x1c] sm:$0xf]
      %v565 = vld [vmem:[%s197 + $0x20] sm:$0xf]
      %v566 = vld [vmem:[%s197 + $0x24] sm:$0xf]
      %v567 = vld [vmem:[%s197 + $0x28] sm:$0x1]
      %s568 = scalar_lea.vmem %s1, 16
      %v569 = vld [vmem:[%s568] sm:$0xf]
      %v570 = vld [vmem:[%s568 + $0x4] sm:$0x3]
      %v581 = vunpack.c.l.b16 %v558
      %v582 = vunpack.c.l.b16 %v559
      %v583 = vunpack.c.l.b16 %v560
      %v584 = vunpack.c.l.b16 %v561
      %v585 = vunpack.c.l.b16 %v562
      %v586 = vunpack.c.l.b16 %v563
      %v587 = vunpack.c.l.b16 %v564
      %v588 = vunpack.c.l.b16 %v565
      %v589 = vunpack.c.l.b16 %v566
      %v590 = vunpack.c.l.b16 %v567
      %v591 = vpack.c.b16 %v582, %v581
      %v592 = vpack.c.b16 %v584, %v583
      %v593 = vpack.c.b16 %v586, %v585
      %v594 = vpack.c.b16 %v588, %v587
      %v595 = vpack.c.b16 %v590, %v589
      %v597 = vshrl.u32 %v591, 16
      %v599 = vshll.u32 %v591, 16
      %v601 = vrot.slane %v599, 1
      %v602 = vor.u32 %v597, %v601
      %v604 = vshll.u32 %v592, 16
      %v606 = vrot.slane %v604, 1
      %v607 = vsel %vm396, %v602, %v606
      %v608 = vshrl.u32 %v592, 16
      %v610 = vor.u32 %v608, %v606
      %v612 = vshll.u32 %v593, 16
      %v614 = vrot.slane %v612, 1
      %v615 = vsel %vm396, %v610, %v614
      %v616 = vshrl.u32 %v593, 16
      %v618 = vor.u32 %v616, %v614
      %v620 = vshll.u32 %v594, 16
      %v622 = vrot.slane %v620, 1
      %v623 = vsel %vm396, %v618, %v622
      %v624 = vshrl.u32 %v594, 16
      %v626 = vor.u32 %v624, %v622
      %v628 = vshll.u32 %v595, 16
      %v630 = vrot.slane %v628, 1
      %v631 = vsel %vm396, %v626, %v630
      %v632 = vshrl.u32 %v595, 16
      %v634 = vor.u32 %v632, %v630
      %v637 = vunpack.c.l.b16 %v569
      %v638 = vunpack.c.l.b16 %v570
      %v639 = vpack.c.b16 %v638, %v637
      %v641 = vsel %vm247, %v607, 0
      %v644 = vsel %vm247, %v615, 0
      %v647 = vsel %vm247, %v623, 0
      %v650 = vsel %vm247, %v631, 0
      %v653 = vsel %vm247, %v634, 0
      %v656 = vsel %vm263, %v639, 0
      %658 = vmatprep.subr.bf16.mxu0 0
      %659 = vmatpush1.bf16.msra.mxu0 %v656
      %660 = vmatprep.subr.bf16.mxu0 0
      %661 = vmatpush1.bf16.msra.mxu0 0
      %662 = vmatprep.subr.bf16.mxu0 0
      %663 = vmatpush1.bf16.msra.mxu0 0
      %664 = vmatprep.subr.bf16.mxu0 0
      %665 = vmatpush1.bf16.msra.mxu0 0
      %666 = vmatprep.subr.bf16.mxu0 0
      %667 = vmatpush1.bf16.msra.mxu0 0
      %668 = vmatprep.subr.bf16.mxu0 0
      %669 = vmatpush1.bf16.msra.mxu0 0
      %670 = vmatprep.subr.bf16.mxu0 0
      %671 = vmatpush1.bf16.msra.mxu0 0
      %672 = vmatprep.subr.bf16.mxu0 0
      %673 = vmatpush1.bf16.msra.mxu0 0
      %674 = vmatprep.subr.bf16.mxu0 0
      %675 = vmatpush1.bf16.msra.mxu0 0
      %676 = vmatprep.subr.bf16.mxu0 0
      %677 = vmatpush1.bf16.msra.mxu0 0
      %678 = vmatprep.subr.bf16.mxu0 0
      %679 = vmatpush1.bf16.msra.mxu0 0
      %680 = vmatprep.subr.bf16.mxu0 0
      %681 = vmatpush1.bf16.msra.mxu0 0
      %682 = vmatprep.subr.bf16.mxu0 0
      %683 = vmatpush1.bf16.msra.mxu0 0
      %684 = vmatprep.subr.bf16.mxu0 0
      %685 = vmatpush1.bf16.msra.mxu0 0
      %686 = vmatprep.subr.bf16.mxu0 0
      %687 = vmatpush1.bf16.msra.mxu0 0
      %688 = vmatprep.subr.bf16.mxu0 0
      %689 = vmatpush1.bf16.msra.mxu0 0
      %690 = vmatprep.mubr.bf16.mxu0 0
      %691 = vmatmul.mubr.bf16.gmra.mrb[0].mxu0 %v641
      %v692 = vpop.f32.mrb[0].mxu0
      %v693 = vadd.f32 0.0, %v692
      %v694 = vpop.f32.mrb[0].mxu0
      %v695 = vpop.f32.mrb[0].mxu0
      %v696 = vadd.f32 0.0, %v695
      %v697 = vpop.f32.mrb[0].mxu0
      %698 = vmatprep.mubr.bf16.mxu0 0
      %699 = vmatmul.mubr.bf16.gmra.mrb[0].mxu0 %v644
      %v700 = vpop.f32.mrb[0].mxu0
      %v701 = vadd.f32 0.0, %v700
      %v702 = vpop.f32.mrb[0].mxu0
      %v703 = vpop.f32.mrb[0].mxu0
      %v704 = vadd.f32 0.0, %v703
      %v705 = vpop.f32.mrb[0].mxu0
      %706 = vmatprep.mubr.bf16.mxu0 0
      %707 = vmatmul.mubr.bf16.gmra.mrb[0].mxu0 %v647
      %v708 = vpop.f32.mrb[0].mxu0
      %v709 = vadd.f32 0.0, %v708
      %v710 = vpop.f32.mrb[0].mxu0
      %v711 = vpop.f32.mrb[0].mxu0
      %v712 = vadd.f32 0.0, %v711
      %v713 = vpop.f32.mrb[0].mxu0
      %714 = vmatprep.mubr.bf16.mxu0 0
      %715 = vmatmul.mubr.bf16.gmra.mrb[0].mxu0 %v650
      %v716 = vpop.f32.mrb[0].mxu0
      %v717 = vadd.f32 0.0, %v716
      %v718 = vpop.f32.mrb[0].mxu0
      %v719 = vpop.f32.mrb[0].mxu0
      %v720 = vadd.f32 0.0, %v719
      %v721 = vpop.f32.mrb[0].mxu0
      %722 = vmatprep.mubr.bf16.mxu0 0
      %723 = vmatmul.mubr.bf16.gmra.mrb[0].mxu0 %v653
      %v724 = vpop.f32.mrb[0].mxu0
      %v725 = vadd.f32 0.0, %v724
      %v726 = vpop.f32.mrb[0].mxu0
      %v727 = vpop.f32.mrb[0].mxu0
      %v728 = vpop.f32.mrb[0].mxu0
      %729 = vdwg.mxu0
      %v730 = vadd.f32 %v549, %v693
      %v731 = vadd.f32 %v550, %v696
      %v732 = vadd.f32 %v551, %v701
      %v733 = vadd.f32 %v552, %v704
      %v734 = vadd.f32 %v553, %v709
      %v735 = vadd.f32 %v554, %v712
      %v736 = vadd.f32 %v555, %v717
      %v737 = vadd.f32 %v556, %v720
      %v738 = vadd.f32 %v557, %v725
      %739 = vst.msk [vmem:[#allocation2] sm:$0xff] %vm339, %v730
      %740 = vst.msk [vmem:[#allocation2 + $0x8] sm:$0xff] %vm339, %v731
      %741 = vst.msk [vmem:[#allocation2 + $0x10] sm:$0xff] %vm339, %v732
      %742 = vst.msk [vmem:[#allocation2 + $0x18] sm:$0xff] %vm339, %v733
      %743 = vst.msk [vmem:[#allocation2 + $0x20] sm:$0xff] %vm339, %v734
      %744 = vst.msk [vmem:[#allocation2 + $0x28] sm:$0xff] %vm339, %v735
      %745 = vst.msk [vmem:[#allocation2 + $0x30] sm:$0xff] %vm339, %v736
      %746 = vst.msk [vmem:[#allocation2 + $0x38] sm:$0xff] %vm339, %v737
      %747 = vst.msk [vmem:[#allocation2 + $0x40] sm:$0xff] %vm339, %v738
      %v748 = vld [vmem:[#allocation2] sm:$0xff]
      %v749 = vld [vmem:[#allocation2 + $0x8] sm:$0xff]
      %v750 = vld [vmem:[#allocation2 + $0x10] sm:$0xff]
      %v751 = vld [vmem:[#allocation2 + $0x18] sm:$0xff]
      %v752 = vld [vmem:[#allocation2 + $0x20] sm:$0xff]
      %v753 = vld [vmem:[#allocation2 + $0x28] sm:$0xff]
      %v754 = vld [vmem:[#allocation2 + $0x30] sm:$0xff]
      %v755 = vld [vmem:[#allocation2 + $0x38] sm:$0xff]
      %v756 = vld [vmem:[#allocation2 + $0x40] sm:$0xff]
      %v757 = vld [vmem:[%s197 + $0x4] sm:$0xe]
      %v758 = vld [vmem:[%s197 + $0x8] sm:$0xf]
      %v759 = vld [vmem:[%s197 + $0xc] sm:$0xf]
      %v760 = vld [vmem:[%s197 + $0x10] sm:$0xf]
      %v761 = vld [vmem:[%s197 + $0x14] sm:$0xf]
      %v762 = vld [vmem:[%s197 + $0x18] sm:$0xf]
      %v763 = vld [vmem:[%s197 + $0x1c] sm:$0xf]
      %v764 = vld [vmem:[%s197 + $0x20] sm:$0xf]
      %v765 = vld [vmem:[%s197 + $0x24] sm:$0xf]
      %v766 = vld [vmem:[%s197 + $0x28] sm:$0x1]
      %s767 = scalar_lea.vmem %s1, 24
      %v768 = vld [vmem:[%s767] sm:$0xf]
      %v769 = vld [vmem:[%s767 + $0x4] sm:$0x3]
      %v780 = vunpack.c.l.b16 %v757
      %v781 = vunpack.c.l.b16 %v758
      %v782 = vunpack.c.l.b16 %v759
      %v783 = vunpack.c.l.b16 %v760
      %v784 = vunpack.c.l.b16 %v761
      %v785 = vunpack.c.l.b16 %v762
      %v786 = vunpack.c.l.b16 %v763
      %v787 = vunpack.c.l.b16 %v764
      %v788 = vunpack.c.l.b16 %v765
      %v789 = vunpack.c.l.b16 %v766
      %v790 = vpack.c.b16 %v781, %v780
      %v791 = vpack.c.b16 %v783, %v782
      %v792 = vpack.c.b16 %v785, %v784
      %v793 = vpack.c.b16 %v787, %v786
      %v794 = vpack.c.b16 %v789, %v788
      %vm795 = vcmask 1046528
      %v796 = vrot.slane %v790, 1
      %v797 = vrot.slane %v791, 1
      %v798 = vsel %vm795, %v796, %v797
      %v799 = vrot.slane %v792, 1
      %v800 = vsel %vm795, %v797, %v799
      %v801 = vrot.slane %v793, 1
      %v802 = vsel %vm795, %v799, %v801
      %v803 = vrot.slane %v794, 1
      %v804 = vsel %vm795, %v801, %v803
      %v807 = vunpack.c.l.b16 %v768
      %v808 = vunpack.c.l.b16 %v769
      %v809 = vpack.c.b16 %v808, %v807
      %v811 = vsel %vm247, %v798, 0
      %v814 = vsel %vm247, %v800, 0
      %v817 = vsel %vm247, %v802, 0
      %v820 = vsel %vm247, %v804, 0
      %v823 = vsel %vm247, %v803, 0
      %v826 = vsel %vm263, %v809, 0
      %828 = vmatprep.subr.bf16.mxu0 0
      %829 = vmatpush1.bf16.msra.mxu0 %v826
      %830 = vmatprep.subr.bf16.mxu0 0
      %831 = vmatpush1.bf16.msra.mxu0 0
      %832 = vmatprep.subr.bf16.mxu0 0
      %833 = vmatpush1.bf16.msra.mxu0 0
      %834 = vmatprep.subr.bf16.mxu0 0
      %835 = vmatpush1.bf16.msra.mxu0 0
      %836 = vmatprep.subr.bf16.mxu0 0
      %837 = vmatpush1.bf16.msra.mxu0 0
      %838 = vmatprep.subr.bf16.mxu0 0
      %839 = vmatpush1.bf16.msra.mxu0 0
      %840 = vmatprep.subr.bf16.mxu0 0
      %841 = vmatpush1.bf16.msra.mxu0 0
      %842 = vmatprep.subr.bf16.mxu0 0
      %843 = vmatpush1.bf16.msra.mxu0 0
      %844 = vmatprep.subr.bf16.mxu0 0
      %845 = vmatpush1.bf16.msra.mxu0 0
      %846 = vmatprep.subr.bf16.mxu0 0
      %847 = vmatpush1.bf16.msra.mxu0 0
      %848 = vmatprep.subr.bf16.mxu0 0
      %849 = vmatpush1.bf16.msra.mxu0 0
      %850 = vmatprep.subr.bf16.mxu0 0
      %851 = vmatpush1.bf16.msra.mxu0 0
      %852 = vmatprep.subr.bf16.mxu0 0
      %853 = vmatpush1.bf16.msra.mxu0 0
      %854 = vmatprep.subr.bf16.mxu0 0
      %855 = vmatpush1.bf16.msra.mxu0 0
      %856 = vmatprep.subr.bf16.mxu0 0
      %857 = vmatpush1.bf16.msra.mxu0 0
      %858 = vmatprep.subr.bf16.mxu0 0
      %859 = vmatpush1.bf16.msra.mxu0 0
      %860 = vmatprep.mubr.bf16.mxu0 0
      %861 = vmatmul.mubr.bf16.gmra.mrb[0].mxu0 %v811
      %v862 = vpop.f32.mrb[0].mxu0
      %v863 = vadd.f32 0.0, %v862
      %v864 = vpop.f32.mrb[0].mxu0
      %v865 = vpop.f32.mrb[0].mxu0
      %v866 = vadd.f32 0.0, %v865
      %v867 = vpop.f32.mrb[0].mxu0
      %868 = vmatprep.mubr.bf16.mxu0 0
      %869 = vmatmul.mubr.bf16.gmra.mrb[0].mxu0 %v814
      %v870 = vpop.f32.mrb[0].mxu0
      %v871 = vadd.f32 0.0, %v870
      %v872 = vpop.f32.mrb[0].mxu0
      %v873 = vpop.f32.mrb[0].mxu0
      %v874 = vadd.f32 0.0, %v873
      %v875 = vpop.f32.mrb[0].mxu0
      %876 = vmatprep.mubr.bf16.mxu0 0
      %877 = vmatmul.mubr.bf16.gmra.mrb[0].mxu0 %v817
      %v878 = vpop.f32.mrb[0].mxu0
      %v879 = vadd.f32 0.0, %v878
      %v880 = vpop.f32.mrb[0].mxu0
      %v881 = vpop.f32.mrb[0].mxu0
      %v882 = vadd.f32 0.0, %v881
      %v883 = vpop.f32.mrb[0].mxu0
      %884 = vmatprep.mubr.bf16.mxu0 0
      %885 = vmatmul.mubr.bf16.gmra.mrb[0].mxu0 %v820
      %v886 = vpop.f32.mrb[0].mxu0
      %v887 = vadd.f32 0.0, %v886
      %v888 = vpop.f32.mrb[0].mxu0
      %v889 = vpop.f32.mrb[0].mxu0
      %v890 = vadd.f32 0.0, %v889
      %v891 = vpop.f32.mrb[0].mxu0
      %892 = vmatprep.mubr.bf16.mxu0 0
      %893 = vmatmul.mubr.bf16.gmra.mrb[0].mxu0 %v823
      %v894 = vpop.f32.mrb[0].mxu0
      %v895 = vadd.f32 0.0, %v894
      %v896 = vpop.f32.mrb[0].mxu0
      %v897 = vpop.f32.mrb[0].mxu0
      %v898 = vpop.f32.mrb[0].mxu0
      %899 = vdwg.mxu0
      %v900 = vadd.f32 %v748, %v863
      %v901 = vadd.f32 %v749, %v866
      %v902 = vadd.f32 %v750, %v871
      %v903 = vadd.f32 %v751, %v874
      %v904 = vadd.f32 %v752, %v879
      %v905 = vadd.f32 %v753, %v882
      %v906 = vadd.f32 %v754, %v887
      %v907 = vadd.f32 %v755, %v890
      %v908 = vadd.f32 %v756, %v895
      %909 = vst.msk [vmem:[#allocation2] sm:$0xff] %vm339, %v900
      %910 = vst.msk [vmem:[#allocation2 + $0x8] sm:$0xff] %vm339, %v901
      %911 = vst.msk [vmem:[#allocation2 + $0x10] sm:$0xff] %vm339, %v902
      %912 = vst.msk [vmem:[#allocation2 + $0x18] sm:$0xff] %vm339, %v903
      %913 = vst.msk [vmem:[#allocation2 + $0x20] sm:$0xff] %vm339, %v904
      %914 = vst.msk [vmem:[#allocation2 + $0x28] sm:$0xff] %vm339, %v905
      %915 = vst.msk [vmem:[#allocation2 + $0x30] sm:$0xff] %vm339, %v906
      %916 = vst.msk [vmem:[#allocation2 + $0x38] sm:$0xff] %vm339, %v907
      %917 = vst.msk [vmem:[#allocation2 + $0x40] sm:$0xff] %vm339, %v908
      %v918 = vld [vmem:[#allocation2] sm:$0xff]
      %v919 = vld [vmem:[#allocation2 + $0x8] sm:$0xff]
      %v920 = vld [vmem:[#allocation2 + $0x10] sm:$0xff]
      %v921 = vld [vmem:[#allocation2 + $0x18] sm:$0xff]
      %v922 = vld [vmem:[#allocation2 + $0x20] sm:$0xff]
      %v923 = vld [vmem:[#allocation2 + $0x28] sm:$0xff]
      %v924 = vld [vmem:[#allocation2 + $0x30] sm:$0xff]
      %v925 = vld [vmem:[#allocation2 + $0x38] sm:$0xff]
      %v926 = vld [vmem:[#allocation2 + $0x40] sm:$0xff]
      %936 = vrot.lane.b32.xlu0 %v918, 112
      %v937 = vpop.permute.xlu0 %936
      %938 = vrot.lane.b32.xlu0 %v919, 112
      %v939 = vpop.permute.xlu0 %938
      %940 = vrot.lane.b32.xlu0 %v920, 112
      %v941 = vpop.permute.xlu0 %940
      %942 = vrot.lane.b32.xlu0 %v921, 112
      %v943 = vpop.permute.xlu0 %942
      %944 = vrot.lane.b32.xlu0 %v922, 112
      %v945 = vpop.permute.xlu0 %944
      %946 = vrot.lane.b32.xlu0 %v923, 112
      %v947 = vpop.permute.xlu0 %946
      %948 = vrot.lane.b32.xlu0 %v924, 112
      %v949 = vpop.permute.xlu0 %948
      %950 = vrot.lane.b32.xlu0 %v925, 112
      %v951 = vpop.permute.xlu0 %950
      %952 = vrot.lane.b32.xlu0 %v926, 112
      %v953 = vpop.permute.xlu0 %952
      %v963 = vmax.f32 %v918, %v937
      %v964 = vmax.f32 %v919, %v939
      %v965 = vmax.f32 %v920, %v941
      %v966 = vmax.f32 %v921, %v943
      %v967 = vmax.f32 %v922, %v945
      %v968 = vmax.f32 %v923, %v947
      %v969 = vmax.f32 %v924, %v949
      %v970 = vmax.f32 %v925, %v951
      %v971 = vmax.f32 %v926, %v953
      %981 = vrot.lane.b32.xlu0 %v963, 96
      %v982 = vpop.permute.xlu0 %981
      %983 = vrot.lane.b32.xlu0 %v964, 96
      %v984 = vpop.permute.xlu0 %983
      %985 = vrot.lane.b32.xlu0 %v965, 96
      %v986 = vpop.permute.xlu0 %985
      %987 = vrot.lane.b32.xlu0 %v966, 96
      %v988 = vpop.permute.xlu0 %987
      %989 = vrot.lane.b32.xlu0 %v967, 96
      %v990 = vpop.permute.xlu0 %989
      %991 = vrot.lane.b32.xlu0 %v968, 96
      %v992 = vpop.permute.xlu0 %991
      %993 = vrot.lane.b32.xlu0 %v969, 96
      %v994 = vpop.permute.xlu0 %993
      %995 = vrot.lane.b32.xlu0 %v970, 96
      %v996 = vpop.permute.xlu0 %995
      %997 = vrot.lane.b32.xlu0 %v971, 96
      %v998 = vpop.permute.xlu0 %997
      %v1008 = vmax.f32 %v963, %v982
      %v1009 = vmax.f32 %v964, %v984
      %v1010 = vmax.f32 %v965, %v986
      %v1011 = vmax.f32 %v966, %v988
      %v1012 = vmax.f32 %v967, %v990
      %v1013 = vmax.f32 %v968, %v992
      %v1014 = vmax.f32 %v969, %v994
      %v1015 = vmax.f32 %v970, %v996
      %v1016 = vmax.f32 %v971, %v998
      %v1017 = vld [vmem:[%s2] sm:$0x1]
      %v1019 = vlaneseq
      %v1020 = vshrl.u32 %v1019, 7
      %v1021 = vsub.s32 0, %v1020
      %v1022 = vrot.slane %v1017, %v1021
      %v1024 = vadd.f32 %v1008, %v1022
      %v1025 = vadd.f32 %v1009, %v1022
      %v1026 = vadd.f32 %v1010, %v1022
      %v1027 = vadd.f32 %v1011, %v1022
      %v1028 = vadd.f32 %v1012, %v1022
      %v1029 = vadd.f32 %v1013, %v1022
      %v1030 = vadd.f32 %v1014, %v1022
      %v1031 = vadd.f32 %v1015, %v1022
      %v1032 = vadd.f32 %v1016, %v1022
      %v1033 = vmax.f32 %v1024, 0.0
      %v1034 = vmax.f32 %v1025, 0.0
      %v1035 = vmax.f32 %v1026, 0.0
      %v1036 = vmax.f32 %v1027, 0.0
      %v1037 = vmax.f32 %v1028, 0.0
      %v1038 = vmax.f32 %v1029, 0.0
      %v1039 = vmax.f32 %v1030, 0.0
      %v1040 = vmax.f32 %v1031, 0.0
      %v1041 = vmax.f32 %v1032, 0.0
      %v1051 = vcombine.high %v1033, %v1033
      %v1053 = vunpack.c.l.s4 1966171168
      %v1054 = vunpack.c.0.s8 %v1053
      %v1055 = vlaneseq
      %v1056 = vshrl.u32 %v1055, 7
      %v1057 = vsub.s32 %v1054, %v1056
      %v1058 = vrot.slane %v1033, %v1057
      %v1060 = vunpack.c.l.s4 1966171168
      %v1061 = vunpack.c.0.s8 %v1060
      %v1062 = vlaneseq
      %v1063 = vshrl.u32 %v1062, 7
      %v1064 = vsub.s32 %v1061, %v1063
      %v1065 = vrot.slane %v1051, %v1064
      %v1066 = vcombine.high %v1058, %v1058
      %v1067 = vcombine.high %v1065, %v1065
      %v1069 = vunpack.c.l.s4 1966171168
      %v1070 = vunpack.c.0.s8 %v1069
      %v1071 = vlaneseq
      %v1072 = vshrl.u32 %v1071, 7
      %v1073 = vsub.s32 %v1070, %v1072
      %v1074 = vrot.slane %v1058, %v1073
      %v1076 = vunpack.c.l.s4 1966171168
      %v1077 = vunpack.c.0.s8 %v1076
      %v1078 = vlaneseq
      %v1079 = vshrl.u32 %v1078, 7
      %v1080 = vsub.s32 %v1077, %v1079
      %v1081 = vrot.slane %v1065, %v1080
      %v1083 = vunpack.c.l.s4 1966171168
      %v1084 = vunpack.c.0.s8 %v1083
      %v1085 = vlaneseq
      %v1086 = vshrl.u32 %v1085, 7
      %v1087 = vsub.s32 %v1084, %v1086
      %v1088 = vrot.slane %v1066, %v1087
      %v1090 = vunpack.c.l.s4 1966171168
      %v1091 = vunpack.c.0.s8 %v1090
      %v1092 = vlaneseq
      %v1093 = vshrl.u32 %v1092, 7
      %v1094 = vsub.s32 %v1091, %v1093
      %v1095 = vrot.slane %v1067, %v1094
      %v1096 = vcombine.high %v1074, %v1074
      %v1097 = vcombine.high %v1081, %v1081
      %v1098 = vcombine.high %v1088, %v1088
      %v1099 = vcombine.high %v1095, %v1095
      %v1100 = vcombine.high %v1034, %v1034
      %v1102 = vunpack.c.l.s4 1966171168
      %v1103 = vunpack.c.0.s8 %v1102
      %v1104 = vlaneseq
      %v1105 = vshrl.u32 %v1104, 7
      %v1106 = vsub.s32 %v1103, %v1105
      %v1107 = vrot.slane %v1034, %v1106
      %v1109 = vunpack.c.l.s4 1966171168
      %v1110 = vunpack.c.0.s8 %v1109
      %v1111 = vlaneseq
      %v1112 = vshrl.u32 %v1111, 7
      %v1113 = vsub.s32 %v1110, %v1112
      %v1114 = vrot.slane %v1100, %v1113
      %v1115 = vcombine.high %v1107, %v1107
      %v1116 = vcombine.high %v1114, %v1114
      %v1118 = vunpack.c.l.s4 1966171168
      %v1119 = vunpack.c.0.s8 %v1118
      %v1120 = vlaneseq
      %v1121 = vshrl.u32 %v1120, 7
      %v1122 = vsub.s32 %v1119, %v1121
      %v1123 = vrot.slane %v1107, %v1122
      %v1125 = vunpack.c.l.s4 1966171168
      %v1126 = vunpack.c.0.s8 %v1125
      %v1127 = vlaneseq
      %v1128 = vshrl.u32 %v1127, 7
      %v1129 = vsub.s32 %v1126, %v1128
      %v1130 = vrot.slane %v1114, %v1129
      %v1132 = vunpack.c.l.s4 1966171168
      %v1133 = vunpack.c.0.s8 %v1132
      %v1134 = vlaneseq
      %v1135 = vshrl.u32 %v1134, 7
      %v1136 = vsub.s32 %v1133, %v1135
      %v1137 = vrot.slane %v1115, %v1136
      %v1139 = vunpack.c.l.s4 1966171168
      %v1140 = vunpack.c.0.s8 %v1139
      %v1141 = vlaneseq
      %v1142 = vshrl.u32 %v1141, 7
      %v1143 = vsub.s32 %v1140, %v1142
      %v1144 = vrot.slane %v1116, %v1143
      %v1145 = vcombine.high %v1123, %v1123
      %v1146 = vcombine.high %v1130, %v1130
      %v1147 = vcombine.high %v1137, %v1137
      %v1148 = vcombine.high %v1144, %v1144
      %v1149 = vcombine.high %v1035, %v1035
      %v1151 = vunpack.c.l.s4 1966171168
      %v1152 = vunpack.c.0.s8 %v1151
      %v1153 = vlaneseq
      %v1154 = vshrl.u32 %v1153, 7
      %v1155 = vsub.s32 %v1152, %v1154
      %v1156 = vrot.slane %v1035, %v1155
      %v1158 = vunpack.c.l.s4 1966171168
      %v1159 = vunpack.c.0.s8 %v1158
      %v1160 = vlaneseq
      %v1161 = vshrl.u32 %v1160, 7
      %v1162 = vsub.s32 %v1159, %v1161
      %v1163 = vrot.slane %v1149, %v1162
      %v1164 = vcombine.high %v1156, %v1156
      %v1165 = vcombine.high %v1163, %v1163
      %v1167 = vunpack.c.l.s4 1966171168
      %v1168 = vunpack.c.0.s8 %v1167
      %v1169 = vlaneseq
      %v1170 = vshrl.u32 %v1169, 7
      %v1171 = vsub.s32 %v1168, %v1170
      %v1172 = vrot.slane %v1156, %v1171
      %v1174 = vunpack.c.l.s4 1966171168
      %v1175 = vunpack.c.0.s8 %v1174
      %v1176 = vlaneseq
      %v1177 = vshrl.u32 %v1176, 7
      %v1178 = vsub.s32 %v1175, %v1177
      %v1179 = vrot.slane %v1163, %v1178
      %v1181 = vunpack.c.l.s4 1966171168
      %v1182 = vunpack.c.0.s8 %v1181
      %v1183 = vlaneseq
      %v1184 = vshrl.u32 %v1183, 7
      %v1185 = vsub.s32 %v1182, %v1184
      %v1186 = vrot.slane %v1164, %v1185
      %v1188 = vunpack.c.l.s4 1966171168
      %v1189 = vunpack.c.0.s8 %v1188
      %v1190 = vlaneseq
      %v1191 = vshrl.u32 %v1190, 7
      %v1192 = vsub.s32 %v1189, %v1191
      %v1193 = vrot.slane %v1165, %v1192
      %v1194 = vcombine.high %v1172, %v1172
      %v1195 = vcombine.high %v1179, %v1179
      %v1196 = vcombine.high %v1186, %v1186
      %v1197 = vcombine.high %v1193, %v1193
      %v1198 = vcombine.high %v1036, %v1036
      %v1200 = vunpack.c.l.s4 1966171168
      %v1201 = vunpack.c.0.s8 %v1200
      %v1202 = vlaneseq
      %v1203 = vshrl.u32 %v1202, 7
      %v1204 = vsub.s32 %v1201, %v1203
      %v1205 = vrot.slane %v1036, %v1204
      %v1207 = vunpack.c.l.s4 1966171168
      %v1208 = vunpack.c.0.s8 %v1207
      %v1209 = vlaneseq
      %v1210 = vshrl.u32 %v1209, 7
      %v1211 = vsub.s32 %v1208, %v1210
      %v1212 = vrot.slane %v1198, %v1211
      %v1213 = vcombine.high %v1205, %v1205
      %v1214 = vcombine.high %v1212, %v1212
      %v1216 = vunpack.c.l.s4 1966171168
      %v1217 = vunpack.c.0.s8 %v1216
      %v1218 = vlaneseq
      %v1219 = vshrl.u32 %v1218, 7
      %v1220 = vsub.s32 %v1217, %v1219
      %v1221 = vrot.slane %v1205, %v1220
      %v1223 = vunpack.c.l.s4 1966171168
      %v1224 = vunpack.c.0.s8 %v1223
      %v1225 = vlaneseq
      %v1226 = vshrl.u32 %v1225, 7
      %v1227 = vsub.s32 %v1224, %v1226
      %v1228 = vrot.slane %v1212, %v1227
      %v1230 = vunpack.c.l.s4 1966171168
      %v1231 = vunpack.c.0.s8 %v1230
      %v1232 = vlaneseq
      %v1233 = vshrl.u32 %v1232, 7
      %v1234 = vsub.s32 %v1231, %v1233
      %v1235 = vrot.slane %v1213, %v1234
      %v1237 = vunpack.c.l.s4 1966171168
      %v1238 = vunpack.c.0.s8 %v1237
      %v1239 = vlaneseq
      %v1240 = vshrl.u32 %v1239, 7
      %v1241 = vsub.s32 %v1238, %v1240
      %v1242 = vrot.slane %v1214, %v1241
      %v1243 = vcombine.high %v1228, %v1228
      %v1244 = vcombine.high %v1235, %v1235
      %v1245 = vcombine.high %v1242, %v1242
      %v1246 = vcombine.high %v1037, %v1037
      %v1248 = vunpack.c.l.s4 1966171168
      %v1249 = vunpack.c.0.s8 %v1248
      %v1250 = vlaneseq
      %v1251 = vshrl.u32 %v1250, 7
      %v1252 = vsub.s32 %v1249, %v1251
      %v1253 = vrot.slane %v1037, %v1252
      %v1255 = vunpack.c.l.s4 1966171168
      %v1256 = vunpack.c.0.s8 %v1255
      %v1257 = vlaneseq
      %v1258 = vshrl.u32 %v1257, 7
      %v1259 = vsub.s32 %v1256, %v1258
      %v1260 = vrot.slane %v1246, %v1259
      %v1261 = vcombine.high %v1253, %v1253
      %v1262 = vcombine.high %v1260, %v1260
      %v1264 = vunpack.c.l.s4 1966171168
      %v1265 = vunpack.c.0.s8 %v1264
      %v1266 = vlaneseq
      %v1267 = vshrl.u32 %v1266, 7
      %v1268 = vsub.s32 %v1265, %v1267
      %v1269 = vrot.slane %v1253, %v1268
      %v1271 = vunpack.c.l.s4 1966171168
      %v1272 = vunpack.c.0.s8 %v1271
      %v1273 = vlaneseq
      %v1274 = vshrl.u32 %v1273, 7
      %v1275 = vsub.s32 %v1272, %v1274
      %v1276 = vrot.slane %v1260, %v1275
      %v1278 = vunpack.c.l.s4 1966171168
      %v1279 = vunpack.c.0.s8 %v1278
      %v1280 = vlaneseq
      %v1281 = vshrl.u32 %v1280, 7
      %v1282 = vsub.s32 %v1279, %v1281
      %v1283 = vrot.slane %v1261, %v1282
      %v1285 = vunpack.c.l.s4 1966171168
      %v1286 = vunpack.c.0.s8 %v1285
      %v1287 = vlaneseq
      %v1288 = vshrl.u32 %v1287, 7
      %v1289 = vsub.s32 %v1286, %v1288
      %v1290 = vrot.slane %v1262, %v1289
      %v1291 = vcombine.high %v1269, %v1269
      %v1292 = vcombine.high %v1276, %v1276
      %v1293 = vcombine.high %v1290, %v1290
      %v1294 = vcombine.high %v1038, %v1038
      %v1296 = vunpack.c.l.s4 1966171168
      %v1297 = vunpack.c.0.s8 %v1296
      %v1298 = vlaneseq
      %v1299 = vshrl.u32 %v1298, 7
      %v1300 = vsub.s32 %v1297, %v1299
      %v1301 = vrot.slane %v1038, %v1300
      %v1303 = vunpack.c.l.s4 1966171168
      %v1304 = vunpack.c.0.s8 %v1303
      %v1305 = vlaneseq
      %v1306 = vshrl.u32 %v1305, 7
      %v1307 = vsub.s32 %v1304, %v1306
      %v1308 = vrot.slane %v1294, %v1307
      %v1309 = vcombine.high %v1301, %v1301
      %v1310 = vcombine.high %v1308, %v1308
      %v1312 = vunpack.c.l.s4 1966171168
      %v1313 = vunpack.c.0.s8 %v1312
      %v1314 = vlaneseq
      %v1315 = vshrl.u32 %v1314, 7
      %v1316 = vsub.s32 %v1313, %v1315
      %v1317 = vrot.slane %v1301, %v1316
      %v1319 = vunpack.c.l.s4 1966171168
      %v1320 = vunpack.c.0.s8 %v1319
      %v1321 = vlaneseq
      %v1322 = vshrl.u32 %v1321, 7
      %v1323 = vsub.s32 %v1320, %v1322
      %v1324 = vrot.slane %v1308, %v1323
      %v1326 = vunpack.c.l.s4 1966171168
      %v1327 = vunpack.c.0.s8 %v1326
      %v1328 = vlaneseq
      %v1329 = vshrl.u32 %v1328, 7
      %v1330 = vsub.s32 %v1327, %v1329
      %v1331 = vrot.slane %v1309, %v1330
      %v1333 = vunpack.c.l.s4 1966171168
      %v1334 = vunpack.c.0.s8 %v1333
      %v1335 = vlaneseq
      %v1336 = vshrl.u32 %v1335, 7
      %v1337 = vsub.s32 %v1334, %v1336
      %v1338 = vrot.slane %v1310, %v1337
      %v1339 = vcombine.high %v1317, %v1317
      %v1340 = vcombine.high %v1324, %v1324
      %v1341 = vcombine.high %v1331, %v1331
      %v1342 = vcombine.high %v1338, %v1338
      %v1343 = vcombine.high %v1039, %v1039
      %v1345 = vunpack.c.l.s4 1966171168
      %v1346 = vunpack.c.0.s8 %v1345
      %v1347 = vlaneseq
      %v1348 = vshrl.u32 %v1347, 7
      %v1349 = vsub.s32 %v1346, %v1348
      %v1350 = vrot.slane %v1039, %v1349
      %v1352 = vunpack.c.l.s4 1966171168
      %v1353 = vunpack.c.0.s8 %v1352
      %v1354 = vlaneseq
      %v1355 = vshrl.u32 %v1354, 7
      %v1356 = vsub.s32 %v1353, %v1355
      %v1357 = vrot.slane %v1343, %v1356
      %v1358 = vcombine.high %v1350, %v1350
      %v1359 = vcombine.high %v1357, %v1357
      %v1361 = vunpack.c.l.s4 1966171168
      %v1362 = vunpack.c.0.s8 %v1361
      %v1363 = vlaneseq
      %v1364 = vshrl.u32 %v1363, 7
      %v1365 = vsub.s32 %v1362, %v1364
      %v1366 = vrot.slane %v1350, %v1365
      %v1368 = vunpack.c.l.s4 1966171168
      %v1369 = vunpack.c.0.s8 %v1368
      %v1370 = vlaneseq
      %v1371 = vshrl.u32 %v1370, 7
      %v1372 = vsub.s32 %v1369, %v1371
      %v1373 = vrot.slane %v1357, %v1372
      %v1375 = vunpack.c.l.s4 1966171168
      %v1376 = vunpack.c.0.s8 %v1375
      %v1377 = vlaneseq
      %v1378 = vshrl.u32 %v1377, 7
      %v1379 = vsub.s32 %v1376, %v1378
      %v1380 = vrot.slane %v1358, %v1379
      %v1382 = vunpack.c.l.s4 1966171168
      %v1383 = vunpack.c.0.s8 %v1382
      %v1384 = vlaneseq
      %v1385 = vshrl.u32 %v1384, 7
      %v1386 = vsub.s32 %v1383, %v1385
      %v1387 = vrot.slane %v1359, %v1386
      %v1388 = vcombine.high %v1366, %v1366
      %v1389 = vcombine.high %v1373, %v1373
      %v1390 = vcombine.high %v1380, %v1380
      %v1391 = vcombine.high %v1387, %v1387
      %v1392 = vcombine.high %v1040, %v1040
      %v1394 = vunpack.c.l.s4 1966171168
      %v1395 = vunpack.c.0.s8 %v1394
      %v1396 = vlaneseq
      %v1397 = vshrl.u32 %v1396, 7
      %v1398 = vsub.s32 %v1395, %v1397
      %v1399 = vrot.slane %v1040, %v1398
      %v1401 = vunpack.c.l.s4 1966171168
      %v1402 = vunpack.c.0.s8 %v1401
      %v1403 = vlaneseq
      %v1404 = vshrl.u32 %v1403, 7
      %v1405 = vsub.s32 %v1402, %v1404
      %v1406 = vrot.slane %v1392, %v1405
      %v1407 = vcombine.high %v1399, %v1399
      %v1408 = vcombine.high %v1406, %v1406
      %v1410 = vunpack.c.l.s4 1966171168
      %v1411 = vunpack.c.0.s8 %v1410
      %v1412 = vlaneseq
      %v1413 = vshrl.u32 %v1412, 7
      %v1414 = vsub.s32 %v1411, %v1413
      %v1415 = vrot.slane %v1399, %v1414
      %v1417 = vunpack.c.l.s4 1966171168
      %v1418 = vunpack.c.0.s8 %v1417
      %v1419 = vlaneseq
      %v1420 = vshrl.u32 %v1419, 7
      %v1421 = vsub.s32 %v1418, %v1420
      %v1422 = vrot.slane %v1406, %v1421
      %v1424 = vunpack.c.l.s4 1966171168
      %v1425 = vunpack.c.0.s8 %v1424
      %v1426 = vlaneseq
      %v1427 = vshrl.u32 %v1426, 7
      %v1428 = vsub.s32 %v1425, %v1427
      %v1429 = vrot.slane %v1407, %v1428
      %v1431 = vunpack.c.l.s4 1966171168
      %v1432 = vunpack.c.0.s8 %v1431
      %v1433 = vlaneseq
      %v1434 = vshrl.u32 %v1433, 7
      %v1435 = vsub.s32 %v1432, %v1434
      %v1436 = vrot.slane %v1408, %v1435
      %v1437 = vcombine.high %v1415, %v1415
      %v1438 = vcombine.high %v1429, %v1429
      %v1439 = vcombine.high %v1436, %v1436
      %v1440 = vcombine.high %v1041, %v1041
      %v1442 = vunpack.c.l.s4 1966171168
      %v1443 = vunpack.c.0.s8 %v1442
      %v1444 = vlaneseq
      %v1445 = vshrl.u32 %v1444, 7
      %v1446 = vsub.s32 %v1443, %v1445
      %v1447 = vrot.slane %v1041, %v1446
      %v1449 = vunpack.c.l.s4 1966171168
      %v1450 = vunpack.c.0.s8 %v1449
      %v1451 = vlaneseq
      %v1452 = vshrl.u32 %v1451, 7
      %v1453 = vsub.s32 %v1450, %v1452
      %v1454 = vrot.slane %v1440, %v1453
      %v1455 = vcombine.high %v1447, %v1447
      %v1456 = vcombine.high %v1454, %v1454
      %v1458 = vunpack.c.l.s4 1966171168
      %v1459 = vunpack.c.0.s8 %v1458
      %v1460 = vlaneseq
      %v1461 = vshrl.u32 %v1460, 7
      %v1462 = vsub.s32 %v1459, %v1461
      %v1463 = vrot.slane %v1447, %v1462
      %v1465 = vunpack.c.l.s4 1966171168
      %v1466 = vunpack.c.0.s8 %v1465
      %v1467 = vlaneseq
      %v1468 = vshrl.u32 %v1467, 7
      %v1469 = vsub.s32 %v1466, %v1468
      %v1470 = vrot.slane %v1454, %v1469
      %v1472 = vunpack.c.l.s4 1966171168
      %v1473 = vunpack.c.0.s8 %v1472
      %v1474 = vlaneseq
      %v1475 = vshrl.u32 %v1474, 7
      %v1476 = vsub.s32 %v1473, %v1475
      %v1477 = vrot.slane %v1455, %v1476
      %v1479 = vunpack.c.l.s4 1966171168
      %v1480 = vunpack.c.0.s8 %v1479
      %v1481 = vlaneseq
      %v1482 = vshrl.u32 %v1481, 7
      %v1483 = vsub.s32 %v1480, %v1482
      %v1484 = vrot.slane %v1456, %v1483
      %v1485 = vcombine.high %v1463, %v1463
      %v1486 = vcombine.high %v1470, %v1470
      %v1487 = vcombine.high %v1477, %v1477
      %v1488 = vcombine.low %v1074, %v1088
      %v1489 = vcombine.low %v1096, %v1098
      %v1490 = vcombine.low %v1081, %v1095
      %v1491 = vcombine.low %v1097, %v1099
      %v1493 = vunpack.c.l.s4 1966171168
      %v1494 = vunpack.c.0.s8 %v1493
      %v1495 = vlaneseq
      %v1496 = vshrl.u32 %v1495, 7
      %v1497 = vsub.s32 %v1494, %v1496
      %v1498 = vrot.slane %v1488, %v1497
      %v1500 = vunpack.c.l.s4 1966171168
      %v1501 = vunpack.c.0.s8 %v1500
      %v1502 = vlaneseq
      %v1503 = vshrl.u32 %v1502, 7
      %v1504 = vsub.s32 %v1501, %v1503
      %v1505 = vrot.slane %v1489, %v1504
      %v1507 = vunpack.c.l.s4 1966171168
      %v1508 = vunpack.c.0.s8 %v1507
      %v1509 = vlaneseq
      %v1510 = vshrl.u32 %v1509, 7
      %v1511 = vsub.s32 %v1508, %v1510
      %v1512 = vrot.slane %v1490, %v1511
      %v1514 = vunpack.c.l.s4 1966171168
      %v1515 = vunpack.c.0.s8 %v1514
      %v1516 = vlaneseq
      %v1517 = vshrl.u32 %v1516, 7
      %v1518 = vsub.s32 %v1515, %v1517
      %v1519 = vrot.slane %v1491, %v1518
      %v1520 = vcombine.low %v1498, %v1505
      %v1521 = vcombine.low %v1512, %v1519
      %v1523 = vunpack.c.l.s4 1966171168
      %v1524 = vunpack.c.0.s8 %v1523
      %v1525 = vlaneseq
      %v1526 = vshrl.u32 %v1525, 7
      %v1527 = vsub.s32 %v1524, %v1526
      %v1528 = vrot.slane %v1520, %v1527
      %v1530 = vunpack.c.l.s4 1966171168
      %v1531 = vunpack.c.0.s8 %v1530
      %v1532 = vlaneseq
      %v1533 = vshrl.u32 %v1532, 7
      %v1534 = vsub.s32 %v1531, %v1533
      %v1535 = vrot.slane %v1521, %v1534
      %v1536 = vcombine.low %v1528, %v1535
      %v1537 = vcombine.low %v1137, %v1145
      %v1538 = vcombine.low %v1147, %v1130
      %v1539 = vcombine.low %v1144, %v1146
      %v1540 = vcombine.low %v1148, %v1172
      %v1542 = vunpack.c.l.s4 1966171168
      %v1543 = vunpack.c.0.s8 %v1542
      %v1544 = vlaneseq
      %v1545 = vshrl.u32 %v1544, 7
      %v1546 = vsub.s32 %v1543, %v1545
      %v1547 = vrot.slane %v1537, %v1546
      %v1549 = vunpack.c.l.s4 1966171168
      %v1550 = vunpack.c.0.s8 %v1549
      %v1551 = vlaneseq
      %v1552 = vshrl.u32 %v1551, 7
      %v1553 = vsub.s32 %v1550, %v1552
      %v1554 = vrot.slane %v1538, %v1553
      %v1556 = vunpack.c.l.s4 1966171168
      %v1557 = vunpack.c.0.s8 %v1556
      %v1558 = vlaneseq
      %v1559 = vshrl.u32 %v1558, 7
      %v1560 = vsub.s32 %v1557, %v1559
      %v1561 = vrot.slane %v1539, %v1560
      %v1563 = vunpack.c.l.s4 1966171168
      %v1564 = vunpack.c.0.s8 %v1563
      %v1565 = vlaneseq
      %v1566 = vshrl.u32 %v1565, 7
      %v1567 = vsub.s32 %v1564, %v1566
      %v1568 = vrot.slane %v1540, %v1567
      %v1569 = vcombine.low %v1547, %v1554
      %v1570 = vcombine.low %v1561, %v1568
      %v1572 = vunpack.c.l.s4 1966171168
      %v1573 = vunpack.c.0.s8 %v1572
      %v1574 = vlaneseq
      %v1575 = vshrl.u32 %v1574, 7
      %v1576 = vsub.s32 %v1573, %v1575
      %v1577 = vrot.slane %v1569, %v1576
      %v1579 = vunpack.c.l.s4 1966171168
      %v1580 = vunpack.c.0.s8 %v1579
      %v1581 = vlaneseq
      %v1582 = vshrl.u32 %v1581, 7
      %v1583 = vsub.s32 %v1580, %v1582
      %v1584 = vrot.slane %v1570, %v1583
      %v1585 = vcombine.low %v1577, %v1584
      %v1586 = vcombine.low %v1194, %v1196
      %v1587 = vcombine.low %v1179, %v1193
      %v1588 = vcombine.low %v1195, %v1197
      %v1589 = vcombine.low %v1221, %v1235
      %v1591 = vunpack.c.l.s4 1966171168
      %v1592 = vunpack.c.0.s8 %v1591
      %v1593 = vlaneseq
      %v1594 = vshrl.u32 %v1593, 7
      %v1595 = vsub.s32 %v1592, %v1594
      %v1596 = vrot.slane %v1586, %v1595
      %v1598 = vunpack.c.l.s4 1966171168
      %v1599 = vunpack.c.0.s8 %v1598
      %v1600 = vlaneseq
      %v1601 = vshrl.u32 %v1600, 7
      %v1602 = vsub.s32 %v1599, %v1601
      %v1603 = vrot.slane %v1587, %v1602
      %v1605 = vunpack.c.l.s4 1966171168
      %v1606 = vunpack.c.0.s8 %v1605
      %v1607 = vlaneseq
      %v1608 = vshrl.u32 %v1607, 7
      %v1609 = vsub.s32 %v1606, %v1608
      %v1610 = vrot.slane %v1588, %v1609
      %v1612 = vunpack.c.l.s4 1966171168
      %v1613 = vunpack.c.0.s8 %v1612
      %v1614 = vlaneseq
      %v1615 = vshrl.u32 %v1614, 7
      %v1616 = vsub.s32 %v1613, %v1615
      %v1617 = vrot.slane %v1589, %v1616
      %v1618 = vcombine.low %v1596, %v1603
      %v1619 = vcombine.low %v1610, %v1617
      %v1621 = vunpack.c.l.s4 1966171168
      %v1622 = vunpack.c.0.s8 %v1621
      %v1623 = vlaneseq
      %v1624 = vshrl.u32 %v1623, 7
      %v1625 = vsub.s32 %v1622, %v1624
      %v1626 = vrot.slane %v1618, %v1625
      %v1628 = vunpack.c.l.s4 1966171168
      %v1629 = vunpack.c.0.s8 %v1628
      %v1630 = vlaneseq
      %v1631 = vshrl.u32 %v1630, 7
      %v1632 = vsub.s32 %v1629, %v1631
      %v1633 = vrot.slane %v1619, %v1632
      %v1634 = vcombine.low %v1626, %v1633
      %v1635 = vcombine.low %v1244, %v1228
      %v1636 = vcombine.low %v1242, %v1243
      %v1637 = vcombine.low %v1245, %v1269
      %v1638 = vcombine.low %v1283, %v1291
      %v1640 = vunpack.c.l.s4 1966171168
      %v1641 = vunpack.c.0.s8 %v1640
      %v1642 = vlaneseq
      %v1643 = vshrl.u32 %v1642, 7
      %v1644 = vsub.s32 %v1641, %v1643
      %v1645 = vrot.slane %v1635, %v1644
      %v1647 = vunpack.c.l.s4 1966171168
      %v1648 = vunpack.c.0.s8 %v1647
      %v1649 = vlaneseq
      %v1650 = vshrl.u32 %v1649, 7
      %v1651 = vsub.s32 %v1648, %v1650
      %v1652 = vrot.slane %v1636, %v1651
      %v1654 = vunpack.c.l.s4 1966171168
      %v1655 = vunpack.c.0.s8 %v1654
      %v1656 = vlaneseq
      %v1657 = vshrl.u32 %v1656, 7
      %v1658 = vsub.s32 %v1655, %v1657
      %v1659 = vrot.slane %v1637, %v1658
      %v1661 = vunpack.c.l.s4 1966171168
      %v1662 = vunpack.c.0.s8 %v1661
      %v1663 = vlaneseq
      %v1664 = vshrl.u32 %v1663, 7
      %v1665 = vsub.s32 %v1662, %v1664
      %v1666 = vrot.slane %v1638, %v1665
      %v1667 = vcombine.low %v1645, %v1652
      %v1668 = vcombine.low %v1659, %v1666
      %v1670 = vunpack.c.l.s4 1966171168
      %v1671 = vunpack.c.0.s8 %v1670
      %v1672 = vlaneseq
      %v1673 = vshrl.u32 %v1672, 7
      %v1674 = vsub.s32 %v1671, %v1673
      %v1675 = vrot.slane %v1667, %v1674
      %v1677 = vunpack.c.l.s4 1966171168
      %v1678 = vunpack.c.0.s8 %v1677
      %v1679 = vlaneseq
      %v1680 = vshrl.u32 %v1679, 7
      %v1681 = vsub.s32 %v1678, %v1680
      %v1682 = vrot.slane %v1668, %v1681
      %v1683 = vcombine.low %v1675, %v1682
      %v1684 = vcombine.low %v1276, %v1290
      %v1685 = vcombine.low %v1292, %v1293
      %v1686 = vcombine.low %v1317, %v1331
      %v1687 = vcombine.low %v1339, %v1341
      %v1689 = vunpack.c.l.s4 1966171168
      %v1690 = vunpack.c.0.s8 %v1689
      %v1691 = vlaneseq
      %v1692 = vshrl.u32 %v1691, 7
      %v1693 = vsub.s32 %v1690, %v1692
      %v1694 = vrot.slane %v1684, %v1693
      %v1696 = vunpack.c.l.s4 1966171168
      %v1697 = vunpack.c.0.s8 %v1696
      %v1698 = vlaneseq
      %v1699 = vshrl.u32 %v1698, 7
      %v1700 = vsub.s32 %v1697, %v1699
      %v1701 = vrot.slane %v1685, %v1700
      %v1703 = vunpack.c.l.s4 1966171168
      %v1704 = vunpack.c.0.s8 %v1703
      %v1705 = vlaneseq
      %v1706 = vshrl.u32 %v1705, 7
      %v1707 = vsub.s32 %v1704, %v1706
      %v1708 = vrot.slane %v1686, %v1707
      %v1710 = vunpack.c.l.s4 1966171168
      %v1711 = vunpack.c.0.s8 %v1710
      %v1712 = vlaneseq
      %v1713 = vshrl.u32 %v1712, 7
      %v1714 = vsub.s32 %v1711, %v1713
      %v1715 = vrot.slane %v1687, %v1714
      %v1716 = vcombine.low %v1694, %v1701
      %v1717 = vcombine.low %v1708, %v1715
      %v1719 = vunpack.c.l.s4 1966171168
      %v1720 = vunpack.c.0.s8 %v1719
      %v1721 = vlaneseq
      %v1722 = vshrl.u32 %v1721, 7
      %v1723 = vsub.s32 %v1720, %v1722
      %v1724 = vrot.slane %v1716, %v1723
      %v1726 = vunpack.c.l.s4 1966171168
      %v1727 = vunpack.c.0.s8 %v1726
      %v1728 = vlaneseq
      %v1729 = vshrl.u32 %v1728, 7
      %v1730 = vsub.s32 %v1727, %v1729
      %v1731 = vrot.slane %v1717, %v1730
      %v1732 = vcombine.low %v1724, %v1731
      %v1733 = vcombine.low %v1338, %v1340
      %v1734 = vcombine.low %v1342, %v1366
      %v1735 = vcombine.low %v1380, %v1388
      %v1736 = vcombine.low %v1390, %v1373
      %v1738 = vunpack.c.l.s4 1966171168
      %v1739 = vunpack.c.0.s8 %v1738
      %v1740 = vlaneseq
      %v1741 = vshrl.u32 %v1740, 7
      %v1742 = vsub.s32 %v1739, %v1741
      %v1743 = vrot.slane %v1733, %v1742
      %v1745 = vunpack.c.l.s4 1966171168
      %v1746 = vunpack.c.0.s8 %v1745
      %v1747 = vlaneseq
      %v1748 = vshrl.u32 %v1747, 7
      %v1749 = vsub.s32 %v1746, %v1748
      %v1750 = vrot.slane %v1734, %v1749
      %v1752 = vunpack.c.l.s4 1966171168
      %v1753 = vunpack.c.0.s8 %v1752
      %v1754 = vlaneseq
      %v1755 = vshrl.u32 %v1754, 7
      %v1756 = vsub.s32 %v1753, %v1755
      %v1757 = vrot.slane %v1735, %v1756
      %v1759 = vunpack.c.l.s4 1966171168
      %v1760 = vunpack.c.0.s8 %v1759
      %v1761 = vlaneseq
      %v1762 = vshrl.u32 %v1761, 7
      %v1763 = vsub.s32 %v1760, %v1762
      %v1764 = vrot.slane %v1736, %v1763
      %v1765 = vcombine.low %v1743, %v1750
      %v1766 = vcombine.low %v1757, %v1764
      %v1768 = vunpack.c.l.s4 1966171168
      %v1769 = vunpack.c.0.s8 %v1768
      %v1770 = vlaneseq
      %v1771 = vshrl.u32 %v1770, 7
      %v1772 = vsub.s32 %v1769, %v1771
      %v1773 = vrot.slane %v1765, %v1772
      %v1775 = vunpack.c.l.s4 1966171168
      %v1776 = vunpack.c.0.s8 %v1775
      %v1777 = vlaneseq
      %v1778 = vshrl.u32 %v1777, 7
      %v1779 = vsub.s32 %v1776, %v1778
      %v1780 = vrot.slane %v1766, %v1779
      %v1781 = vcombine.low %v1773, %v1780
      %v1782 = vcombine.low %v1389, %v1391
      %v1783 = vcombine.low %v1415, %v1429
      %v1784 = vcombine.low %v1437, %v1438
      %v1785 = vcombine.low %v1422, %v1436
      %v1787 = vunpack.c.l.s4 1966171168
      %v1788 = vunpack.c.0.s8 %v1787
      %v1789 = vlaneseq
      %v1790 = vshrl.u32 %v1789, 7
      %v1791 = vsub.s32 %v1788, %v1790
      %v1792 = vrot.slane %v1782, %v1791
      %v1794 = vunpack.c.l.s4 1966171168
      %v1795 = vunpack.c.0.s8 %v1794
      %v1796 = vlaneseq
      %v1797 = vshrl.u32 %v1796, 7
      %v1798 = vsub.s32 %v1795, %v1797
      %v1799 = vrot.slane %v1783, %v1798
      %v1801 = vunpack.c.l.s4 1966171168
      %v1802 = vunpack.c.0.s8 %v1801
      %v1803 = vlaneseq
      %v1804 = vshrl.u32 %v1803, 7
      %v1805 = vsub.s32 %v1802, %v1804
      %v1806 = vrot.slane %v1784, %v1805
      %v1808 = vunpack.c.l.s4 1966171168
      %v1809 = vunpack.c.0.s8 %v1808
      %v1810 = vlaneseq
      %v1811 = vshrl.u32 %v1810, 7
      %v1812 = vsub.s32 %v1809, %v1811
      %v1813 = vrot.slane %v1785, %v1812
      %v1814 = vcombine.low %v1792, %v1799
      %v1815 = vcombine.low %v1806, %v1813
      %v1817 = vunpack.c.l.s4 1966171168
      %v1818 = vunpack.c.0.s8 %v1817
      %v1819 = vlaneseq
      %v1820 = vshrl.u32 %v1819, 7
      %v1821 = vsub.s32 %v1818, %v1820
      %v1822 = vrot.slane %v1814, %v1821
      %v1824 = vunpack.c.l.s4 1966171168
      %v1825 = vunpack.c.0.s8 %v1824
      %v1826 = vlaneseq
      %v1827 = vshrl.u32 %v1826, 7
      %v1828 = vsub.s32 %v1825, %v1827
      %v1829 = vrot.slane %v1815, %v1828
      %v1830 = vcombine.low %v1822, %v1829
      %v1831 = vcombine.low %v1439, %v1463
      %v1832 = vcombine.low %v1477, %v1485
      %v1833 = vcombine.low %v1487, %v1470
      %v1834 = vcombine.low %v1484, %v1486
      %v1836 = vunpack.c.l.s4 1966171168
      %v1837 = vunpack.c.0.s8 %v1836
      %v1838 = vlaneseq
      %v1839 = vshrl.u32 %v1838, 7
      %v1840 = vsub.s32 %v1837, %v1839
      %v1841 = vrot.slane %v1831, %v1840
      %v1843 = vunpack.c.l.s4 1966171168
      %v1844 = vunpack.c.0.s8 %v1843
      %v1845 = vlaneseq
      %v1846 = vshrl.u32 %v1845, 7
      %v1847 = vsub.s32 %v1844, %v1846
      %v1848 = vrot.slane %v1832, %v1847
      %v1850 = vunpack.c.l.s4 1966171168
      %v1851 = vunpack.c.0.s8 %v1850
      %v1852 = vlaneseq
      %v1853 = vshrl.u32 %v1852, 7
      %v1854 = vsub.s32 %v1851, %v1853
      %v1855 = vrot.slane %v1833, %v1854
      %v1857 = vunpack.c.l.s4 1966171168
      %v1858 = vunpack.c.0.s8 %v1857
      %v1859 = vlaneseq
      %v1860 = vshrl.u32 %v1859, 7
      %v1861 = vsub.s32 %v1858, %v1860
      %v1862 = vrot.slane %v1834, %v1861
      %v1863 = vcombine.low %v1841, %v1848
      %v1864 = vcombine.low %v1855, %v1862
      %v1866 = vunpack.c.l.s4 1966171168
      %v1867 = vunpack.c.0.s8 %v1866
      %v1868 = vlaneseq
      %v1869 = vshrl.u32 %v1868, 7
      %v1870 = vsub.s32 %v1867, %v1869
      %v1871 = vrot.slane %v1863, %v1870
      %v1873 = vunpack.c.l.s4 1966171168
      %v1874 = vunpack.c.0.s8 %v1873
      %v1875 = vlaneseq
      %v1876 = vshrl.u32 %v1875, 7
      %v1877 = vsub.s32 %v1874, %v1876
      %v1878 = vrot.slane %v1864, %v1877
      %v1879 = vcombine.low %v1871, %v1878
      %v1888 = vpack.c.bf16 %v1585, %v1536
      %v1889 = vpack.c.bf16 %v1683, %v1634
      %v1890 = vpack.c.bf16 %v1781, %v1732
      %v1891 = vpack.c.bf16 %v1879, %v1830
      %v1896 = vunpack.c.l.b16 %v1888
      %v1897 = vunpack.c.h.b16 %v1888
      %v1898 = vunpack.c.l.b16 %v1889
      %v1899 = vunpack.c.h.b16 %v1889
      %v1900 = vunpack.c.l.b16 %v1890
      %v1901 = vunpack.c.h.b16 %v1890
      %v1902 = vunpack.c.l.b16 %v1891
      %v1903 = vunpack.c.h.b16 %v1891
      %v1904 = vpack.c.b16 %v1896, %v1896
      %v1905 = vpack.c.b16 %v1897, %v1897
      %v1906 = vpack.c.b16 %v1898, %v1898
      %v1907 = vpack.c.b16 %v1899, %v1899
      %v1908 = vpack.c.b16 %v1900, %v1900
      %v1909 = vpack.c.b16 %v1901, %v1901
      %v1910 = vpack.c.b16 %v1902, %v1902
      %v1911 = vpack.c.b16 %v1903, %v1903
      %vm1920 = vcmask 125952
      %1921 = vst.msk [vmem:[%s206] sm:$0xf] %vm1920, %v1904
      %1922 = vst.msk [vmem:[%s206 + $0x4] sm:$0xf] %vm1920, %v1905
      %1923 = vst.msk [vmem:[%s206 + $0x8] sm:$0xf] %vm1920, %v1906
      %1924 = vst.msk [vmem:[%s206 + $0xc] sm:$0xf] %vm1920, %v1907
      %1925 = vst.msk [vmem:[%s206 + $0x10] sm:$0xf] %vm1920, %v1908
      %1926 = vst.msk [vmem:[%s206 + $0x14] sm:$0xf] %vm1920, %v1909
      %1927 = vst.msk [vmem:[%s206 + $0x18] sm:$0xf] %vm1920, %v1910
      %1928 = vst.msk [vmem:[%s206 + $0x1c] sm:$0xf] %vm1920, %v1911
      %p1929 = scmp.lt.s32.totalorder %s18, 1
      %s1930 = scalar_select %p1929, %s18, 1
      %p1931 = scmp.lt.s32.totalorder %s19, 0
      %s1932 = scalar_select %p1931, %s19, 0
      %s1933 = smul.addr %s1932, 8
      %s1934 = smul.addr %s1930, 8
      %s1935 = sadd.s32 %s1933, %s1934
      %s1936 = smul.addr %s1935, 4
      %s1937 = scalar_lea.vmem %s3, %s1936
      // Predicated region
      $region33: #{simple_cnn_forward.3} parent=31 // pred_check
        %p1938 = pneg %p116
      $region34: #{simple_cnn_forward.3} parent=31 // pred_check_branch
        %1940 = sbr.rel (%p1938) target = $region36
      $region35: #{simple_cnn_forward.3} parent=31 // pred_region
        _
      $region36: #{simple_cnn_forward.3} parent=31 // pred_fallthru
        _
    $region32: #{simple_cnn_forward.3} parent=5 // pred_fallthru
      _
    %p1941 = scmp.le.s32.totalorder 2, %s9
    // Predicated region
    $region37: #{simple_cnn_forward.3} parent=5 // pred_check
      %p1942 = pneg %p1941
    $region38: #{simple_cnn_forward.3} parent=5 // pred_check_branch
      %1944 = sbr.rel (%p1942) target = $region40
    $region39: #{simple_cnn_forward.3} parent=5 // pred_region
      %s1945 = ssub.s32 %s9, 2
      // Predicated region
      $region41: #{simple_cnn_forward.3} parent=39 // pred_check
        %p1946 = pneg %p122
      $region42: #{simple_cnn_forward.3} parent=39 // pred_check_branch
        %1948 = sbr.rel (%p1946) target = $region44
      $region43: #{simple_cnn_forward.3} parent=39 // pred_region
        %p1949 = scmp.lt.s32.totalorder %s20, 1
        %s1950 = scalar_select %p1949, %s20, 1
        %p1951 = scmp.lt.s32.totalorder %s21, 0
        %s1952 = scalar_select %p1951, %s21, 0
        %s1953 = smul.addr %s1952, 8
        %s1954 = smul.addr %s1950, 8
        %s1955 = sadd.s32 %s1953, %s1954
        %s1956 = smul.addr %s1955, 4
        %s1957 = scalar_lea.vmem %s3, %s1956
      $region44: #{simple_cnn_forward.3} parent=39 // pred_fallthru
        _
    $region40: #{simple_cnn_forward.3} parent=5 // pred_fallthru
      _
  $region6: #{simple_cnn_forward.3} parent=0 // loop_footer
    %s13 = sadd.s32 1, %s9
  $region7: #{simple_cnn_forward.3} parent=0 // loop_footer_branch
    %8 = sbr.rel target = $region3
  $region8: #{simple_cnn_forward.3} parent=0 // loop_exit
    _

// kernel: simple_cnn_forward.4
$region0: #{simple_cnn_forward.4}
  #allocation0 [shape = 'u32[]', space=smem, size = 0x4, offset = 0x4, fixed_abs, tag = 'smem constant byte address 0x4 - core index']
  #allocation1 [shape = 'u32[144,128]{1,0:T(1,128)}', space=vmem, size = 0x12000, scoped, tag = 'internal scratch']
  #allocation2 [shape = 'f32[20,128]{1,0:T(8,128)}', space=vmem, size = 0x3000, scoped, tag = 'scratch operand']
  %s0 = inlined_call_operand.vmem [shape: bf16[2,1,32,64], index: 0, kind: input, shape index: {}]
  %s1 = inlined_call_operand.vmem [shape: bf16[4,64,128], index: 1, kind: input, shape index: {}]
  %s2 = inlined_call_operand.vmem [shape: f32[1,32], index: 2, kind: input, shape index: {}]
  %s3 = inlined_call_operand.vmem [shape: bf16[2,1,16,32], index: 3, kind: output, shape index: {}]
  %s4 = sld [smem:[#allocation0]]
  $region45: #{simple_cnn_forward.4} parent=0
    _
  %s6 = ssub.s32 1, %s4
  %s7 = scalar_select 0, %s6, %s4
  loop: start=0, step=1, limit=4
  $region2: #{simple_cnn_forward.4} parent=0 // loop_pre_header
    _
  $region3: #{simple_cnn_forward.4} parent=0 // loop_header
    %s9 = sphi 0, %s13
    %p10 = scmp.ge.s32.totalorder %s9, 4
    %s16 = sphi 0, %s28
    %s17 = sphi 0, %s24
    %s18 = sphi 0, %s16
    %s19 = sphi 0, %s17
    %s20 = sphi 0, %s18
    %s21 = sphi 0, %s19
    %s33 = sphi 0, %s35
    %s36 = sphi 0, %s33
    %s37 = sphi 0, %s36
    %s53 = sphi 0, %s37
    %s57 = sphi 0, %s57
    %s59 = sphi 0, %s57
    %s60 = sphi 0, %s59
    %s74 = sphi 0, %s60
    %s78 = sphi 0, %s78
    %s80 = sphi 0, %s78
    %s81 = sphi 0, %s80
    %s95 = sphi 0, %s81
    %s103 = sphi 0, %s105
    %s106 = sphi 0, %s103
    %s107 = sphi 0, %s106
    %s123 = sphi 0, %s107
  $region4: #{simple_cnn_forward.4} parent=0 // loop_header_branch
    %12 = sbr.rel (%p10) target = $region8
  $region5: #{simple_cnn_forward.4} parent=0 // loop_body
    %s14 = ssub.s32 %s9, 1
    %s15 = ssub.s32 %s9, 2
    %s22 = sadd.s32 1, %s17
    %p23 = scmp.ge.s32.totalorder %s22, 1
    %s24 = scalar_select %p23, 0, %s22
    %s25 = sadd.s32 1, %s16
    %s26 = scalar_select %p23, %s25, %s16
    %p27 = scmp.ge.s32.totalorder %s26, 2
    %s28 = scalar_select %p27, 0, %s26
    %s29 = ssub.s32 %s16, %s28
    %s30 = ssub.s32 %s17, %s24
    %s31 = sor.u32 %s29, %s30
    %p32 = scmp.eq.s32.totalorder %s31, 0
    %s34 = sadd.s32 %s33, 1
    %s35 = scalar_select %p32, %s33, %s34
    %p38 = pneg %p32
    %p39 = scmp.eq.s32.totalorder %s9, 1
    %p40 = por %p38, %p39
    %p41 = scmp.ne.s32.totalorder %s33, %s36
    %p42 = scmp.eq.s32.totalorder %s9, 0
    %p43 = por %p41, %p42
    %p44 = scmp.ne.s32.totalorder %s33, %s36
    %p45 = scmp.eq.s32.totalorder %s14, 1
    %p46 = por %p44, %p45
    %p47 = scmp.ne.s32.totalorder %s36, %s37
    %p48 = scmp.eq.s32.totalorder %s14, 0
    %p49 = por %p47, %p48
    %p50 = scmp.ne.s32.totalorder %s36, %s37
    %p51 = scmp.eq.s32.totalorder %s15, 1
    %p52 = por %p50, %p51
    %p54 = scmp.ne.s32.totalorder %s37, %s53
    %p55 = scmp.eq.s32.totalorder %s15, 0
    %p56 = por %p54, %p55
    %s58 = sadd.s32 %s57, 1
    %p61 = scmp.eq.s32.totalorder %s9, 1
    %p62 = scmp.ne.s32.totalorder %s57, %s59
    %p63 = scmp.eq.s32.totalorder %s9, 0
    %p64 = por %p62, %p63
    %p65 = scmp.ne.s32.totalorder %s57, %s59
    %p66 = scmp.eq.s32.totalorder %s14, 1
    %p67 = por %p65, %p66
    %p68 = scmp.ne.s32.totalorder %s59, %s60
    %p69 = scmp.eq.s32.totalorder %s14, 0
    %p70 = por %p68, %p69
    %p71 = scmp.ne.s32.totalorder %s59, %s60
    %p72 = scmp.eq.s32.totalorder %s15, 1
    %p73 = por %p71, %p72
    %p75 = scmp.ne.s32.totalorder %s60, %s74
    %p76 = scmp.eq.s32.totalorder %s15, 0
    %p77 = por %p75, %p76
    %s79 = sadd.s32 %s78, 1
    %p82 = scmp.eq.s32.totalorder %s9, 1
    %p83 = scmp.ne.s32.totalorder %s78, %s80
    %p84 = scmp.eq.s32.totalorder %s9, 0
    %p85 = por %p83, %p84
    %p86 = scmp.ne.s32.totalorder %s78, %s80
    %p87 = scmp.eq.s32.totalorder %s14, 1
    %p88 = por %p86, %p87
    %p89 = scmp.ne.s32.totalorder %s80, %s81
    %p90 = scmp.eq.s32.totalorder %s14, 0
    %p91 = por %p89, %p90
    %p92 = scmp.ne.s32.totalorder %s80, %s81
    %p93 = scmp.eq.s32.totalorder %s15, 1
    %p94 = por %p92, %p93
    %p96 = scmp.ne.s32.totalorder %s81, %s95
    %p97 = scmp.eq.s32.totalorder %s15, 0
    %p98 = por %p96, %p97
    %s99 = ssub.s32 %s16, %s28
    %s100 = ssub.s32 %s17, %s24
    %s101 = sor.u32 %s99, %s100
    %p102 = scmp.eq.s32.totalorder %s101, 0
    %s104 = sadd.s32 %s103, 1
    %s105 = scalar_select %p102, %s103, %s104
    %p108 = pneg %p102
    %p109 = scmp.eq.s32.totalorder %s9, 1
    %p110 = por %p108, %p109
    %p111 = scmp.ne.s32.totalorder %s103, %s106
    %p112 = scmp.eq.s32.totalorder %s9, 0
    %p113 = por %p111, %p112
    %p114 = scmp.ne.s32.totalorder %s103, %s106
    %p115 = scmp.eq.s32.totalorder %s14, 1
    %p116 = por %p114, %p115
    %p117 = scmp.ne.s32.totalorder %s106, %s107
    %p118 = scmp.eq.s32.totalorder %s14, 0
    %p119 = por %p117, %p118
    %p120 = scmp.ne.s32.totalorder %s106, %s107
    %p121 = scmp.eq.s32.totalorder %s15, 1
    %p122 = por %p120, %p121
    %p124 = scmp.ne.s32.totalorder %s107, %s123
    %p125 = scmp.eq.s32.totalorder %s15, 0
    %p126 = por %p124, %p125
    %p127 = scmp.le.s32.totalorder 1, %s9
    %p128 = scmp.lt.s32.totalorder %s9, 3
    %p129 = pnand %p127, %p128
    %p130 = pneg %p129
    // Predicated region
    $region9: #{simple_cnn_forward.4} parent=5 // pred_check
      _
    $region10: #{simple_cnn_forward.4} parent=5 // pred_check_branch
      %132 = sbr.rel (%p129) target = $region12
    $region11: #{simple_cnn_forward.4} parent=5 // pred_region
      %s133 = ssub.s32 %s9, 1
      // Predicated region
      $region13: #{simple_cnn_forward.4} parent=11 // pred_check
        %p134 = pneg %p70
      $region14: #{simple_cnn_forward.4} parent=11 // pred_check_branch
        %136 = sbr.rel (%p134) target = $region16
      $region15: #{simple_cnn_forward.4} parent=11 // pred_region
        _
      $region16: #{simple_cnn_forward.4} parent=11 // pred_fallthru
        _
      // Predicated region
      $region17: #{simple_cnn_forward.4} parent=11 // pred_check
        %p137 = pneg %p91
      $region18: #{simple_cnn_forward.4} parent=11 // pred_check_branch
        %139 = sbr.rel (%p137) target = $region20
      $region19: #{simple_cnn_forward.4} parent=11 // pred_region
        _
      $region20: #{simple_cnn_forward.4} parent=11 // pred_fallthru
        _
    $region12: #{simple_cnn_forward.4} parent=5 // pred_fallthru
      _
    %p140 = scmp.lt.s32.totalorder %s9, 2
    // Predicated region
    $region21: #{simple_cnn_forward.4} parent=5 // pred_check
      %p141 = pneg %p140
    $region22: #{simple_cnn_forward.4} parent=5 // pred_check_branch
      %143 = sbr.rel (%p141) target = $region24
    $region23: #{simple_cnn_forward.4} parent=5 // pred_region
      // Predicated region
      $region25: #{simple_cnn_forward.4} parent=23 // pred_check
        %p144 = pneg %p43
      $region26: #{simple_cnn_forward.4} parent=23 // pred_check_branch
        %146 = sbr.rel (%p144) target = $region28
      $region27: #{simple_cnn_forward.4} parent=23 // pred_region
        %p147 = scmp.lt.s32.totalorder %s16, 1
        %s148 = scalar_select %p147, %s16, 1
        %p149 = scmp.lt.s32.totalorder %s17, 0
        %s150 = scalar_select %p149, %s17, 0
        %s151 = smul.addr %s150, 4
        %s152 = smul.addr %s148, 4
        %s153 = sadd.s32 %s151, %s152
        %s154 = smul.addr %s153, 4
        %s155 = scalar_lea.vmem %s0, %s154
      $region28: #{simple_cnn_forward.4} parent=23 // pred_fallthru
        _
    $region24: #{simple_cnn_forward.4} parent=5 // pred_fallthru
      _
    %p156 = scmp.le.s32.totalorder 1, %s9
    %p157 = scmp.lt.s32.totalorder %s9, 3
    %p158 = pnand %p156, %p157
    %p159 = pneg %p158
    // Predicated region
    $region29: #{simple_cnn_forward.4} parent=5 // pred_check
      _
    $region30: #{simple_cnn_forward.4} parent=5 // pred_check_branch
      %161 = sbr.rel (%p158) target = $region32
    $region31: #{simple_cnn_forward.4} parent=5 // pred_region
      %s162 = ssub.s32 %s9, 1
      %p163 = scmp.lt.s32.totalorder %s18, 1
      %s164 = scalar_select %p163, %s18, 1
      %p165 = scmp.lt.s32.totalorder %s19, 0
      %s166 = scalar_select %p165, %s19, 0
      %s167 = smul.addr %s166, 4
      %s168 = smul.addr %s164, 4
      %s169 = sadd.s32 %s167, %s168
      %s170 = smul.addr %s169, 4
      %s171 = scalar_lea.vmem %s0, %s170
      %p172 = pneg %p49
      %p173 = pneg %p46
      %p174 = pneg %p70
      %p175 = pneg %p67
      %p176 = pneg %p91
      %p177 = pneg %p88
      %p178 = pneg %p119
      %p179 = pneg %p116
      %p180 = scmp.lt.s32.totalorder %s18, 1
      %s181 = scalar_select %p180, %s18, 1
      %p182 = scmp.lt.s32.totalorder %s19, 0
      %s183 = scalar_select %p182, %s19, 0
      %s184 = smul.addr %s183, 2
      %s185 = smul.addr %s181, 2
      %s186 = sadd.s32 %s184, %s185
      %s187 = smul.addr %s186, 4
      %s188 = scalar_lea.vmem %s3, %s187
      %p189 = scmp.lt.s32.totalorder %s18, 1
      %s190 = scalar_select %p189, %s18, 1
      %p191 = scmp.lt.s32.totalorder %s19, 0
      %s192 = scalar_select %p191, %s19, 0
      %s193 = smul.addr %s192, 4
      %s194 = smul.addr %s190, 4
      %s195 = sadd.s32 %s193, %s194
      %s196 = smul.addr %s195, 4
      %s197 = scalar_lea.vmem %s0, %s196
      %p198 = scmp.lt.s32.totalorder %s18, 1
      %s199 = scalar_select %p198, %s18, 1
      %p200 = scmp.lt.s32.totalorder %s19, 0
      %s201 = scalar_select %p200, %s19, 0
      %s202 = smul.addr %s201, 2
      %s203 = smul.addr %s199, 2
      %s204 = sadd.s32 %s202, %s203
      %s205 = smul.addr %s204, 4
      %s206 = scalar_lea.vmem %s3, %s205
      %v208 = vld [vmem:[%s197] sm:$0xf]
      %v209 = vld [vmem:[%s197 + $0x4] sm:$0xf]
      %v210 = vld [vmem:[%s197 + $0x8] sm:$0x3]
      %v211 = vld [vmem:[%s1] sm:$0xf]
      %v212 = vld [vmem:[%s1 + $0x4] sm:$0xf]
      %v213 = vld [vmem:[%s1 + $0x8] sm:$0xf]
      %v214 = vld [vmem:[%s1 + $0xc] sm:$0xf]
      %v215 = vld [vmem:[%s1 + $0x10] sm:$0xf]
      %v216 = vld [vmem:[%s1 + $0x14] sm:$0xf]
      %v217 = vld [vmem:[%s1 + $0x18] sm:$0xf]
      %v218 = vld [vmem:[%s1 + $0x1c] sm:$0xf]
      %v222 = vunpack.c.l.b16 %v208
      %v223 = vunpack.c.l.b16 %v209
      %v224 = vunpack.c.l.b16 %v210
      %v225 = vpack.c.b16 %v223, %v222
      %v226 = vpack.c.b16 %v224, %v224
      %v235 = vunpack.c.l.b16 %v211
      %v236 = vunpack.c.l.b16 %v212
      %v237 = vunpack.c.l.b16 %v213
      %v238 = vunpack.c.l.b16 %v214
      %v239 = vunpack.c.l.b16 %v215
      %v240 = vunpack.c.l.b16 %v216
      %v241 = vunpack.c.l.b16 %v217
      %v242 = vunpack.c.l.b16 %v218
      %v243 = vpack.c.b16 %v236, %v235
      %v244 = vpack.c.b16 %v238, %v237
      %v245 = vpack.c.b16 %v240, %v239
      %v246 = vpack.c.b16 %v242, %v241
      %vm251 = vcmask 523264
      %v253 = vsel %vm251, %v225, 0
      %v256 = vsel %vm251, %v226, 0
      %258 = vmatprep.subr.bf16.mxu0 0
      %259 = vmatpush1.bf16.msra.mxu0 %v243
      %260 = vmatprep.subr.bf16.mxu0 0
      %261 = vmatpush1.bf16.msra.mxu0 %v244
      %262 = vmatprep.subr.bf16.mxu0 0
      %263 = vmatpush1.bf16.msra.mxu0 %v245
      %264 = vmatprep.subr.bf16.mxu0 0
      %265 = vmatpush1.bf16.msra.mxu0 %v246
      %266 = vmatprep.subr.bf16.mxu0 0
      %267 = vmatpush1.bf16.msra.mxu0 0
      %268 = vmatprep.subr.bf16.mxu0 0
      %269 = vmatpush1.bf16.msra.mxu0 0
      %270 = vmatprep.subr.bf16.mxu0 0
      %271 = vmatpush1.bf16.msra.mxu0 0
      %272 = vmatprep.subr.bf16.mxu0 0
      %273 = vmatpush1.bf16.msra.mxu0 0
      %274 = vmatprep.subr.bf16.mxu0 0
      %275 = vmatpush1.bf16.msra.mxu0 0
      %276 = vmatprep.subr.bf16.mxu0 0
      %277 = vmatpush1.bf16.msra.mxu0 0
      %278 = vmatprep.subr.bf16.mxu0 0
      %279 = vmatpush1.bf16.msra.mxu0 0
      %280 = vmatprep.subr.bf16.mxu0 0
      %281 = vmatpush1.bf16.msra.mxu0 0
      %282 = vmatprep.subr.bf16.mxu0 0
      %283 = vmatpush1.bf16.msra.mxu0 0
      %284 = vmatprep.subr.bf16.mxu0 0
      %285 = vmatpush1.bf16.msra.mxu0 0
      %286 = vmatprep.subr.bf16.mxu0 0
      %287 = vmatpush1.bf16.msra.mxu0 0
      %288 = vmatprep.subr.bf16.mxu0 0
      %289 = vmatpush1.bf16.msra.mxu0 0
      %290 = vmatprep.mubr.bf16.mxu0 0
      %291 = vmatmul.mubr.bf16.gmra.mrb[0].mxu0 %v253
      %v292 = vpop.f32.mrb[0].mxu0
      %v293 = vadd.f32 0.0, %v292
      %v294 = vpop.f32.mrb[0].mxu0
      %v295 = vpop.f32.mrb[0].mxu0
      %v296 = vadd.f32 0.0, %v295
      %v297 = vpop.f32.mrb[0].mxu0
      %298 = vmatprep.mubr.bf16.mxu0 0
      %299 = vmatmul.mubr.bf16.gmra.mrb[0].mxu0 %v256
      %v300 = vpop.f32.mrb[0].mxu0
      %v301 = vadd.f32 0.0, %v300
      %v302 = vpop.f32.mrb[0].mxu0
      %v303 = vpop.f32.mrb[0].mxu0
      %v304 = vpop.f32.mrb[0].mxu0
      %305 = vdwg.mxu0
      %306 = vst [vmem:[#allocation2] sm:$0xff] %v293
      %307 = vst [vmem:[#allocation2 + $0x8] sm:$0xff] %v296
      %308 = vst [vmem:[#allocation2 + $0x10] sm:$0xf] %v301
      %v309 = vld [vmem:[#allocation2] sm:$0xff]
      %v310 = vld [vmem:[#allocation2 + $0x8] sm:$0xff]
      %v311 = vld [vmem:[#allocation2 + $0x10] sm:$0xf]
      %v312 = vld [vmem:[%s197] sm:$0xf]
      %v313 = vld [vmem:[%s197 + $0x4] sm:$0xf]
      %v314 = vld [vmem:[%s197 + $0x8] sm:$0x7]
      %s315 = scalar_lea.vmem %s1, 32
      %v316 = vld [vmem:[%s315] sm:$0xf]
      %v317 = vld [vmem:[%s315 + $0x4] sm:$0xf]
      %v318 = vld [vmem:[%s315 + $0x8] sm:$0xf]
      %v319 = vld [vmem:[%s315 + $0xc] sm:$0xf]
      %v320 = vld [vmem:[%s315 + $0x10] sm:$0xf]
      %v321 = vld [vmem:[%s315 + $0x14] sm:$0xf]
      %v322 = vld [vmem:[%s315 + $0x18] sm:$0xf]
      %v323 = vld [vmem:[%s315 + $0x1c] sm:$0xf]
      %v327 = vunpack.c.l.b16 %v312
      %v328 = vunpack.c.l.b16 %v313
      %v329 = vunpack.c.l.b16 %v314
      %v330 = vpack.c.b16 %v328, %v327
      %v331 = vpack.c.b16 %v329, %v329
      %vm332 = vsmask.f32 7424
      %v334 = vshrl.u32 %v330, 16
      %v336 = vshll.u32 %v330, 16
      %v338 = vrot.slane %v336, 1
      %v339 = vor.u32 %v334, %v338
      %v341 = vshll.u32 %v331, 16
      %v343 = vrot.slane %v341, 1
      %v344 = vsel %vm332, %v339, %v343
      %v345 = vshrl.u32 %v331, 16
      %v347 = vor.u32 %v345, %v343
      %v356 = vunpack.c.l.b16 %v316
      %v357 = vunpack.c.l.b16 %v317
      %v358 = vunpack.c.l.b16 %v318
      %v359 = vunpack.c.l.b16 %v319
      %v360 = vunpack.c.l.b16 %v320
      %v361 = vunpack.c.l.b16 %v321
      %v362 = vunpack.c.l.b16 %v322
      %v363 = vunpack.c.l.b16 %v323
      %v364 = vpack.c.b16 %v357, %v356
      %v365 = vpack.c.b16 %v359, %v358
      %v366 = vpack.c.b16 %v361, %v360
      %v367 = vpack.c.b16 %v363, %v362
      %v373 = vsel %vm251, %v344, 0
      %v376 = vsel %vm251, %v347, 0
      %378 = vmatprep.subr.bf16.mxu0 0
      %379 = vmatpush1.bf16.msra.mxu0 %v364
      %380 = vmatprep.subr.bf16.mxu0 0
      %381 = vmatpush1.bf16.msra.mxu0 %v365
      %382 = vmatprep.subr.bf16.mxu0 0
      %383 = vmatpush1.bf16.msra.mxu0 %v366
      %384 = vmatprep.subr.bf16.mxu0 0
      %385 = vmatpush1.bf16.msra.mxu0 %v367
      %386 = vmatprep.subr.bf16.mxu0 0
      %387 = vmatpush1.bf16.msra.mxu0 0
      %388 = vmatprep.subr.bf16.mxu0 0
      %389 = vmatpush1.bf16.msra.mxu0 0
      %390 = vmatprep.subr.bf16.mxu0 0
      %391 = vmatpush1.bf16.msra.mxu0 0
      %392 = vmatprep.subr.bf16.mxu0 0
      %393 = vmatpush1.bf16.msra.mxu0 0
      %394 = vmatprep.subr.bf16.mxu0 0
      %395 = vmatpush1.bf16.msra.mxu0 0
      %396 = vmatprep.subr.bf16.mxu0 0
      %397 = vmatpush1.bf16.msra.mxu0 0
      %398 = vmatprep.subr.bf16.mxu0 0
      %399 = vmatpush1.bf16.msra.mxu0 0
      %400 = vmatprep.subr.bf16.mxu0 0
      %401 = vmatpush1.bf16.msra.mxu0 0
      %402 = vmatprep.subr.bf16.mxu0 0
      %403 = vmatpush1.bf16.msra.mxu0 0
      %404 = vmatprep.subr.bf16.mxu0 0
      %405 = vmatpush1.bf16.msra.mxu0 0
      %406 = vmatprep.subr.bf16.mxu0 0
      %407 = vmatpush1.bf16.msra.mxu0 0
      %408 = vmatprep.subr.bf16.mxu0 0
      %409 = vmatpush1.bf16.msra.mxu0 0
      %410 = vmatprep.mubr.bf16.mxu0 0
      %411 = vmatmul.mubr.bf16.gmra.mrb[0].mxu0 %v373
      %v412 = vpop.f32.mrb[0].mxu0
      %v413 = vadd.f32 0.0, %v412
      %v414 = vpop.f32.mrb[0].mxu0
      %v415 = vpop.f32.mrb[0].mxu0
      %v416 = vadd.f32 0.0, %v415
      %v417 = vpop.f32.mrb[0].mxu0
      %418 = vmatprep.mubr.bf16.mxu0 0
      %419 = vmatmul.mubr.bf16.gmra.mrb[0].mxu0 %v376
      %v420 = vpop.f32.mrb[0].mxu0
      %v421 = vadd.f32 0.0, %v420
      %v422 = vpop.f32.mrb[0].mxu0
      %v423 = vpop.f32.mrb[0].mxu0
      %v424 = vpop.f32.mrb[0].mxu0
      %425 = vdwg.mxu0
      %v426 = vadd.f32 %v309, %v413
      %v427 = vadd.f32 %v310, %v416
      %v428 = vadd.f32 %v311, %v421
      %429 = vst [vmem:[#allocation2] sm:$0xff] %v426
      %430 = vst [vmem:[#allocation2 + $0x8] sm:$0xff] %v427
      %431 = vst [vmem:[#allocation2 + $0x10] sm:$0xf] %v428
      %v432 = vld [vmem:[#allocation2] sm:$0xff]
      %v433 = vld [vmem:[#allocation2 + $0x8] sm:$0xff]
      %v434 = vld [vmem:[#allocation2 + $0x10] sm:$0xf]
      %v435 = vld [vmem:[%s197] sm:$0xc]
      %v436 = vld [vmem:[%s197 + $0x4] sm:$0xf]
      %v437 = vld [vmem:[%s197 + $0x8] sm:$0xf]
      %v438 = vld [vmem:[%s197 + $0xc] sm:$0x1]
      %s439 = scalar_lea.vmem %s1, 64
      %v440 = vld [vmem:[%s439] sm:$0xf]
      %v441 = vld [vmem:[%s439 + $0x4] sm:$0xf]
      %v442 = vld [vmem:[%s439 + $0x8] sm:$0xf]
      %v443 = vld [vmem:[%s439 + $0xc] sm:$0xf]
      %v444 = vld [vmem:[%s439 + $0x10] sm:$0xf]
      %v445 = vld [vmem:[%s439 + $0x14] sm:$0xf]
      %v446 = vld [vmem:[%s439 + $0x18] sm:$0xf]
      %v447 = vld [vmem:[%s439 + $0x1c] sm:$0xf]
      %v452 = vunpack.c.l.b16 %v435
      %v453 = vunpack.c.l.b16 %v436
      %v454 = vunpack.c.l.b16 %v437
      %v455 = vunpack.c.l.b16 %v438
      %v456 = vpack.c.b16 %v453, %v452
      %v457 = vpack.c.b16 %v455, %v454
      %vm458 = vsmask.f32 5376
      %v460 = vshrl.u32 %v456, 16
      %v462 = vrot.slane %v460, 2
      %v463 = vshll.u32 %v456, 16
      %v465 = vrot.slane %v463, 3
      %v466 = vor.u32 %v462, %v465
      %v468 = vshrl.u32 %v457, 16
      %v470 = vrot.slane %v468, 2
      %v471 = vshll.u32 %v457, 16
      %v473 = vrot.slane %v471, 3
      %v474 = vor.u32 %v470, %v473
      %v475 = vsel %vm458, %v466, %v474
      %v484 = vunpack.c.l.b16 %v440
      %v485 = vunpack.c.l.b16 %v441
      %v486 = vunpack.c.l.b16 %v442
      %v487 = vunpack.c.l.b16 %v443
      %v488 = vunpack.c.l.b16 %v444
      %v489 = vunpack.c.l.b16 %v445
      %v490 = vunpack.c.l.b16 %v446
      %v491 = vunpack.c.l.b16 %v447
      %v492 = vpack.c.b16 %v485, %v484
      %v493 = vpack.c.b16 %v487, %v486
      %v494 = vpack.c.b16 %v489, %v488
      %v495 = vpack.c.b16 %v491, %v490
      %v501 = vsel %vm251, %v475, 0
      %v504 = vsel %vm251, %v474, 0
      %506 = vmatprep.subr.bf16.mxu0 0
      %507 = vmatpush1.bf16.msra.mxu0 %v492
      %508 = vmatprep.subr.bf16.mxu0 0
      %509 = vmatpush1.bf16.msra.mxu0 %v493
      %510 = vmatprep.subr.bf16.mxu0 0
      %511 = vmatpush1.bf16.msra.mxu0 %v494
      %512 = vmatprep.subr.bf16.mxu0 0
      %513 = vmatpush1.bf16.msra.mxu0 %v495
      %514 = vmatprep.subr.bf16.mxu0 0
      %515 = vmatpush1.bf16.msra.mxu0 0
      %516 = vmatprep.subr.bf16.mxu0 0
      %517 = vmatpush1.bf16.msra.mxu0 0
      %518 = vmatprep.subr.bf16.mxu0 0
      %519 = vmatpush1.bf16.msra.mxu0 0
      %520 = vmatprep.subr.bf16.mxu0 0
      %521 = vmatpush1.bf16.msra.mxu0 0
      %522 = vmatprep.subr.bf16.mxu0 0
      %523 = vmatpush1.bf16.msra.mxu0 0
      %524 = vmatprep.subr.bf16.mxu0 0
      %525 = vmatpush1.bf16.msra.mxu0 0
      %526 = vmatprep.subr.bf16.mxu0 0
      %527 = vmatpush1.bf16.msra.mxu0 0
      %528 = vmatprep.subr.bf16.mxu0 0
      %529 = vmatpush1.bf16.msra.mxu0 0
      %530 = vmatprep.subr.bf16.mxu0 0
      %531 = vmatpush1.bf16.msra.mxu0 0
      %532 = vmatprep.subr.bf16.mxu0 0
      %533 = vmatpush1.bf16.msra.mxu0 0
      %534 = vmatprep.subr.bf16.mxu0 0
      %535 = vmatpush1.bf16.msra.mxu0 0
      %536 = vmatprep.subr.bf16.mxu0 0
      %537 = vmatpush1.bf16.msra.mxu0 0
      %538 = vmatprep.mubr.bf16.mxu0 0
      %539 = vmatmul.mubr.bf16.gmra.mrb[0].mxu0 %v501
      %v540 = vpop.f32.mrb[0].mxu0
      %v541 = vadd.f32 0.0, %v540
      %v542 = vpop.f32.mrb[0].mxu0
      %v543 = vpop.f32.mrb[0].mxu0
      %v544 = vadd.f32 0.0, %v543
      %v545 = vpop.f32.mrb[0].mxu0
      %546 = vmatprep.mubr.bf16.mxu0 0
      %547 = vmatmul.mubr.bf16.gmra.mrb[0].mxu0 %v504
      %v548 = vpop.f32.mrb[0].mxu0
      %v549 = vadd.f32 0.0, %v548
      %v550 = vpop.f32.mrb[0].mxu0
      %v551 = vpop.f32.mrb[0].mxu0
      %v552 = vpop.f32.mrb[0].mxu0
      %553 = vdwg.mxu0
      %v554 = vadd.f32 %v432, %v541
      %v555 = vadd.f32 %v433, %v544
      %v556 = vadd.f32 %v434, %v549
      %557 = vst [vmem:[#allocation2] sm:$0xff] %v554
      %558 = vst [vmem:[#allocation2 + $0x8] sm:$0xff] %v555
      %559 = vst [vmem:[#allocation2 + $0x10] sm:$0xf] %v556
      %v560 = vld [vmem:[#allocation2] sm:$0xff]
      %v561 = vld [vmem:[#allocation2 + $0x8] sm:$0xff]
      %v562 = vld [vmem:[#allocation2 + $0x10] sm:$0xf]
      %v563 = vld [vmem:[%s197] sm:$0x8]
      %v564 = vld [vmem:[%s197 + $0x4] sm:$0xf]
      %v565 = vld [vmem:[%s197 + $0x8] sm:$0xf]
      %v566 = vld [vmem:[%s197 + $0xc] sm:$0x1]
      %s567 = scalar_lea.vmem %s1, 96
      %v568 = vld [vmem:[%s567] sm:$0xf]
      %v569 = vld [vmem:[%s567 + $0x4] sm:$0xf]
      %v570 = vld [vmem:[%s567 + $0x8] sm:$0xf]
      %v571 = vld [vmem:[%s567 + $0xc] sm:$0xf]
      %v572 = vld [vmem:[%s567 + $0x10] sm:$0xf]
      %v573 = vld [vmem:[%s567 + $0x14] sm:$0xf]
      %v574 = vld [vmem:[%s567 + $0x18] sm:$0xf]
      %v575 = vld [vmem:[%s567 + $0x1c] sm:$0xf]
      %v580 = vunpack.c.l.b16 %v563
      %v581 = vunpack.c.l.b16 %v564
      %v582 = vunpack.c.l.b16 %v565
      %v583 = vunpack.c.l.b16 %v566
      %v584 = vpack.c.b16 %v581, %v580
      %v585 = vpack.c.b16 %v583, %v582
      %vm586 = vcmask 1044480
      %v587 = vrot.slane %v584, 3
      %v588 = vrot.slane %v585, 3
      %v589 = vsel %vm586, %v587, %v588
      %v598 = vunpack.c.l.b16 %v568
      %v599 = vunpack.c.l.b16 %v569
      %v600 = vunpack.c.l.b16 %v570
      %v601 = vunpack.c.l.b16 %v571
      %v602 = vunpack.c.l.b16 %v572
      %v603 = vunpack.c.l.b16 %v573
      %v604 = vunpack.c.l.b16 %v574
      %v605 = vunpack.c.l.b16 %v575
      %v606 = vpack.c.b16 %v599, %v598
      %v607 = vpack.c.b16 %v601, %v600
      %v608 = vpack.c.b16 %v603, %v602
      %v609 = vpack.c.b16 %v605, %v604
      %v615 = vsel %vm251, %v589, 0
      %v618 = vsel %vm251, %v588, 0
      %620 = vmatprep.subr.bf16.mxu0 0
      %621 = vmatpush1.bf16.msra.mxu0 %v606
      %622 = vmatprep.subr.bf16.mxu0 0
      %623 = vmatpush1.bf16.msra.mxu0 %v607
      %624 = vmatprep.subr.bf16.mxu0 0
      %625 = vmatpush1.bf16.msra.mxu0 %v608
      %626 = vmatprep.subr.bf16.mxu0 0
      %627 = vmatpush1.bf16.msra.mxu0 %v609
      %628 = vmatprep.subr.bf16.mxu0 0
      %629 = vmatpush1.bf16.msra.mxu0 0
      %630 = vmatprep.subr.bf16.mxu0 0
      %631 = vmatpush1.bf16.msra.mxu0 0
      %632 = vmatprep.subr.bf16.mxu0 0
      %633 = vmatpush1.bf16.msra.mxu0 0
      %634 = vmatprep.subr.bf16.mxu0 0
      %635 = vmatpush1.bf16.msra.mxu0 0
      %636 = vmatprep.subr.bf16.mxu0 0
      %637 = vmatpush1.bf16.msra.mxu0 0
      %638 = vmatprep.subr.bf16.mxu0 0
      %639 = vmatpush1.bf16.msra.mxu0 0
      %640 = vmatprep.subr.bf16.mxu0 0
      %641 = vmatpush1.bf16.msra.mxu0 0
      %642 = vmatprep.subr.bf16.mxu0 0
      %643 = vmatpush1.bf16.msra.mxu0 0
      %644 = vmatprep.subr.bf16.mxu0 0
      %645 = vmatpush1.bf16.msra.mxu0 0
      %646 = vmatprep.subr.bf16.mxu0 0
      %647 = vmatpush1.bf16.msra.mxu0 0
      %648 = vmatprep.subr.bf16.mxu0 0
      %649 = vmatpush1.bf16.msra.mxu0 0
      %650 = vmatprep.subr.bf16.mxu0 0
      %651 = vmatpush1.bf16.msra.mxu0 0
      %652 = vmatprep.mubr.bf16.mxu0 0
      %653 = vmatmul.mubr.bf16.gmra.mrb[0].mxu0 %v615
      %v654 = vpop.f32.mrb[0].mxu0
      %v655 = vadd.f32 0.0, %v654
      %v656 = vpop.f32.mrb[0].mxu0
      %v657 = vpop.f32.mrb[0].mxu0
      %v658 = vadd.f32 0.0, %v657
      %v659 = vpop.f32.mrb[0].mxu0
      %660 = vmatprep.mubr.bf16.mxu0 0
      %661 = vmatmul.mubr.bf16.gmra.mrb[0].mxu0 %v618
      %v662 = vpop.f32.mrb[0].mxu0
      %v663 = vadd.f32 0.0, %v662
      %v664 = vpop.f32.mrb[0].mxu0
      %v665 = vpop.f32.mrb[0].mxu0
      %v666 = vpop.f32.mrb[0].mxu0
      %667 = vdwg.mxu0
      %v668 = vadd.f32 %v560, %v655
      %v669 = vadd.f32 %v561, %v658
      %v670 = vadd.f32 %v562, %v663
      %671 = vst [vmem:[#allocation2] sm:$0xff] %v668
      %672 = vst [vmem:[#allocation2 + $0x8] sm:$0xff] %v669
      %673 = vst [vmem:[#allocation2 + $0x10] sm:$0xf] %v670
      %v674 = vld [vmem:[#allocation2] sm:$0xff]
      %v675 = vld [vmem:[#allocation2 + $0x8] sm:$0xff]
      %v676 = vld [vmem:[#allocation2 + $0x10] sm:$0xf]
      %680 = vrot.lane.b32.xlu0 %v674, 96
      %v681 = vpop.permute.xlu0 %680
      %682 = vrot.lane.b32.xlu0 %v675, 96
      %v683 = vpop.permute.xlu0 %682
      %684 = vrot.lane.b32.xlu0 %v676, 96
      %v685 = vpop.permute.xlu0 %684
      %v689 = vmax.f32 %v674, %v681
      %v690 = vmax.f32 %v675, %v683
      %v691 = vmax.f32 %v676, %v685
      %695 = vrot.lane.b32.xlu0 %v689, 64
      %v696 = vpop.permute.xlu0 %695
      %697 = vrot.lane.b32.xlu0 %v690, 64
      %v698 = vpop.permute.xlu0 %697
      %699 = vrot.lane.b32.xlu0 %v691, 64
      %v700 = vpop.permute.xlu0 %699
      %v704 = vmax.f32 %v689, %v696
      %v705 = vmax.f32 %v690, %v698
      %v706 = vmax.f32 %v691, %v700
      %v707 = vld [vmem:[%s2] sm:$0x1]
      %v709 = vlaneseq
      %v710 = vshrl.u32 %v709, 7
      %v711 = vsub.s32 0, %v710
      %v712 = vrot.slane %v707, %v711
      %v714 = vadd.f32 %v704, %v712
      %v715 = vadd.f32 %v705, %v712
      %v716 = vadd.f32 %v706, %v712
      %v717 = vmax.f32 %v714, 0.0
      %v718 = vmax.f32 %v715, 0.0
      %v719 = vmax.f32 %v716, 0.0
      %v723 = vcombine.high %v717, %v717
      %v725 = vunpack.c.l.s4 1966171168
      %v726 = vunpack.c.0.s8 %v725
      %v727 = vlaneseq
      %v728 = vshrl.u32 %v727, 7
      %v729 = vsub.s32 %v726, %v728
      %v730 = vrot.slane %v717, %v729
      %v732 = vunpack.c.l.s4 1966171168
      %v733 = vunpack.c.0.s8 %v732
      %v734 = vlaneseq
      %v735 = vshrl.u32 %v734, 7
      %v736 = vsub.s32 %v733, %v735
      %v737 = vrot.slane %v723, %v736
      %v738 = vcombine.high %v730, %v730
      %v739 = vcombine.high %v737, %v737
      %v741 = vunpack.c.l.s4 1966171168
      %v742 = vunpack.c.0.s8 %v741
      %v743 = vlaneseq
      %v744 = vshrl.u32 %v743, 7
      %v745 = vsub.s32 %v742, %v744
      %v746 = vrot.slane %v730, %v745
      %v748 = vunpack.c.l.s4 1966171168
      %v749 = vunpack.c.0.s8 %v748
      %v750 = vlaneseq
      %v751 = vshrl.u32 %v750, 7
      %v752 = vsub.s32 %v749, %v751
      %v753 = vrot.slane %v737, %v752
      %v755 = vunpack.c.l.s4 1966171168
      %v756 = vunpack.c.0.s8 %v755
      %v757 = vlaneseq
      %v758 = vshrl.u32 %v757, 7
      %v759 = vsub.s32 %v756, %v758
      %v760 = vrot.slane %v738, %v759
      %v762 = vunpack.c.l.s4 1966171168
      %v763 = vunpack.c.0.s8 %v762
      %v764 = vlaneseq
      %v765 = vshrl.u32 %v764, 7
      %v766 = vsub.s32 %v763, %v765
      %v767 = vrot.slane %v739, %v766
      %v768 = vcombine.high %v746, %v746
      %v769 = vcombine.high %v753, %v753
      %v770 = vcombine.high %v760, %v760
      %v771 = vcombine.high %v767, %v767
      %v772 = vcombine.high %v718, %v718
      %v774 = vunpack.c.l.s4 1966171168
      %v775 = vunpack.c.0.s8 %v774
      %v776 = vlaneseq
      %v777 = vshrl.u32 %v776, 7
      %v778 = vsub.s32 %v775, %v777
      %v779 = vrot.slane %v718, %v778
      %v781 = vunpack.c.l.s4 1966171168
      %v782 = vunpack.c.0.s8 %v781
      %v783 = vlaneseq
      %v784 = vshrl.u32 %v783, 7
      %v785 = vsub.s32 %v782, %v784
      %v786 = vrot.slane %v772, %v785
      %v787 = vcombine.high %v779, %v779
      %v788 = vcombine.high %v786, %v786
      %v790 = vunpack.c.l.s4 1966171168
      %v791 = vunpack.c.0.s8 %v790
      %v792 = vlaneseq
      %v793 = vshrl.u32 %v792, 7
      %v794 = vsub.s32 %v791, %v793
      %v795 = vrot.slane %v779, %v794
      %v797 = vunpack.c.l.s4 1966171168
      %v798 = vunpack.c.0.s8 %v797
      %v799 = vlaneseq
      %v800 = vshrl.u32 %v799, 7
      %v801 = vsub.s32 %v798, %v800
      %v802 = vrot.slane %v786, %v801
      %v804 = vunpack.c.l.s4 1966171168
      %v805 = vunpack.c.0.s8 %v804
      %v806 = vlaneseq
      %v807 = vshrl.u32 %v806, 7
      %v808 = vsub.s32 %v805, %v807
      %v809 = vrot.slane %v787, %v808
      %v811 = vunpack.c.l.s4 1966171168
      %v812 = vunpack.c.0.s8 %v811
      %v813 = vlaneseq
      %v814 = vshrl.u32 %v813, 7
      %v815 = vsub.s32 %v812, %v814
      %v816 = vrot.slane %v788, %v815
      %v817 = vcombine.high %v795, %v795
      %v818 = vcombine.high %v809, %v809
      %v819 = vcombine.high %v816, %v816
      %v821 = vunpack.c.l.s4 1966171168
      %v822 = vunpack.c.0.s8 %v821
      %v823 = vlaneseq
      %v824 = vshrl.u32 %v823, 7
      %v825 = vsub.s32 %v822, %v824
      %v826 = vrot.slane %v719, %v825
      %v827 = vcombine.high %v826, %v826
      %v829 = vunpack.c.l.s4 1966171168
      %v830 = vunpack.c.0.s8 %v829
      %v831 = vlaneseq
      %v832 = vshrl.u32 %v831, 7
      %v833 = vsub.s32 %v830, %v832
      %v834 = vrot.slane %v826, %v833
      %v836 = vunpack.c.l.s4 1966171168
      %v837 = vunpack.c.0.s8 %v836
      %v838 = vlaneseq
      %v839 = vshrl.u32 %v838, 7
      %v840 = vsub.s32 %v837, %v839
      %v841 = vrot.slane %v827, %v840
      %v842 = vcombine.high %v834, %v834
      %v843 = vcombine.low %v746, %v760
      %v844 = vcombine.low %v768, %v770
      %v845 = vcombine.low %v767, %v769
      %v846 = vcombine.low %v771, %v795
      %v848 = vunpack.c.l.s4 1966171168
      %v849 = vunpack.c.0.s8 %v848
      %v850 = vlaneseq
      %v851 = vshrl.u32 %v850, 7
      %v852 = vsub.s32 %v849, %v851
      %v853 = vrot.slane %v843, %v852
      %v855 = vunpack.c.l.s4 1966171168
      %v856 = vunpack.c.0.s8 %v855
      %v857 = vlaneseq
      %v858 = vshrl.u32 %v857, 7
      %v859 = vsub.s32 %v856, %v858
      %v860 = vrot.slane %v844, %v859
      %v862 = vunpack.c.l.s4 1966171168
      %v863 = vunpack.c.0.s8 %v862
      %v864 = vlaneseq
      %v865 = vshrl.u32 %v864, 7
      %v866 = vsub.s32 %v863, %v865
      %v867 = vrot.slane %v845, %v866
      %v869 = vunpack.c.l.s4 1966171168
      %v870 = vunpack.c.0.s8 %v869
      %v871 = vlaneseq
      %v872 = vshrl.u32 %v871, 7
      %v873 = vsub.s32 %v870, %v872
      %v874 = vrot.slane %v846, %v873
      %v875 = vcombine.low %v853, %v860
      %v876 = vcombine.low %v867, %v874
      %v878 = vunpack.c.l.s4 1966171168
      %v879 = vunpack.c.0.s8 %v878
      %v880 = vlaneseq
      %v881 = vshrl.u32 %v880, 7
      %v882 = vsub.s32 %v879, %v881
      %v883 = vrot.slane %v875, %v882
      %v885 = vunpack.c.l.s4 1966171168
      %v886 = vunpack.c.0.s8 %v885
      %v887 = vlaneseq
      %v888 = vshrl.u32 %v887, 7
      %v889 = vsub.s32 %v886, %v888
      %v890 = vrot.slane %v876, %v889
      %v891 = vcombine.low %v883, %v890
      %v892 = vcombine.low %v817, %v818
      %v893 = vcombine.low %v802, %v816
      %v894 = vcombine.low %v819, %v834
      %v895 = vcombine.low %v841, %v842
      %v897 = vunpack.c.l.s4 1966171168
      %v898 = vunpack.c.0.s8 %v897
      %v899 = vlaneseq
      %v900 = vshrl.u32 %v899, 7
      %v901 = vsub.s32 %v898, %v900
      %v902 = vrot.slane %v892, %v901
      %v904 = vunpack.c.l.s4 1966171168
      %v905 = vunpack.c.0.s8 %v904
      %v906 = vlaneseq
      %v907 = vshrl.u32 %v906, 7
      %v908 = vsub.s32 %v905, %v907
      %v909 = vrot.slane %v893, %v908
      %v911 = vunpack.c.l.s4 1966171168
      %v912 = vunpack.c.0.s8 %v911
      %v913 = vlaneseq
      %v914 = vshrl.u32 %v913, 7
      %v915 = vsub.s32 %v912, %v914
      %v916 = vrot.slane %v894, %v915
      %v918 = vunpack.c.l.s4 1966171168
      %v919 = vunpack.c.0.s8 %v918
      %v920 = vlaneseq
      %v921 = vshrl.u32 %v920, 7
      %v922 = vsub.s32 %v919, %v921
      %v923 = vrot.slane %v895, %v922
      %v924 = vcombine.low %v902, %v909
      %v925 = vcombine.low %v916, %v923
      %v927 = vunpack.c.l.s4 1966171168
      %v928 = vunpack.c.0.s8 %v927
      %v929 = vlaneseq
      %v930 = vshrl.u32 %v929, 7
      %v931 = vsub.s32 %v928, %v930
      %v932 = vrot.slane %v924, %v931
      %v934 = vunpack.c.l.s4 1966171168
      %v935 = vunpack.c.0.s8 %v934
      %v936 = vlaneseq
      %v937 = vshrl.u32 %v936, 7
      %v938 = vsub.s32 %v935, %v937
      %v939 = vrot.slane %v925, %v938
      %v940 = vcombine.low %v932, %v939
      %v943 = vpack.c.bf16 %v940, %v891
      %v945 = vunpack.c.l.b16 %v943
      %v946 = vunpack.c.h.b16 %v943
      %v947 = vpack.c.b16 %v945, %v945
      %v948 = vpack.c.b16 %v946, %v946
      %vm951 = vcmask 257024
      %952 = vst.msk [vmem:[%s206] sm:$0xf] %vm951, %v947
      %953 = vst.msk [vmem:[%s206 + $0x4] sm:$0xf] %vm951, %v948
      %p954 = scmp.lt.s32.totalorder %s18, 1
      %s955 = scalar_select %p954, %s18, 1
      %p956 = scmp.lt.s32.totalorder %s19, 0
      %s957 = scalar_select %p956, %s19, 0
      %s958 = smul.addr %s957, 2
      %s959 = smul.addr %s955, 2
      %s960 = sadd.s32 %s958, %s959
      %s961 = smul.addr %s960, 4
      %s962 = scalar_lea.vmem %s3, %s961
      // Predicated region
      $region33: #{simple_cnn_forward.4} parent=31 // pred_check
        %p963 = pneg %p116
      $region34: #{simple_cnn_forward.4} parent=31 // pred_check_branch
        %965 = sbr.rel (%p963) target = $region36
      $region35: #{simple_cnn_forward.4} parent=31 // pred_region
        _
      $region36: #{simple_cnn_forward.4} parent=31 // pred_fallthru
        _
    $region32: #{simple_cnn_forward.4} parent=5 // pred_fallthru
      _
    %p966 = scmp.le.s32.totalorder 2, %s9
    // Predicated region
    $region37: #{simple_cnn_forward.4} parent=5 // pred_check
      %p967 = pneg %p966
    $region38: #{simple_cnn_forward.4} parent=5 // pred_check_branch
      %969 = sbr.rel (%p967) target = $region40
    $region39: #{simple_cnn_forward.4} parent=5 // pred_region
      %s970 = ssub.s32 %s9, 2
      // Predicated region
      $region41: #{simple_cnn_forward.4} parent=39 // pred_check
        %p971 = pneg %p122
      $region42: #{simple_cnn_forward.4} parent=39 // pred_check_branch
        %973 = sbr.rel (%p971) target = $region44
      $region43: #{simple_cnn_forward.4} parent=39 // pred_region
        %p974 = scmp.lt.s32.totalorder %s20, 1
        %s975 = scalar_select %p974, %s20, 1
        %p976 = scmp.lt.s32.totalorder %s21, 0
        %s977 = scalar_select %p976, %s21, 0
        %s978 = smul.addr %s977, 2
        %s979 = smul.addr %s975, 2
        %s980 = sadd.s32 %s978, %s979
        %s981 = smul.addr %s980, 4
        %s982 = scalar_lea.vmem %s3, %s981
      $region44: #{simple_cnn_forward.4} parent=39 // pred_fallthru
        _
    $region40: #{simple_cnn_forward.4} parent=5 // pred_fallthru
      _
  $region6: #{simple_cnn_forward.4} parent=0 // loop_footer
    %s13 = sadd.s32 1, %s9
  $region7: #{simple_cnn_forward.4} parent=0 // loop_footer_branch
    %8 = sbr.rel target = $region3
  $region8: #{simple_cnn_forward.4} parent=0 // loop_exit
    _

// kernel: simple_cnn_forward.5
$region0: #{simple_cnn_forward.5}
  #allocation0 [shape = 'u32[]', space=smem, size = 0x4, offset = 0x4, fixed_abs, tag = 'smem constant byte address 0x4 - core index']
  #allocation1 [shape = 'u32[144,128]{1,0:T(1,128)}', space=vmem, size = 0x12000, scoped, tag = 'internal scratch']
  #allocation2 [shape = 'f32[2,64]{1,0:T(2,128)}', space=vmem, size = 0x400, scoped, tag = 'scratch operand']
  #allocation3 [shape = 'f32[1,1]{1,0:T(1,128)S(1)}', space=vmem, size = 0x200, scoped, tag = 'scoped memory for simple_cnn_forward.5']
  %s0 = inlined_call_operand.vmem [shape: bf16[2,512], index: 0, kind: input, shape index: {}]
  %s1 = inlined_call_operand.vmem [shape: bf16[512,64], index: 1, kind: input, shape index: {}]
  %s2 = inlined_call_operand.vmem [shape: f32[1,64], index: 2, kind: input, shape index: {}]
  %s3 = inlined_call_operand.vmem [shape: bf16[64,1], index: 3, kind: input, shape index: {}]
  %s4 = inlined_call_operand.<no memory space> [shape: f32[1,1], index: 4, kind: input, shape index: {}]
  %s5 = inlined_call_operand.vmem [shape: f32[2,1], index: 5, kind: output, shape index: {}]
  %s6 = sld [smem:[#allocation0]]
  $region38: #{simple_cnn_forward.5} parent=0
    _
  %s8 = ssub.s32 1, %s6
  %s9 = scalar_select 0, %s8, %s6
  %v10 = vstv %s4
  %11 = vst [vmem:[#allocation3] sm:$0x1] %v10
  // Predicated region
  $region2: #{simple_cnn_forward.5} parent=0 // pred_check
    _
  $region3: #{simple_cnn_forward.5} parent=0 // pred_check_branch
    %13 = sbr.rel (0) target = $region5
  $region4: #{simple_cnn_forward.5} parent=0 // pred_region
    _
  $region5: #{simple_cnn_forward.5} parent=0 // pred_fallthru
    _
  // Predicated region
  $region6: #{simple_cnn_forward.5} parent=0 // pred_check
    _
  $region7: #{simple_cnn_forward.5} parent=0 // pred_check_branch
    %15 = sbr.rel (0) target = $region9
  $region8: #{simple_cnn_forward.5} parent=0 // pred_region
    _
  $region9: #{simple_cnn_forward.5} parent=0 // pred_fallthru
    _
  // Predicated region
  $region10: #{simple_cnn_forward.5} parent=0 // pred_check
    _
  $region11: #{simple_cnn_forward.5} parent=0 // pred_check_branch
    %17 = sbr.rel (0) target = $region13
  $region12: #{simple_cnn_forward.5} parent=0 // pred_region
    _
  $region13: #{simple_cnn_forward.5} parent=0 // pred_fallthru
    _
  // Predicated region
  $region14: #{simple_cnn_forward.5} parent=0 // pred_check
    _
  $region15: #{simple_cnn_forward.5} parent=0 // pred_check_branch
    %19 = sbr.rel (0) target = $region17
  $region16: #{simple_cnn_forward.5} parent=0 // pred_region
    _
  $region17: #{simple_cnn_forward.5} parent=0 // pred_fallthru
    _
  // Predicated region
  $region18: #{simple_cnn_forward.5} parent=0 // pred_check
    _
  $region19: #{simple_cnn_forward.5} parent=0 // pred_check_branch
    %21 = sbr.rel (0) target = $region21
  $region20: #{simple_cnn_forward.5} parent=0 // pred_region
    _
  $region21: #{simple_cnn_forward.5} parent=0 // pred_fallthru
    _
  %p23 = scmp.eq.s32.totalorder 0, 0
  // Predicated region
  $region22: #{simple_cnn_forward.5} parent=0 // pred_check
    %p24 = pneg %p23
  $region23: #{simple_cnn_forward.5} parent=0 // pred_check_branch
    %26 = sbr.rel (%p24) target = $region25
  $region24: #{simple_cnn_forward.5} parent=0 // pred_region
    %vm27 = vcmask 517120
    %28 = vst.msk [vmem:[#allocation2] sm:$0x3] %vm27, 0.0
  $region25: #{simple_cnn_forward.5} parent=0 // pred_fallthru
    _
  %v29 = vld [vmem:[#allocation2] sm:$0x3]
  %v30 = vld [vmem:[%s0] sm:$0xf]
  %v31 = vld [vmem:[%s1] sm:$0xf]
  %v32 = vld [vmem:[%s1 + $0x4] sm:$0xf]
  %v33 = vld [vmem:[%s1 + $0x8] sm:$0xf]
  %v34 = vld [vmem:[%s1 + $0xc] sm:$0xf]
  %v35 = vld [vmem:[%s1 + $0x10] sm:$0xf]
  %v36 = vld [vmem:[%s1 + $0x14] sm:$0xf]
  %v37 = vld [vmem:[%s1 + $0x18] sm:$0xf]
  %v38 = vld [vmem:[%s1 + $0x1c] sm:$0xf]
  %v39 = vld [vmem:[%s1 + $0x20] sm:$0xf]
  %v40 = vld [vmem:[%s1 + $0x24] sm:$0xf]
  %v41 = vld [vmem:[%s1 + $0x28] sm:$0xf]
  %v42 = vld [vmem:[%s1 + $0x2c] sm:$0xf]
  %v43 = vld [vmem:[%s1 + $0x30] sm:$0xf]
  %v44 = vld [vmem:[%s1 + $0x34] sm:$0xf]
  %v45 = vld [vmem:[%s1 + $0x38] sm:$0xf]
  %v46 = vld [vmem:[%s1 + $0x3c] sm:$0xf]
  %v47 = vld [vmem:[%s1 + $0x40] sm:$0xf]
  %v48 = vld [vmem:[%s1 + $0x44] sm:$0xf]
  %v49 = vld [vmem:[%s1 + $0x48] sm:$0xf]
  %v50 = vld [vmem:[%s1 + $0x4c] sm:$0xf]
  %v51 = vld [vmem:[%s1 + $0x50] sm:$0xf]
  %v52 = vld [vmem:[%s1 + $0x54] sm:$0xf]
  %v53 = vld [vmem:[%s1 + $0x58] sm:$0xf]
  %v54 = vld [vmem:[%s1 + $0x5c] sm:$0xf]
  %v55 = vld [vmem:[%s1 + $0x60] sm:$0xf]
  %v56 = vld [vmem:[%s1 + $0x64] sm:$0xf]
  %v57 = vld [vmem:[%s1 + $0x68] sm:$0xf]
  %v58 = vld [vmem:[%s1 + $0x6c] sm:$0xf]
  %v59 = vld [vmem:[%s1 + $0x70] sm:$0xf]
  %v60 = vld [vmem:[%s1 + $0x74] sm:$0xf]
  %v61 = vld [vmem:[%s1 + $0x78] sm:$0xf]
  %v62 = vld [vmem:[%s1 + $0x7c] sm:$0xf]
  %v63 = vld [vmem:[%s1 + $0x80] sm:$0xf]
  %v64 = vld [vmem:[%s1 + $0x84] sm:$0xf]
  %v65 = vld [vmem:[%s1 + $0x88] sm:$0xf]
  %v66 = vld [vmem:[%s1 + $0x8c] sm:$0xf]
  %v67 = vld [vmem:[%s1 + $0x90] sm:$0xf]
  %v68 = vld [vmem:[%s1 + $0x94] sm:$0xf]
  %v69 = vld [vmem:[%s1 + $0x98] sm:$0xf]
  %v70 = vld [vmem:[%s1 + $0x9c] sm:$0xf]
  %v71 = vld [vmem:[%s1 + $0xa0] sm:$0xf]
  %v72 = vld [vmem:[%s1 + $0xa4] sm:$0xf]
  %v73 = vld [vmem:[%s1 + $0xa8] sm:$0xf]
  %v74 = vld [vmem:[%s1 + $0xac] sm:$0xf]
  %v75 = vld [vmem:[%s1 + $0xb0] sm:$0xf]
  %v76 = vld [vmem:[%s1 + $0xb4] sm:$0xf]
  %v77 = vld [vmem:[%s1 + $0xb8] sm:$0xf]
  %v78 = vld [vmem:[%s1 + $0xbc] sm:$0xf]
  %v79 = vld [vmem:[%s1 + $0xc0] sm:$0xf]
  %v80 = vld [vmem:[%s1 + $0xc4] sm:$0xf]
  %v81 = vld [vmem:[%s1 + $0xc8] sm:$0xf]
  %v82 = vld [vmem:[%s1 + $0xcc] sm:$0xf]
  %v83 = vld [vmem:[%s1 + $0xd0] sm:$0xf]
  %v84 = vld [vmem:[%s1 + $0xd4] sm:$0xf]
  %v85 = vld [vmem:[%s1 + $0xd8] sm:$0xf]
  %v86 = vld [vmem:[%s1 + $0xdc] sm:$0xf]
  %v87 = vld [vmem:[%s1 + $0xe0] sm:$0xf]
  %v88 = vld [vmem:[%s1 + $0xe4] sm:$0xf]
  %v89 = vld [vmem:[%s1 + $0xe8] sm:$0xf]
  %v90 = vld [vmem:[%s1 + $0xec] sm:$0xf]
  %v91 = vld [vmem:[%s1 + $0xf0] sm:$0xf]
  %v92 = vld [vmem:[%s1 + $0xf4] sm:$0xf]
  %v93 = vld [vmem:[%s1 + $0xf8] sm:$0xf]
  %v94 = vld [vmem:[%s1 + $0xfc] sm:$0xf]
  %v97 = vunpack.c.l.s4 1966171168
  %v98 = vunpack.c.0.s8 %v97
  %v99 = vlaneseq
  %v100 = vshrl.u32 %v99, 7
  %v101 = vsub.s32 %v98, %v100
  %v102 = vrot.slane %v30, %v101
  %v103 = vcombine.high %v102, %v102
  %v105 = vunpack.c.l.s4 1966171168
  %v106 = vunpack.c.0.s8 %v105
  %v107 = vlaneseq
  %v108 = vshrl.u32 %v107, 7
  %v109 = vsub.s32 %v106, %v108
  %v110 = vrot.slane %v102, %v109
  %v112 = vunpack.c.l.s4 1966171168
  %v113 = vunpack.c.0.s8 %v112
  %v114 = vlaneseq
  %v115 = vshrl.u32 %v114, 7
  %v116 = vsub.s32 %v113, %v115
  %v117 = vrot.slane %v103, %v116
  %v118 = vcombine.high %v110, %v110
  %v119 = vcombine.high %v117, %v117
  %v188 = vunpack.c.l.b16 %v31
  %v189 = vunpack.c.l.b16 %v32
  %v190 = vunpack.c.l.b16 %v33
  %v191 = vunpack.c.l.b16 %v34
  %v192 = vunpack.c.l.b16 %v35
  %v193 = vunpack.c.l.b16 %v36
  %v194 = vunpack.c.l.b16 %v37
  %v195 = vunpack.c.l.b16 %v38
  %v196 = vunpack.c.l.b16 %v39
  %v197 = vunpack.c.l.b16 %v40
  %v198 = vunpack.c.l.b16 %v41
  %v199 = vunpack.c.l.b16 %v42
  %v200 = vunpack.c.l.b16 %v43
  %v201 = vunpack.c.l.b16 %v44
  %v202 = vunpack.c.l.b16 %v45
  %v203 = vunpack.c.l.b16 %v46
  %v204 = vunpack.c.l.b16 %v47
  %v205 = vunpack.c.l.b16 %v48
  %v206 = vunpack.c.l.b16 %v49
  %v207 = vunpack.c.l.b16 %v50
  %v208 = vunpack.c.l.b16 %v51
  %v209 = vunpack.c.l.b16 %v52
  %v210 = vunpack.c.l.b16 %v53
  %v211 = vunpack.c.l.b16 %v54
  %v212 = vunpack.c.l.b16 %v55
  %v213 = vunpack.c.l.b16 %v56
  %v214 = vunpack.c.l.b16 %v57
  %v215 = vunpack.c.l.b16 %v58
  %v216 = vunpack.c.l.b16 %v59
  %v217 = vunpack.c.l.b16 %v60
  %v218 = vunpack.c.l.b16 %v61
  %v219 = vunpack.c.l.b16 %v62
  %v220 = vunpack.c.l.b16 %v63
  %v221 = vunpack.c.l.b16 %v64
  %v222 = vunpack.c.l.b16 %v65
  %v223 = vunpack.c.l.b16 %v66
  %v224 = vunpack.c.l.b16 %v67
  %v225 = vunpack.c.l.b16 %v68
  %v226 = vunpack.c.l.b16 %v69
  %v227 = vunpack.c.l.b16 %v70
  %v228 = vunpack.c.l.b16 %v71
  %v229 = vunpack.c.l.b16 %v72
  %v230 = vunpack.c.l.b16 %v73
  %v231 = vunpack.c.l.b16 %v74
  %v232 = vunpack.c.l.b16 %v75
  %v233 = vunpack.c.l.b16 %v76
  %v234 = vunpack.c.l.b16 %v77
  %v235 = vunpack.c.l.b16 %v78
  %v236 = vunpack.c.l.b16 %v79
  %v237 = vunpack.c.l.b16 %v80
  %v238 = vunpack.c.l.b16 %v81
  %v239 = vunpack.c.l.b16 %v82
  %v240 = vunpack.c.l.b16 %v83
  %v241 = vunpack.c.l.b16 %v84
  %v242 = vunpack.c.l.b16 %v85
  %v243 = vunpack.c.l.b16 %v86
  %v244 = vunpack.c.l.b16 %v87
  %v245 = vunpack.c.l.b16 %v88
  %v246 = vunpack.c.l.b16 %v89
  %v247 = vunpack.c.l.b16 %v90
  %v248 = vunpack.c.l.b16 %v91
  %v249 = vunpack.c.l.b16 %v92
  %v250 = vunpack.c.l.b16 %v93
  %v251 = vunpack.c.l.b16 %v94
  %v252 = vpack.c.b16 %v189, %v188
  %v253 = vpack.c.b16 %v191, %v190
  %v254 = vpack.c.b16 %v193, %v192
  %v255 = vpack.c.b16 %v195, %v194
  %v256 = vpack.c.b16 %v197, %v196
  %v257 = vpack.c.b16 %v199, %v198
  %v258 = vpack.c.b16 %v201, %v200
  %v259 = vpack.c.b16 %v203, %v202
  %v260 = vpack.c.b16 %v205, %v204
  %v261 = vpack.c.b16 %v207, %v206
  %v262 = vpack.c.b16 %v209, %v208
  %v263 = vpack.c.b16 %v211, %v210
  %v264 = vpack.c.b16 %v213, %v212
  %v265 = vpack.c.b16 %v215, %v214
  %v266 = vpack.c.b16 %v217, %v216
  %v267 = vpack.c.b16 %v219, %v218
  %v268 = vpack.c.b16 %v221, %v220
  %v269 = vpack.c.b16 %v223, %v222
  %v270 = vpack.c.b16 %v225, %v224
  %v271 = vpack.c.b16 %v227, %v226
  %v272 = vpack.c.b16 %v229, %v228
  %v273 = vpack.c.b16 %v231, %v230
  %v274 = vpack.c.b16 %v233, %v232
  %v275 = vpack.c.b16 %v235, %v234
  %v276 = vpack.c.b16 %v237, %v236
  %v277 = vpack.c.b16 %v239, %v238
  %v278 = vpack.c.b16 %v241, %v240
  %v279 = vpack.c.b16 %v243, %v242
  %v280 = vpack.c.b16 %v245, %v244
  %v281 = vpack.c.b16 %v247, %v246
  %v282 = vpack.c.b16 %v249, %v248
  %v283 = vpack.c.b16 %v251, %v250
  %316 = vmatprep.subr.bf16.mxu0 0
  %317 = vmatpush1.bf16.msra.mxu0 %v252
  %318 = vmatprep.subr.bf16.mxu0 0
  %319 = vmatpush1.bf16.msra.mxu0 %v253
  %320 = vmatprep.subr.bf16.mxu0 0
  %321 = vmatpush1.bf16.msra.mxu0 %v254
  %322 = vmatprep.subr.bf16.mxu0 0
  %323 = vmatpush1.bf16.msra.mxu0 %v255
  %324 = vmatprep.subr.bf16.mxu0 0
  %325 = vmatpush1.bf16.msra.mxu0 %v256
  %326 = vmatprep.subr.bf16.mxu0 0
  %327 = vmatpush1.bf16.msra.mxu0 %v257
  %328 = vmatprep.subr.bf16.mxu0 0
  %329 = vmatpush1.bf16.msra.mxu0 %v258
  %330 = vmatprep.subr.bf16.mxu0 0
  %331 = vmatpush1.bf16.msra.mxu0 %v259
  %332 = vmatprep.subr.bf16.mxu0 0
  %333 = vmatpush1.bf16.msra.mxu0 %v260
  %334 = vmatprep.subr.bf16.mxu0 0
  %335 = vmatpush1.bf16.msra.mxu0 %v261
  %336 = vmatprep.subr.bf16.mxu0 0
  %337 = vmatpush1.bf16.msra.mxu0 %v262
  %338 = vmatprep.subr.bf16.mxu0 0
  %339 = vmatpush1.bf16.msra.mxu0 %v263
  %340 = vmatprep.subr.bf16.mxu0 0
  %341 = vmatpush1.bf16.msra.mxu0 %v264
  %342 = vmatprep.subr.bf16.mxu0 0
  %343 = vmatpush1.bf16.msra.mxu0 %v265
  %344 = vmatprep.subr.bf16.mxu0 0
  %345 = vmatpush1.bf16.msra.mxu0 %v266
  %346 = vmatprep.subr.bf16.mxu0 0
  %347 = vmatpush1.bf16.msra.mxu0 %v267
  %348 = vmatprep.mubr.bf16.mxu0 %v117
  %349 = vmatmul.mubr.bf16.gmra.mrb[0].mxu0 %v110
  %v350 = vpop.f32.mrb[0].mxu0
  %v351 = vadd.f32 0.0, %v350
  %v352 = vpop.f32.mrb[0].mxu0
  %v353 = vpop.f32.mrb[0].mxu0
  %v354 = vpop.f32.mrb[0].mxu0
  %355 = vdwg.mxu0
  %356 = vmatprep.subr.bf16.mxu0 0
  %357 = vmatpush1.bf16.msra.mxu0 %v268
  %358 = vmatprep.subr.bf16.mxu0 0
  %359 = vmatpush1.bf16.msra.mxu0 %v269
  %360 = vmatprep.subr.bf16.mxu0 0
  %361 = vmatpush1.bf16.msra.mxu0 %v270
  %362 = vmatprep.subr.bf16.mxu0 0
  %363 = vmatpush1.bf16.msra.mxu0 %v271
  %364 = vmatprep.subr.bf16.mxu0 0
  %365 = vmatpush1.bf16.msra.mxu0 %v272
  %366 = vmatprep.subr.bf16.mxu0 0
  %367 = vmatpush1.bf16.msra.mxu0 %v273
  %368 = vmatprep.subr.bf16.mxu0 0
  %369 = vmatpush1.bf16.msra.mxu0 %v274
  %370 = vmatprep.subr.bf16.mxu0 0
  %371 = vmatpush1.bf16.msra.mxu0 %v275
  %372 = vmatprep.subr.bf16.mxu0 0
  %373 = vmatpush1.bf16.msra.mxu0 %v276
  %374 = vmatprep.subr.bf16.mxu0 0
  %375 = vmatpush1.bf16.msra.mxu0 %v277
  %376 = vmatprep.subr.bf16.mxu0 0
  %377 = vmatpush1.bf16.msra.mxu0 %v278
  %378 = vmatprep.subr.bf16.mxu0 0
  %379 = vmatpush1.bf16.msra.mxu0 %v279
  %380 = vmatprep.subr.bf16.mxu0 0
  %381 = vmatpush1.bf16.msra.mxu0 %v280
  %382 = vmatprep.subr.bf16.mxu0 0
  %383 = vmatpush1.bf16.msra.mxu0 %v281
  %384 = vmatprep.subr.bf16.mxu0 0
  %385 = vmatpush1.bf16.msra.mxu0 %v282
  %386 = vmatprep.subr.bf16.mxu0 0
  %387 = vmatpush1.bf16.msra.mxu0 %v283
  %388 = vmatprep.mubr.bf16.mxu0 %v119
  %389 = vmatmul.mubr.bf16.gmra.mrb[0].mxu0 %v118
  %v390 = vpop.f32.mrb[0].mxu0
  %v391 = vadd.f32 %v351, %v390
  %v392 = vpop.f32.mrb[0].mxu0
  %v393 = vpop.f32.mrb[0].mxu0
  %v394 = vpop.f32.mrb[0].mxu0
  %395 = vdwg.mxu0
  %v396 = vadd.f32 %v29, %v391
  %vm397 = vcmask 517120
  %398 = vst.msk [vmem:[#allocation2] sm:$0x3] %vm397, %v396
  // Predicated region
  $region26: #{simple_cnn_forward.5} parent=0 // pred_check
    %p399 = pneg %p23
  $region27: #{simple_cnn_forward.5} parent=0 // pred_check_branch
    %401 = sbr.rel (%p399) target = $region29
  $region28: #{simple_cnn_forward.5} parent=0 // pred_region
    %v402 = vld [vmem:[#allocation2] sm:$0x3]
    %v403 = vld [vmem:[%s2] sm:$0x1]
    %v405 = vlaneseq
    %v406 = vshrl.u32 %v405, 7
    %v407 = vsub.s32 0, %v406
    %v408 = vrot.slane %v403, %v407
    %v410 = vadd.f32 %v402, %v408
    %v411 = vmax.f32 %v410, 0.0
    %v412 = vpack.c.bf16 %v411, %v411
    %v413 = vld [vmem:[%s3] sm:$0xf]
    %v414 = vld [vmem:[%s3 + $0x4] sm:$0xf]
    %v415 = vld [vmem:[%s3 + $0x8] sm:$0xf]
    %v416 = vld [vmem:[%s3 + $0xc] sm:$0xf]
    %v417 = vld [vmem:[%s3 + $0x10] sm:$0xf]
    %v418 = vld [vmem:[%s3 + $0x14] sm:$0xf]
    %v419 = vld [vmem:[%s3 + $0x18] sm:$0xf]
    %v420 = vld [vmem:[%s3 + $0x1c] sm:$0xf]
    %v421 = vld [vmem:[#allocation3] sm:$0x1]
    %v423 = vlaneseq
    %v424 = vshrl.u32 %v423, 7
    %v425 = vsub.s32 0, %v424
    %v426 = vrot.slane %v421, %v425
    %v436 = vunpack.c.l.b16 %v413
    %v437 = vunpack.c.l.b16 %v414
    %v438 = vunpack.c.l.b16 %v415
    %v439 = vunpack.c.l.b16 %v416
    %v440 = vunpack.c.l.b16 %v417
    %v441 = vunpack.c.l.b16 %v418
    %v442 = vunpack.c.l.b16 %v419
    %v443 = vunpack.c.l.b16 %v420
    %v444 = vpack.c.b16 %v437, %v436
    %v445 = vpack.c.b16 %v439, %v438
    %v446 = vpack.c.b16 %v441, %v440
    %v447 = vpack.c.b16 %v443, %v442
    %vm452 = vcmask 523264
    %v454 = vsel %vm452, %v412, 0
    %456 = vmatprep.subr.bf16.mxu0 0
    %457 = vmatpush1.bf16.msra.mxu0 %v444
    %458 = vmatprep.subr.bf16.mxu0 0
    %459 = vmatpush1.bf16.msra.mxu0 %v445
    %460 = vmatprep.subr.bf16.mxu0 0
    %461 = vmatpush1.bf16.msra.mxu0 %v446
    %462 = vmatprep.subr.bf16.mxu0 0
    %463 = vmatpush1.bf16.msra.mxu0 %v447
    %464 = vmatprep.subr.bf16.mxu0 0
    %465 = vmatpush1.bf16.msra.mxu0 0
    %466 = vmatprep.subr.bf16.mxu0 0
    %467 = vmatpush1.bf16.msra.mxu0 0
    %468 = vmatprep.subr.bf16.mxu0 0
    %469 = vmatpush1.bf16.msra.mxu0 0
    %470 = vmatprep.subr.bf16.mxu0 0
    %471 = vmatpush1.bf16.msra.mxu0 0
    %472 = vmatprep.subr.bf16.mxu0 0
    %473 = vmatpush1.bf16.msra.mxu0 0
    %474 = vmatprep.subr.bf16.mxu0 0
    %475 = vmatpush1.bf16.msra.mxu0 0
    %476 = vmatprep.subr.bf16.mxu0 0
    %477 = vmatpush1.bf16.msra.mxu0 0
    %478 = vmatprep.subr.bf16.mxu0 0
    %479 = vmatpush1.bf16.msra.mxu0 0
    %480 = vmatprep.subr.bf16.mxu0 0
    %481 = vmatpush1.bf16.msra.mxu0 0
    %482 = vmatprep.subr.bf16.mxu0 0
    %483 = vmatpush1.bf16.msra.mxu0 0
    %484 = vmatprep.subr.bf16.mxu0 0
    %485 = vmatpush1.bf16.msra.mxu0 0
    %486 = vmatprep.subr.bf16.mxu0 0
    %487 = vmatpush1.bf16.msra.mxu0 0
    %488 = vmatprep.mubr.bf16.mxu0 0
    %489 = vmatmul.mubr.bf16.gmra.mrb[0].mxu0 %v454
    %v490 = vpop.f32.mrb[0].mxu0
    %v491 = vadd.f32 %v426, %v490
    %v492 = vpop.f32.mrb[0].mxu0
    %v493 = vpop.f32.mrb[0].mxu0
    %v494 = vpop.f32.mrb[0].mxu0
    %495 = vdwg.mxu0
    %v496 = vxor.u32 %v491, 2147483648
    %v497 = vmul.f32 %v496, 1.442695
    %v498 = vpow.pop %v497
    %v499 = vadd.f32 %v498, 1.0
    %v500 = vrcp.pop %v499
    %v501 = vmul.f32 1.0, %v500
    %vm502 = vcmask 1024
    %503 = vst.msk [vmem:[%s5] sm:$0x3] %vm502, %v501
  $region29: #{simple_cnn_forward.5} parent=0 // pred_fallthru
    _
  // Predicated region
  $region30: #{simple_cnn_forward.5} parent=0 // pred_check
    _
  $region31: #{simple_cnn_forward.5} parent=0 // pred_check_branch
    %505 = sbr.rel (0) target = $region33
  $region32: #{simple_cnn_forward.5} parent=0 // pred_region
    _
  $region33: #{simple_cnn_forward.5} parent=0 // pred_fallthru
    _
  // Predicated region
  $region34: #{simple_cnn_forward.5} parent=0 // pred_check
    _
  $region35: #{simple_cnn_forward.5} parent=0 // pred_check_branch
    %507 = sbr.rel (0) target = $region37
  $region36: #{simple_cnn_forward.5} parent=0 // pred_region
    _
  $region37: #{simple_cnn_forward.5} parent=0 // pred_fallthru
    _

</llo_original>
